<compile_context>
chip_gen: v7x
topology: tpu7x:2x2x1
jax: 0.10.0
libtpu: 0.0.40
codegen_flags: <defaults>
</compile_context>

<pallas_src>
import jax
import jax.numpy as jnp
import numpy as np
from jax.experimental import pallas as pl
from jax.experimental.pallas import tpu as pltpu


# --------------------------- Pallas kernel -----------------------------------

def multi_lstm_kernel(x_ref, wih_ref, whh_ref, b_ref, wout_ref, bout_ref, out_ref,
                      seq_ref, xg_ref, h_ref, c_ref):
    """Fused multi-layer LSTM + final Linear.

    x_ref   : (S*Bp, H)   layer-0 input sequence, time-major, features padded to H
    wih_ref : (L, H, 4H)  per-layer W_ih^T (layer 0 rows zero-padded F->H)
    whh_ref : (L, H, 4H)  per-layer W_hh^T
    b_ref   : (L, 1, 4H)  per-layer (b_ih + b_hh)
    wout_ref: (1, H)      final linear weight (row)
    bout_ref: (1, 1)      final linear bias
    out_ref : (Bp, 1)     linear(h_n of last layer)
    seq_ref : (S*Bp, H)   VMEM scratch: inter-layer sequence (layers >= 1 input)
    xg_ref  : (S*Bp, 4H)  VMEM scratch: hoisted input projection for current layer
    h_ref/c_ref : (Bp, H) VMEM scratch: LSTM state
    """
    Bp, H = h_ref.shape
    S = x_ref.shape[0] // Bp
    L = wih_ref.shape[0]

    for l in range(L):                          # static unroll over layers
        # Hoisted input projection + bias for the whole sequence: ONE MXU launch
        # per layer, off the serialized recurrence. Layer 0 reads x_ref directly
        # (no seq copy); later layers read the previous layer's outputs.
        src = x_ref if l == 0 else seq_ref
        xg_ref[...] = (jnp.dot(src[...], wih_ref[l],
                               preferred_element_type=jnp.float32) + b_ref[l])

        h_ref[...] = jnp.zeros_like(h_ref)
        c_ref[...] = jnp.zeros_like(c_ref)
        w_hh = whh_ref[l]                       # (H, 4H), static layer index

        for t in range(S):                      # static unroll over time (recurrence)
            rows = pl.ds(t * Bp, Bp)            # static, sublane-aligned slice
            gates = xg_ref[rows, :] + jnp.dot(h_ref[...], w_hh,
                                              preferred_element_type=jnp.float32)

            # Full-vreg transcendentals (2 EUP passes), then cheap lane slices.
            sig = jax.nn.sigmoid(gates)
            th = jnp.tanh(gates)
            i_g = sig[:, 0 * H:1 * H]
            f_g = sig[:, 1 * H:2 * H]
            g_g = th[:, 2 * H:3 * H]
            o_g = sig[:, 3 * H:4 * H]

            c_new = f_g * c_ref[...] + i_g * g_g
            h_new = o_g * jnp.tanh(c_new)
            c_ref[...] = c_new
            h_ref[...] = h_new
            if l < L - 1:                       # last layer's sequence is never read
                seq_ref[rows, :] = h_new

    # Final Linear on last layer's final hidden state: VPU mul + lane reduce
    # (skips an N=1 MXU matmul at the tail).
    out_ref[...] = (jnp.sum(h_ref[...] * wout_ref[...], axis=1, keepdims=True)
                    + bout_ref[...])


# --------------------------- wrapper ------------------------------------------

def multi_lstm_forward(x_bsf, packed, hidden):
    """Reproduces MultiLSTM.forward: linear(lstm_hidden_state_f[-1])."""
    B, S, F = x_bsf.shape
    H = hidden
    L = packed["w_ih"].shape[0]
    assert F <= H, "layer-0 features are zero-padded up to H"
    Bp = ((B + 7) // 8) * 8                                    # fill f32 sublanes

    x = jnp.transpose(x_bsf.astype(jnp.float32), (1, 0, 2))    # (S, B, F) time-major
    x = jnp.pad(x, ((0, 0), (0, Bp - B), (0, H - F)))          # (S, Bp, H)
    x = x.reshape(S * Bp, H)                                   # flatten time into sublanes

    out = pl.pallas_call(
        multi_lstm_kernel,
        out_shape=jax.ShapeDtypeStruct((Bp, 1), jnp.float32),
        grid=(1,),
        in_specs=[
            pl.BlockSpec((S * Bp, H), lambda i: (0, 0)),           # x sequence
            pl.BlockSpec((L, H, 4 * H), lambda i: (0, 0, 0)),      # W_ih slabs
            pl.BlockSpec((L, H, 4 * H), lambda i: (0, 0, 0)),      # W_hh slabs
            pl.BlockSpec((L, 1, 4 * H), lambda i: (0, 0, 0)),      # biases
            pl.BlockSpec((1, H), lambda i: (0, 0)),                # linear weight row
            pl.BlockSpec((1, 1), lambda i: (0, 0)),                # linear bias
        ],
        out_specs=pl.BlockSpec((Bp, 1), lambda i: (0, 0)),
        scratch_shapes=[
            pltpu.VMEM((S * Bp, H), jnp.float32),       # inter-layer sequence
            pltpu.VMEM((S * Bp, 4 * H), jnp.float32),   # hoisted input projection
            pltpu.VMEM((Bp, H), jnp.float32),           # h state
            pltpu.VMEM((Bp, H), jnp.float32),           # c state
        ],
        compiler_params=pltpu.CompilerParams(
            dimension_semantics=("arbitrary",)),
    )(x, packed["w_ih"], packed["w_hh"], packed["b"],
      packed["w_out_row"], packed["b_out"])

    return out[:B]                                              # drop batch padding


# --------------------------- parameter init / packing -------------------------

def init_raw_params(key, input_size, num_layers, hidden):
    """PyTorch-style U(-1/sqrt(H), 1/sqrt(H)) init, PyTorch shapes."""
    bound = 1.0 / np.sqrt(hidden)
    keys = jax.random.split(key, num_layers * 4 + 2)
    idx = 0
    layers = []
    in_size = input_size
    for _ in range(num_layers):
        wih = jax.random.uniform(keys[idx], (4 * hidden, in_size), jnp.float32, -bound, bound); idx += 1
        whh = jax.random.uniform(keys[idx], (4 * hidden, hidden), jnp.float32, -bound, bound); idx += 1
        bih = jax.random.uniform(keys[idx], (4 * hidden,), jnp.float32, -bound, bound); idx += 1
        bhh = jax.random.uniform(keys[idx], (4 * hidden,), jnp.float32, -bound, bound); idx += 1
        layers.append((wih, whh, bih, bhh))
        in_size = hidden
    w_out = jax.random.uniform(keys[idx], (1, hidden), jnp.float32, -bound, bound); idx += 1
    b_out = jax.random.uniform(keys[idx], (1,), jnp.float32, -bound, bound)
    return {"lstm": layers, "w_out": w_out, "b_out": b_out}


def pack_params(raw, input_size, hidden):
    """Pack into the fused-kernel layout: separate stacked W_ih / W_hh slabs."""
    F, H = input_size, hidden
    assert F <= H
    wihs, whhs, bs = [], [], []
    for (wih, whh, bih, bhh) in raw["lstm"]:
        wih_t = wih.T                                           # (in, 4H)
        if wih_t.shape[0] < H:                                  # zero-pad layer-0 rows
            wih_t = jnp.pad(wih_t, ((0, H - wih_t.shape[0]), (0, 0)))
        wihs.append(wih_t)                                      # (H, 4H)
        whhs.append(whh.T)                                      # (H, 4H)
        bs.append((bih + bhh)[None, :])                         # (1, 4H)
    return {
        "w_ih": jnp.stack(wihs, axis=0),                        # (L, H, 4H)
        "w_hh": jnp.stack(whhs, axis=0),                        # (L, H, 4H)
        "b": jnp.stack(bs, axis=0),                             # (L, 1, 4H)
        "w_out_row": raw["w_out"],                              # (1, H)
        "b_out": raw["b_out"][None, :],                         # (1, 1)
    }


# --------------------------- pure-JAX reference --------------------------------

def multi_lstm_ref(x_bsf, raw, hidden):
    x = x_bsf.astype(jnp.float32)
    B = x.shape[0]
    h_final = None
    for (wih, whh, bih, bhh) in raw["lstm"]:
        wih_t, whh_t, b = wih.T, whh.T, bih + bhh

        def step(carry, xt, wih_t=wih_t, whh_t=whh_t, b=b):
            h, c = carry
            gates = xt @ wih_t + h @ whh_t + b
            i = jax.nn.sigmoid(gates[:, :hidden])
            f = jax.nn.sigmoid(gates[:, hidden:2 * hidden])
            g = jnp.tanh(gates[:, 2 * hidden:3 * hidden])
            o = jax.nn.sigmoid(gates[:, 3 * hidden:])
            c = f * c + i * g
            h = o * jnp.tanh(c)
            return (h, c), h

        init = (jnp.zeros((B, hidden), jnp.float32),
                jnp.zeros((B, hidden), jnp.float32))
        (h_f, _), ys = jax.lax.scan(step, init, jnp.transpose(x, (1, 0, 2)))
        x = jnp.transpose(ys, (1, 0, 2))
        h_final = h_f
    return h_final @ raw["w_out"].T + raw["b_out"]


# --------------------------- main ----------------------------------------------

if __name__ == "__main__":
    B, S, F, H, L = 4, 8, 16, 32, 2   # batch, seq, input_size, lstm_hidden_size, num_lstm_layers

    key = jax.random.PRNGKey(0)
    kx, kp = jax.random.split(key)
    x = jax.random.normal(kx, (B, S, F), jnp.float32)

    raw = init_raw_params(kp, F, L, H)
    packed = pack_params(raw, F, H)

    # TODO(synk): inter-layer dropout (training mode, dropout>0) not implemented;
    # module default dropout=0.0 so forward semantics are identical.
    out = multi_lstm_forward(x, packed, H)
    out = jax.block_until_ready(out)
    assert out.shape == (B, 1)

    ref = multi_lstm_ref(x, raw, H)
    np.testing.assert_allclose(np.asarray(out), np.asarray(ref), atol=2e-3, rtol=2e-3)

    print("KERNEL_OK")
</pallas_src>

<mosaic_0001>
module attributes {stable_mosaic.version = 11 : i64} {
  func.func @multi_lstm_kernel(%arg0: i32, %arg1: memref<64x32xf32, #tpu.memory_space<vmem>>, %arg2: memref<2x32x128xf32, #tpu.memory_space<vmem>>, %arg3: memref<2x32x128xf32, #tpu.memory_space<vmem>>, %arg4: memref<2x1x128xf32, #tpu.memory_space<vmem>>, %arg5: memref<1x32xf32, #tpu.memory_space<vmem>>, %arg6: memref<1x1xf32, #tpu.memory_space<vmem>>, %arg7: memref<8x1xf32, #tpu.memory_space<vmem>>, %arg8: memref<64x32xf32, #tpu.memory_space<vmem>>, %arg9: memref<64x128xf32, #tpu.memory_space<vmem>>, %arg10: memref<8x32xf32, #tpu.memory_space<vmem>>, %arg11: memref<8x32xf32, #tpu.memory_space<vmem>>) attributes {dimension_semantics = [#tpu.dimension_semantics<arbitrary>], iteration_bounds = array<i64: 1>, scalar_prefetch = 0 : i64, scratch_operands = 4 : i64, tpu.core_type = #tpu.core_type<tc>, window_params = [{pipeline_mode = #tpu.pipeline_mode<synchronous>, transform_indices = @transform_0, window_bounds = array<i64: 64, 32>}, {pipeline_mode = #tpu.pipeline_mode<synchronous>, transform_indices = @transform_1, window_bounds = array<i64: 2, 32, 128>}, {pipeline_mode = #tpu.pipeline_mode<synchronous>, transform_indices = @transform_2, window_bounds = array<i64: 2, 32, 128>}, {pipeline_mode = #tpu.pipeline_mode<synchronous>, transform_indices = @transform_3, window_bounds = array<i64: 2, 1, 128>}, {pipeline_mode = #tpu.pipeline_mode<synchronous>, transform_indices = @transform_4, window_bounds = array<i64: 1, 32>}, {pipeline_mode = #tpu.pipeline_mode<synchronous>, transform_indices = @transform_5, window_bounds = array<i64: 1, 1>}, {pipeline_mode = #tpu.pipeline_mode<synchronous>, transform_indices = @transform_6, window_bounds = array<i64: 8, 1>}]} {
    %c0 = arith.constant 0 : index
    %c0_0 = arith.constant 0 : index
    %0 = vector.load %arg1[%c0, %c0_0] : memref<64x32xf32, #tpu.memory_space<vmem>>, vector<64x32xf32>
    %c0_1 = arith.constant 0 : index
    %c0_2 = arith.constant 0 : index
    %c0_3 = arith.constant 0 : index
    %1 = vector.load %arg2[%c0_1, %c0_2, %c0_3] : memref<2x32x128xf32, #tpu.memory_space<vmem>>, vector<1x32x128xf32>
    %2 = vector.shape_cast %1 : vector<1x32x128xf32> to vector<32x128xf32>
    %cst = arith.constant dense<0.000000e+00> : vector<64x128xf32>
    %3 = tpu.matmul %0, %2, %cst {dimension_numbers = #tpu.dot_dimension_numbers<[1], [0], [0], [1], [0, 0, 1, 1], [], []>} : vector<64x32xf32>, vector<32x128xf32>, vector<64x128xf32> -> vector<64x128xf32>
    %c0_4 = arith.constant 0 : index
    %c0_5 = arith.constant 0 : index
    %c0_6 = arith.constant 0 : index
    %4 = vector.load %arg4[%c0_4, %c0_5, %c0_6] : memref<2x1x128xf32, #tpu.memory_space<vmem>>, vector<1x1x128xf32>
    %5 = vector.shape_cast %4 : vector<1x1x128xf32> to vector<1x128xf32>
    %6 = vector.broadcast %5 : vector<1x128xf32> to vector<64x128xf32>
    %7 = arith.addf %3, %6 : vector<64x128xf32>
    %c0_7 = arith.constant 0 : index
    %c0_8 = arith.constant 0 : index
    %8 = vector.load %arg9[%c0_7, %c0_8] : memref<64x128xf32, #tpu.memory_space<vmem>>, vector<64x128xf32>
    tpu.vector_store %arg9[%c0_7, %c0_8], %7 {strides = array<i32>} : memref<64x128xf32, #tpu.memory_space<vmem>>, vector<64x128xf32>,
    %cst_9 = arith.constant 0.000000e+00 : f32
    %9 = vector.broadcast %cst_9 : f32 to vector<8x32xf32>
    %c0_10 = arith.constant 0 : index
    %c0_11 = arith.constant 0 : index
    %10 = vector.load %arg10[%c0_10, %c0_11] : memref<8x32xf32, #tpu.memory_space<vmem>>, vector<8x32xf32>
    tpu.vector_store %arg10[%c0_10, %c0_11], %9 {strides = array<i32>} : memref<8x32xf32, #tpu.memory_space<vmem>>, vector<8x32xf32>,
    %cst_12 = arith.constant 0.000000e+00 : f32
    %11 = vector.broadcast %cst_12 : f32 to vector<8x32xf32>
    %c0_13 = arith.constant 0 : index
    %c0_14 = arith.constant 0 : index
    %12 = vector.load %arg11[%c0_13, %c0_14] : memref<8x32xf32, #tpu.memory_space<vmem>>, vector<8x32xf32>
    tpu.vector_store %arg11[%c0_13, %c0_14], %11 {strides = array<i32>} : memref<8x32xf32, #tpu.memory_space<vmem>>, vector<8x32xf32>,
    %c0_15 = arith.constant 0 : index
    %c0_16 = arith.constant 0 : index
    %c0_17 = arith.constant 0 : index
    %13 = vector.load %arg3[%c0_15, %c0_16, %c0_17] : memref<2x32x128xf32, #tpu.memory_space<vmem>>, vector<1x32x128xf32>
    %14 = vector.shape_cast %13 : vector<1x32x128xf32> to vector<32x128xf32>
    %c0_18 = arith.constant 0 : index
    %c0_19 = arith.constant 0 : index
    %15 = vector.load %arg9[%c0_18, %c0_19] : memref<64x128xf32, #tpu.memory_space<vmem>>, vector<8x128xf32>
    %c0_20 = arith.constant 0 : index
    %c0_21 = arith.constant 0 : index
    %16 = vector.load %arg10[%c0_20, %c0_21] : memref<8x32xf32, #tpu.memory_space<vmem>>, vector<8x32xf32>
    %cst_22 = arith.constant dense<0.000000e+00> : vector<8x128xf32>
    %17 = tpu.matmul %16, %14, %cst_22 {dimension_numbers = #tpu.dot_dimension_numbers<[1], [0], [0], [1], [0, 0, 1, 1], [], []>} : vector<8x32xf32>, vector<32x128xf32>, vector<8x128xf32> -> vector<8x128xf32>
    %18 = arith.addf %15, %17 : vector<8x128xf32>
    %19 = arith.negf %18 : vector<8x128xf32>
    %20 = math.exp %19 : vector<8x128xf32>
    %cst_23 = arith.constant 1.000000e+00 : f32
    %21 = vector.broadcast %cst_23 : f32 to vector<8x128xf32>
    %22 = arith.addf %21, %20 : vector<8x128xf32>
    %23 = arith.divf %21, %22 : vector<8x128xf32>
    %24 = math.tanh %18 : vector<8x128xf32>
    %25 = vector.extract_strided_slice %23 {offsets = [0, 0], sizes = [8, 32], strides = [1, 1]} : vector<8x128xf32> to vector<8x32xf32>
    %26 = vector.extract_strided_slice %23 {offsets = [0, 32], sizes = [8, 32], strides = [1, 1]} : vector<8x128xf32> to vector<8x32xf32>
    %27 = vector.extract_strided_slice %24 {offsets = [0, 64], sizes = [8, 32], strides = [1, 1]} : vector<8x128xf32> to vector<8x32xf32>
    %28 = vector.extract_strided_slice %23 {offsets = [0, 96], sizes = [8, 32], strides = [1, 1]} : vector<8x128xf32> to vector<8x32xf32>
    %c0_24 = arith.constant 0 : index
    %c0_25 = arith.constant 0 : index
    %29 = vector.load %arg11[%c0_24, %c0_25] : memref<8x32xf32, #tpu.memory_space<vmem>>, vector<8x32xf32>
    %30 = arith.mulf %26, %29 : vector<8x32xf32>
    %31 = arith.mulf %25, %27 : vector<8x32xf32>
    %32 = arith.addf %30, %31 : vector<8x32xf32>
    %33 = math.tanh %32 : vector<8x32xf32>
    %34 = arith.mulf %28, %33 : vector<8x32xf32>
    %c0_26 = arith.constant 0 : index
    %c0_27 = arith.constant 0 : index
    %35 = vector.load %arg11[%c0_26, %c0_27] : memref<8x32xf32, #tpu.memory_space<vmem>>, vector<8x32xf32>
    tpu.vector_store %arg11[%c0_26, %c0_27], %32 {strides = array<i32>} : memref<8x32xf32, #tpu.memory_space<vmem>>, vector<8x32xf32>,
    %c0_28 = arith.constant 0 : index
    %c0_29 = arith.constant 0 : index
    %36 = vector.load %arg10[%c0_28, %c0_29] : memref<8x32xf32, #tpu.memory_space<vmem>>, vector<8x32xf32>
    tpu.vector_store %arg10[%c0_28, %c0_29], %34 {strides = array<i32>} : memref<8x32xf32, #tpu.memory_space<vmem>>, vector<8x32xf32>,
    %c0_30 = arith.constant 0 : index
    %c0_31 = arith.constant 0 : index
    %37 = vector.load %arg8[%c0_30, %c0_31] : memref<64x32xf32, #tpu.memory_space<vmem>>, vector<8x32xf32>
    tpu.vector_store %arg8[%c0_30, %c0_31], %34 {strides = array<i32>} : memref<64x32xf32, #tpu.memory_space<vmem>>, vector<8x32xf32>,
    %c8 = arith.constant 8 : index
    %c0_32 = arith.constant 0 : index
    %38 = vector.load %arg9[%c8, %c0_32] : memref<64x128xf32, #tpu.memory_space<vmem>>, vector<8x128xf32>
    %c0_33 = arith.constant 0 : index
    %c0_34 = arith.constant 0 : index
    %39 = vector.load %arg10[%c0_33, %c0_34] : memref<8x32xf32, #tpu.memory_space<vmem>>, vector<8x32xf32>
    %cst_35 = arith.constant dense<0.000000e+00> : vector<8x128xf32>
    %40 = tpu.matmul %39, %14, %cst_35 {dimension_numbers = #tpu.dot_dimension_numbers<[1], [0], [0], [1], [0, 0, 1, 1], [], []>} : vector<8x32xf32>, vector<32x128xf32>, vector<8x128xf32> -> vector<8x128xf32>
    %41 = arith.addf %38, %40 : vector<8x128xf32>
    %42 = arith.negf %41 : vector<8x128xf32>
    %43 = math.exp %42 : vector<8x128xf32>
    %cst_36 = arith.constant 1.000000e+00 : f32
    %44 = vector.broadcast %cst_36 : f32 to vector<8x128xf32>
    %45 = arith.addf %44, %43 : vector<8x128xf32>
    %46 = arith.divf %44, %45 : vector<8x128xf32>
    %47 = math.tanh %41 : vector<8x128xf32>
    %48 = vector.extract_strided_slice %46 {offsets = [0, 0], sizes = [8, 32], strides = [1, 1]} : vector<8x128xf32> to vector<8x32xf32>
    %49 = vector.extract_strided_slice %46 {offsets = [0, 32], sizes = [8, 32], strides = [1, 1]} : vector<8x128xf32> to vector<8x32xf32>
    %50 = vector.extract_strided_slice %47 {offsets = [0, 64], sizes = [8, 32], strides = [1, 1]} : vector<8x128xf32> to vector<8x32xf32>
    %51 = vector.extract_strided_slice %46 {offsets = [0, 96], sizes = [8, 32], strides = [1, 1]} : vector<8x128xf32> to vector<8x32xf32>
    %c0_37 = arith.constant 0 : index
    %c0_38 = arith.constant 0 : index
    %52 = vector.load %arg11[%c0_37, %c0_38] : memref<8x32xf32, #tpu.memory_space<vmem>>, vector<8x32xf32>
    %53 = arith.mulf %49, %52 : vector<8x32xf32>
    %54 = arith.mulf %48, %50 : vector<8x32xf32>
    %55 = arith.addf %53, %54 : vector<8x32xf32>
    %56 = math.tanh %55 : vector<8x32xf32>
    %57 = arith.mulf %51, %56 : vector<8x32xf32>
    %c0_39 = arith.constant 0 : index
    %c0_40 = arith.constant 0 : index
    %58 = vector.load %arg11[%c0_39, %c0_40] : memref<8x32xf32, #tpu.memory_space<vmem>>, vector<8x32xf32>
    tpu.vector_store %arg11[%c0_39, %c0_40], %55 {strides = array<i32>} : memref<8x32xf32, #tpu.memory_space<vmem>>, vector<8x32xf32>,
    %c0_41 = arith.constant 0 : index
    %c0_42 = arith.constant 0 : index
    %59 = vector.load %arg10[%c0_41, %c0_42] : memref<8x32xf32, #tpu.memory_space<vmem>>, vector<8x32xf32>
    tpu.vector_store %arg10[%c0_41, %c0_42], %57 {strides = array<i32>} : memref<8x32xf32, #tpu.memory_space<vmem>>, vector<8x32xf32>,
    %c8_43 = arith.constant 8 : index
    %c0_44 = arith.constant 0 : index
    %60 = vector.load %arg8[%c8_43, %c0_44] : memref<64x32xf32, #tpu.memory_space<vmem>>, vector<8x32xf32>
    tpu.vector_store %arg8[%c8_43, %c0_44], %57 {strides = array<i32>} : memref<64x32xf32, #tpu.memory_space<vmem>>, vector<8x32xf32>,
    %c16 = arith.constant 16 : index
    %c0_45 = arith.constant 0 : index
    %61 = vector.load %arg9[%c16, %c0_45] : memref<64x128xf32, #tpu.memory_space<vmem>>, vector<8x128xf32>
    %c0_46 = arith.constant 0 : index
    %c0_47 = arith.constant 0 : index
    %62 = vector.load %arg10[%c0_46, %c0_47] : memref<8x32xf32, #tpu.memory_space<vmem>>, vector<8x32xf32>
    %cst_48 = arith.constant dense<0.000000e+00> : vector<8x128xf32>
    %63 = tpu.matmul %62, %14, %cst_48 {dimension_numbers = #tpu.dot_dimension_numbers<[1], [0], [0], [1], [0, 0, 1, 1], [], []>} : vector<8x32xf32>, vector<32x128xf32>, vector<8x128xf32> -> vector<8x128xf32>
    %64 = arith.addf %61, %63 : vector<8x128xf32>
    %65 = arith.negf %64 : vector<8x128xf32>
    %66 = math.exp %65 : vector<8x128xf32>
    %cst_49 = arith.constant 1.000000e+00 : f32
    %67 = vector.broadcast %cst_49 : f32 to vector<8x128xf32>
    %68 = arith.addf %67, %66 : vector<8x128xf32>
    %69 = arith.divf %67, %68 : vector<8x128xf32>
    %70 = math.tanh %64 : vector<8x128xf32>
    %71 = vector.extract_strided_slice %69 {offsets = [0, 0], sizes = [8, 32], strides = [1, 1]} : vector<8x128xf32> to vector<8x32xf32>
    %72 = vector.extract_strided_slice %69 {offsets = [0, 32], sizes = [8, 32], strides = [1, 1]} : vector<8x128xf32> to vector<8x32xf32>
    %73 = vector.extract_strided_slice %70 {offsets = [0, 64], sizes = [8, 32], strides = [1, 1]} : vector<8x128xf32> to vector<8x32xf32>
    %74 = vector.extract_strided_slice %69 {offsets = [0, 96], sizes = [8, 32], strides = [1, 1]} : vector<8x128xf32> to vector<8x32xf32>
    %c0_50 = arith.constant 0 : index
    %c0_51 = arith.constant 0 : index
    %75 = vector.load %arg11[%c0_50, %c0_51] : memref<8x32xf32, #tpu.memory_space<vmem>>, vector<8x32xf32>
    %76 = arith.mulf %72, %75 : vector<8x32xf32>
    %77 = arith.mulf %71, %73 : vector<8x32xf32>
    %78 = arith.addf %76, %77 : vector<8x32xf32>
    %79 = math.tanh %78 : vector<8x32xf32>
    %80 = arith.mulf %74, %79 : vector<8x32xf32>
    %c0_52 = arith.constant 0 : index
    %c0_53 = arith.constant 0 : index
    %81 = vector.load %arg11[%c0_52, %c0_53] : memref<8x32xf32, #tpu.memory_space<vmem>>, vector<8x32xf32>
    tpu.vector_store %arg11[%c0_52, %c0_53], %78 {strides = array<i32>} : memref<8x32xf32, #tpu.memory_space<vmem>>, vector<8x32xf32>,
    %c0_54 = arith.constant 0 : index
    %c0_55 = arith.constant 0 : index
    %82 = vector.load %arg10[%c0_54, %c0_55] : memref<8x32xf32, #tpu.memory_space<vmem>>, vector<8x32xf32>
    tpu.vector_store %arg10[%c0_54, %c0_55], %80 {strides = array<i32>} : memref<8x32xf32, #tpu.memory_space<vmem>>, vector<8x32xf32>,
    %c16_56 = arith.constant 16 : index
    %c0_57 = arith.constant 0 : index
    %83 = vector.load %arg8[%c16_56, %c0_57] : memref<64x32xf32, #tpu.memory_space<vmem>>, vector<8x32xf32>
    tpu.vector_store %arg8[%c16_56, %c0_57], %80 {strides = array<i32>} : memref<64x32xf32, #tpu.memory_space<vmem>>, vector<8x32xf32>,
    %c24 = arith.constant 24 : index
    %c0_58 = arith.constant 0 : index
    %84 = vector.load %arg9[%c24, %c0_58] : memref<64x128xf32, #tpu.memory_space<vmem>>, vector<8x128xf32>
    %c0_59 = arith.constant 0 : index
    %c0_60 = arith.constant 0 : index
    %85 = vector.load %arg10[%c0_59, %c0_60] : memref<8x32xf32, #tpu.memory_space<vmem>>, vector<8x32xf32>
    %cst_61 = arith.constant dense<0.000000e+00> : vector<8x128xf32>
    %86 = tpu.matmul %85, %14, %cst_61 {dimension_numbers = #tpu.dot_dimension_numbers<[1], [0], [0], [1], [0, 0, 1, 1], [], []>} : vector<8x32xf32>, vector<32x128xf32>, vector<8x128xf32> -> vector<8x128xf32>
    %87 = arith.addf %84, %86 : vector<8x128xf32>
    %88 = arith.negf %87 : vector<8x128xf32>
    %89 = math.exp %88 : vector<8x128xf32>
    %cst_62 = arith.constant 1.000000e+00 : f32
    %90 = vector.broadcast %cst_62 : f32 to vector<8x128xf32>
    %91 = arith.addf %90, %89 : vector<8x128xf32>
    %92 = arith.divf %90, %91 : vector<8x128xf32>
    %93 = math.tanh %87 : vector<8x128xf32>
    %94 = vector.extract_strided_slice %92 {offsets = [0, 0], sizes = [8, 32], strides = [1, 1]} : vector<8x128xf32> to vector<8x32xf32>
    %95 = vector.extract_strided_slice %92 {offsets = [0, 32], sizes = [8, 32], strides = [1, 1]} : vector<8x128xf32> to vector<8x32xf32>
    %96 = vector.extract_strided_slice %93 {offsets = [0, 64], sizes = [8, 32], strides = [1, 1]} : vector<8x128xf32> to vector<8x32xf32>
    %97 = vector.extract_strided_slice %92 {offsets = [0, 96], sizes = [8, 32], strides = [1, 1]} : vector<8x128xf32> to vector<8x32xf32>
    %c0_63 = arith.constant 0 : index
    %c0_64 = arith.constant 0 : index
    %98 = vector.load %arg11[%c0_63, %c0_64] : memref<8x32xf32, #tpu.memory_space<vmem>>, vector<8x32xf32>
    %99 = arith.mulf %95, %98 : vector<8x32xf32>
    %100 = arith.mulf %94, %96 : vector<8x32xf32>
    %101 = arith.addf %99, %100 : vector<8x32xf32>
    %102 = math.tanh %101 : vector<8x32xf32>
    %103 = arith.mulf %97, %102 : vector<8x32xf32>
    %c0_65 = arith.constant 0 : index
    %c0_66 = arith.constant 0 : index
    %104 = vector.load %arg11[%c0_65, %c0_66] : memref<8x32xf32, #tpu.memory_space<vmem>>, vector<8x32xf32>
    tpu.vector_store %arg11[%c0_65, %c0_66], %101 {strides = array<i32>} : memref<8x32xf32, #tpu.memory_space<vmem>>, vector<8x32xf32>,
    %c0_67 = arith.constant 0 : index
    %c0_68 = arith.constant 0 : index
    %105 = vector.load %arg10[%c0_67, %c0_68] : memref<8x32xf32, #tpu.memory_space<vmem>>, vector<8x32xf32>
    tpu.vector_store %arg10[%c0_67, %c0_68], %103 {strides = array<i32>} : memref<8x32xf32, #tpu.memory_space<vmem>>, vector<8x32xf32>,
    %c24_69 = arith.constant 24 : index
    %c0_70 = arith.constant 0 : index
    %106 = vector.load %arg8[%c24_69, %c0_70] : memref<64x32xf32, #tpu.memory_space<vmem>>, vector<8x32xf32>
    tpu.vector_store %arg8[%c24_69, %c0_70], %103 {strides = array<i32>} : memref<64x32xf32, #tpu.memory_space<vmem>>, vector<8x32xf32>,
    %c32 = arith.constant 32 : index
    %c0_71 = arith.constant 0 : index
    %107 = vector.load %arg9[%c32, %c0_71] : memref<64x128xf32, #tpu.memory_space<vmem>>, vector<8x128xf32>
    %c0_72 = arith.constant 0 : index
    %c0_73 = arith.constant 0 : index
    %108 = vector.load %arg10[%c0_72, %c0_73] : memref<8x32xf32, #tpu.memory_space<vmem>>, vector<8x32xf32>
    %cst_74 = arith.constant dense<0.000000e+00> : vector<8x128xf32>
    %109 = tpu.matmul %108, %14, %cst_74 {dimension_numbers = #tpu.dot_dimension_numbers<[1], [0], [0], [1], [0, 0, 1, 1], [], []>} : vector<8x32xf32>, vector<32x128xf32>, vector<8x128xf32> -> vector<8x128xf32>
    %110 = arith.addf %107, %109 : vector<8x128xf32>
    %111 = arith.negf %110 : vector<8x128xf32>
    %112 = math.exp %111 : vector<8x128xf32>
    %cst_75 = arith.constant 1.000000e+00 : f32
    %113 = vector.broadcast %cst_75 : f32 to vector<8x128xf32>
    %114 = arith.addf %113, %112 : vector<8x128xf32>
    %115 = arith.divf %113, %114 : vector<8x128xf32>
    %116 = math.tanh %110 : vector<8x128xf32>
    %117 = vector.extract_strided_slice %115 {offsets = [0, 0], sizes = [8, 32], strides = [1, 1]} : vector<8x128xf32> to vector<8x32xf32>
    %118 = vector.extract_strided_slice %115 {offsets = [0, 32], sizes = [8, 32], strides = [1, 1]} : vector<8x128xf32> to vector<8x32xf32>
    %119 = vector.extract_strided_slice %116 {offsets = [0, 64], sizes = [8, 32], strides = [1, 1]} : vector<8x128xf32> to vector<8x32xf32>
    %120 = vector.extract_strided_slice %115 {offsets = [0, 96], sizes = [8, 32], strides = [1, 1]} : vector<8x128xf32> to vector<8x32xf32>
    %c0_76 = arith.constant 0 : index
    %c0_77 = arith.constant 0 : index
    %121 = vector.load %arg11[%c0_76, %c0_77] : memref<8x32xf32, #tpu.memory_space<vmem>>, vector<8x32xf32>
    %122 = arith.mulf %118, %121 : vector<8x32xf32>
    %123 = arith.mulf %117, %119 : vector<8x32xf32>
    %124 = arith.addf %122, %123 : vector<8x32xf32>
    %125 = math.tanh %124 : vector<8x32xf32>
    %126 = arith.mulf %120, %125 : vector<8x32xf32>
    %c0_78 = arith.constant 0 : index
    %c0_79 = arith.constant 0 : index
    %127 = vector.load %arg11[%c0_78, %c0_79] : memref<8x32xf32, #tpu.memory_space<vmem>>, vector<8x32xf32>
    tpu.vector_store %arg11[%c0_78, %c0_79], %124 {strides = array<i32>} : memref<8x32xf32, #tpu.memory_space<vmem>>, vector<8x32xf32>,
    %c0_80 = arith.constant 0 : index
    %c0_81 = arith.constant 0 : index
    %128 = vector.load %arg10[%c0_80, %c0_81] : memref<8x32xf32, #tpu.memory_space<vmem>>, vector<8x32xf32>
    tpu.vector_store %arg10[%c0_80, %c0_81], %126 {strides = array<i32>} : memref<8x32xf32, #tpu.memory_space<vmem>>, vector<8x32xf32>,
    %c32_82 = arith.constant 32 : index
    %c0_83 = arith.constant 0 : index
    %129 = vector.load %arg8[%c32_82, %c0_83] : memref<64x32xf32, #tpu.memory_space<vmem>>, vector<8x32xf32>
    tpu.vector_store %arg8[%c32_82, %c0_83], %126 {strides = array<i32>} : memref<64x32xf32, #tpu.memory_space<vmem>>, vector<8x32xf32>,
    %c40 = arith.constant 40 : index
    %c0_84 = arith.constant 0 : index
    %130 = vector.load %arg9[%c40, %c0_84] : memref<64x128xf32, #tpu.memory_space<vmem>>, vector<8x128xf32>
    %c0_85 = arith.constant 0 : index
    %c0_86 = arith.constant 0 : index
    %131 = vector.load %arg10[%c0_85, %c0_86] : memref<8x32xf32, #tpu.memory_space<vmem>>, vector<8x32xf32>
    %cst_87 = arith.constant dense<0.000000e+00> : vector<8x128xf32>
    %132 = tpu.matmul %131, %14, %cst_87 {dimension_numbers = #tpu.dot_dimension_numbers<[1], [0], [0], [1], [0, 0, 1, 1], [], []>} : vector<8x32xf32>, vector<32x128xf32>, vector<8x128xf32> -> vector<8x128xf32>
    %133 = arith.addf %130, %132 : vector<8x128xf32>
    %134 = arith.negf %133 : vector<8x128xf32>
    %135 = math.exp %134 : vector<8x128xf32>
    %cst_88 = arith.constant 1.000000e+00 : f32
    %136 = vector.broadcast %cst_88 : f32 to vector<8x128xf32>
    %137 = arith.addf %136, %135 : vector<8x128xf32>
    %138 = arith.divf %136, %137 : vector<8x128xf32>
    %139 = math.tanh %133 : vector<8x128xf32>
    %140 = vector.extract_strided_slice %138 {offsets = [0, 0], sizes = [8, 32], strides = [1, 1]} : vector<8x128xf32> to vector<8x32xf32>
    %141 = vector.extract_strided_slice %138 {offsets = [0, 32], sizes = [8, 32], strides = [1, 1]} : vector<8x128xf32> to vector<8x32xf32>
    %142 = vector.extract_strided_slice %139 {offsets = [0, 64], sizes = [8, 32], strides = [1, 1]} : vector<8x128xf32> to vector<8x32xf32>
    %143 = vector.extract_strided_slice %138 {offsets = [0, 96], sizes = [8, 32], strides = [1, 1]} : vector<8x128xf32> to vector<8x32xf32>
    %c0_89 = arith.constant 0 : index
    %c0_90 = arith.constant 0 : index
    %144 = vector.load %arg11[%c0_89, %c0_90] : memref<8x32xf32, #tpu.memory_space<vmem>>, vector<8x32xf32>
    %145 = arith.mulf %141, %144 : vector<8x32xf32>
    %146 = arith.mulf %140, %142 : vector<8x32xf32>
    %147 = arith.addf %145, %146 : vector<8x32xf32>
    %148 = math.tanh %147 : vector<8x32xf32>
    %149 = arith.mulf %143, %148 : vector<8x32xf32>
    %c0_91 = arith.constant 0 : index
    %c0_92 = arith.constant 0 : index
    %150 = vector.load %arg11[%c0_91, %c0_92] : memref<8x32xf32, #tpu.memory_space<vmem>>, vector<8x32xf32>
    tpu.vector_store %arg11[%c0_91, %c0_92], %147 {strides = array<i32>} : memref<8x32xf32, #tpu.memory_space<vmem>>, vector<8x32xf32>,
    %c0_93 = arith.constant 0 : index
    %c0_94 = arith.constant 0 : index
    %151 = vector.load %arg10[%c0_93, %c0_94] : memref<8x32xf32, #tpu.memory_space<vmem>>, vector<8x32xf32>
    tpu.vector_store %arg10[%c0_93, %c0_94], %149 {strides = array<i32>} : memref<8x32xf32, #tpu.memory_space<vmem>>, vector<8x32xf32>,
    %c40_95 = arith.constant 40 : index
    %c0_96 = arith.constant 0 : index
    %152 = vector.load %arg8[%c40_95, %c0_96] : memref<64x32xf32, #tpu.memory_space<vmem>>, vector<8x32xf32>
    tpu.vector_store %arg8[%c40_95, %c0_96], %149 {strides = array<i32>} : memref<64x32xf32, #tpu.memory_space<vmem>>, vector<8x32xf32>,
    %c48 = arith.constant 48 : index
    %c0_97 = arith.constant 0 : index
    %153 = vector.load %arg9[%c48, %c0_97] : memref<64x128xf32, #tpu.memory_space<vmem>>, vector<8x128xf32>
    %c0_98 = arith.constant 0 : index
    %c0_99 = arith.constant 0 : index
    %154 = vector.load %arg10[%c0_98, %c0_99] : memref<8x32xf32, #tpu.memory_space<vmem>>, vector<8x32xf32>
    %cst_100 = arith.constant dense<0.000000e+00> : vector<8x128xf32>
    %155 = tpu.matmul %154, %14, %cst_100 {dimension_numbers = #tpu.dot_dimension_numbers<[1], [0], [0], [1], [0, 0, 1, 1], [], []>} : vector<8x32xf32>, vector<32x128xf32>, vector<8x128xf32> -> vector<8x128xf32>
    %156 = arith.addf %153, %155 : vector<8x128xf32>
    %157 = arith.negf %156 : vector<8x128xf32>
    %158 = math.exp %157 : vector<8x128xf32>
    %cst_101 = arith.constant 1.000000e+00 : f32
    %159 = vector.broadcast %cst_101 : f32 to vector<8x128xf32>
    %160 = arith.addf %159, %158 : vector<8x128xf32>
    %161 = arith.divf %159, %160 : vector<8x128xf32>
    %162 = math.tanh %156 : vector<8x128xf32>
    %163 = vector.extract_strided_slice %161 {offsets = [0, 0], sizes = [8, 32], strides = [1, 1]} : vector<8x128xf32> to vector<8x32xf32>
    %164 = vector.extract_strided_slice %161 {offsets = [0, 32], sizes = [8, 32], strides = [1, 1]} : vector<8x128xf32> to vector<8x32xf32>
    %165 = vector.extract_strided_slice %162 {offsets = [0, 64], sizes = [8, 32], strides = [1, 1]} : vector<8x128xf32> to vector<8x32xf32>
    %166 = vector.extract_strided_slice %161 {offsets = [0, 96], sizes = [8, 32], strides = [1, 1]} : vector<8x128xf32> to vector<8x32xf32>
    %c0_102 = arith.constant 0 : index
    %c0_103 = arith.constant 0 : index
    %167 = vector.load %arg11[%c0_102, %c0_103] : memref<8x32xf32, #tpu.memory_space<vmem>>, vector<8x32xf32>
    %168 = arith.mulf %164, %167 : vector<8x32xf32>
    %169 = arith.mulf %163, %165 : vector<8x32xf32>
    %170 = arith.addf %168, %169 : vector<8x32xf32>
    %171 = math.tanh %170 : vector<8x32xf32>
    %172 = arith.mulf %166, %171 : vector<8x32xf32>
    %c0_104 = arith.constant 0 : index
    %c0_105 = arith.constant 0 : index
    %173 = vector.load %arg11[%c0_104, %c0_105] : memref<8x32xf32, #tpu.memory_space<vmem>>, vector<8x32xf32>
    tpu.vector_store %arg11[%c0_104, %c0_105], %170 {strides = array<i32>} : memref<8x32xf32, #tpu.memory_space<vmem>>, vector<8x32xf32>,
    %c0_106 = arith.constant 0 : index
    %c0_107 = arith.constant 0 : index
    %174 = vector.load %arg10[%c0_106, %c0_107] : memref<8x32xf32, #tpu.memory_space<vmem>>, vector<8x32xf32>
    tpu.vector_store %arg10[%c0_106, %c0_107], %172 {strides = array<i32>} : memref<8x32xf32, #tpu.memory_space<vmem>>, vector<8x32xf32>,
    %c48_108 = arith.constant 48 : index
    %c0_109 = arith.constant 0 : index
    %175 = vector.load %arg8[%c48_108, %c0_109] : memref<64x32xf32, #tpu.memory_space<vmem>>, vector<8x32xf32>
    tpu.vector_store %arg8[%c48_108, %c0_109], %172 {strides = array<i32>} : memref<64x32xf32, #tpu.memory_space<vmem>>, vector<8x32xf32>,
    %c56 = arith.constant 56 : index
    %c0_110 = arith.constant 0 : index
    %176 = vector.load %arg9[%c56, %c0_110] : memref<64x128xf32, #tpu.memory_space<vmem>>, vector<8x128xf32>
    %c0_111 = arith.constant 0 : index
    %c0_112 = arith.constant 0 : index
    %177 = vector.load %arg10[%c0_111, %c0_112] : memref<8x32xf32, #tpu.memory_space<vmem>>, vector<8x32xf32>
    %cst_113 = arith.constant dense<0.000000e+00> : vector<8x128xf32>
    %178 = tpu.matmul %177, %14, %cst_113 {dimension_numbers = #tpu.dot_dimension_numbers<[1], [0], [0], [1], [0, 0, 1, 1], [], []>} : vector<8x32xf32>, vector<32x128xf32>, vector<8x128xf32> -> vector<8x128xf32>
    %179 = arith.addf %176, %178 : vector<8x128xf32>
    %180 = arith.negf %179 : vector<8x128xf32>
    %181 = math.exp %180 : vector<8x128xf32>
    %cst_114 = arith.constant 1.000000e+00 : f32
    %182 = vector.broadcast %cst_114 : f32 to vector<8x128xf32>
    %183 = arith.addf %182, %181 : vector<8x128xf32>
    %184 = arith.divf %182, %183 : vector<8x128xf32>
    %185 = math.tanh %179 : vector<8x128xf32>
    %186 = vector.extract_strided_slice %184 {offsets = [0, 0], sizes = [8, 32], strides = [1, 1]} : vector<8x128xf32> to vector<8x32xf32>
    %187 = vector.extract_strided_slice %184 {offsets = [0, 32], sizes = [8, 32], strides = [1, 1]} : vector<8x128xf32> to vector<8x32xf32>
    %188 = vector.extract_strided_slice %185 {offsets = [0, 64], sizes = [8, 32], strides = [1, 1]} : vector<8x128xf32> to vector<8x32xf32>
    %189 = vector.extract_strided_slice %184 {offsets = [0, 96], sizes = [8, 32], strides = [1, 1]} : vector<8x128xf32> to vector<8x32xf32>
    %c0_115 = arith.constant 0 : index
    %c0_116 = arith.constant 0 : index
    %190 = vector.load %arg11[%c0_115, %c0_116] : memref<8x32xf32, #tpu.memory_space<vmem>>, vector<8x32xf32>
    %191 = arith.mulf %187, %190 : vector<8x32xf32>
    %192 = arith.mulf %186, %188 : vector<8x32xf32>
    %193 = arith.addf %191, %192 : vector<8x32xf32>
    %194 = math.tanh %193 : vector<8x32xf32>
    %195 = arith.mulf %189, %194 : vector<8x32xf32>
    %c0_117 = arith.constant 0 : index
    %c0_118 = arith.constant 0 : index
    %196 = vector.load %arg11[%c0_117, %c0_118] : memref<8x32xf32, #tpu.memory_space<vmem>>, vector<8x32xf32>
    tpu.vector_store %arg11[%c0_117, %c0_118], %193 {strides = array<i32>} : memref<8x32xf32, #tpu.memory_space<vmem>>, vector<8x32xf32>,
    %c0_119 = arith.constant 0 : index
    %c0_120 = arith.constant 0 : index
    %197 = vector.load %arg10[%c0_119, %c0_120] : memref<8x32xf32, #tpu.memory_space<vmem>>, vector<8x32xf32>
    tpu.vector_store %arg10[%c0_119, %c0_120], %195 {strides = array<i32>} : memref<8x32xf32, #tpu.memory_space<vmem>>, vector<8x32xf32>,
    %c56_121 = arith.constant 56 : index
    %c0_122 = arith.constant 0 : index
    %198 = vector.load %arg8[%c56_121, %c0_122] : memref<64x32xf32, #tpu.memory_space<vmem>>, vector<8x32xf32>
    tpu.vector_store %arg8[%c56_121, %c0_122], %195 {strides = array<i32>} : memref<64x32xf32, #tpu.memory_space<vmem>>, vector<8x32xf32>,
    %c0_123 = arith.constant 0 : index
    %c0_124 = arith.constant 0 : index
    %199 = vector.load %arg8[%c0_123, %c0_124] : memref<64x32xf32, #tpu.memory_space<vmem>>, vector<64x32xf32>
    %c1 = arith.constant 1 : index
    %c0_125 = arith.constant 0 : index
    %c0_126 = arith.constant 0 : index
    %200 = vector.load %arg2[%c1, %c0_125, %c0_126] : memref<2x32x128xf32, #tpu.memory_space<vmem>>, vector<1x32x128xf32>
    %201 = vector.shape_cast %200 : vector<1x32x128xf32> to vector<32x128xf32>
    %cst_127 = arith.constant dense<0.000000e+00> : vector<64x128xf32>
    %202 = tpu.matmul %199, %201, %cst_127 {dimension_numbers = #tpu.dot_dimension_numbers<[1], [0], [0], [1], [0, 0, 1, 1], [], []>} : vector<64x32xf32>, vector<32x128xf32>, vector<64x128xf32> -> vector<64x128xf32>
    %c1_128 = arith.constant 1 : index
    %c0_129 = arith.constant 0 : index
    %c0_130 = arith.constant 0 : index
    %203 = vector.load %arg4[%c1_128, %c0_129, %c0_130] : memref<2x1x128xf32, #tpu.memory_space<vmem>>, vector<1x1x128xf32>
    %204 = vector.shape_cast %203 : vector<1x1x128xf32> to vector<1x128xf32>
    %205 = vector.broadcast %204 : vector<1x128xf32> to vector<64x128xf32>
    %206 = arith.addf %202, %205 : vector<64x128xf32>
    %c0_131 = arith.constant 0 : index
    %c0_132 = arith.constant 0 : index
    %207 = vector.load %arg9[%c0_131, %c0_132] : memref<64x128xf32, #tpu.memory_space<vmem>>, vector<64x128xf32>
    tpu.vector_store %arg9[%c0_131, %c0_132], %206 {strides = array<i32>} : memref<64x128xf32, #tpu.memory_space<vmem>>, vector<64x128xf32>,
    %cst_133 = arith.constant 0.000000e+00 : f32
    %208 = vector.broadcast %cst_133 : f32 to vector<8x32xf32>
    %c0_134 = arith.constant 0 : index
    %c0_135 = arith.constant 0 : index
    %209 = vector.load %arg10[%c0_134, %c0_135] : memref<8x32xf32, #tpu.memory_space<vmem>>, vector<8x32xf32>
    tpu.vector_store %arg10[%c0_134, %c0_135], %208 {strides = array<i32>} : memref<8x32xf32, #tpu.memory_space<vmem>>, vector<8x32xf32>,
    %cst_136 = arith.constant 0.000000e+00 : f32
    %210 = vector.broadcast %cst_136 : f32 to vector<8x32xf32>
    %c0_137 = arith.constant 0 : index
    %c0_138 = arith.constant 0 : index
    %211 = vector.load %arg11[%c0_137, %c0_138] : memref<8x32xf32, #tpu.memory_space<vmem>>, vector<8x32xf32>
    tpu.vector_store %arg11[%c0_137, %c0_138], %210 {strides = array<i32>} : memref<8x32xf32, #tpu.memory_space<vmem>>, vector<8x32xf32>,
    %c1_139 = arith.constant 1 : index
    %c0_140 = arith.constant 0 : index
    %c0_141 = arith.constant 0 : index
    %212 = vector.load %arg3[%c1_139, %c0_140, %c0_141] : memref<2x32x128xf32, #tpu.memory_space<vmem>>, vector<1x32x128xf32>
    %213 = vector.shape_cast %212 : vector<1x32x128xf32> to vector<32x128xf32>
    %c0_142 = arith.constant 0 : index
    %c0_143 = arith.constant 0 : index
    %214 = vector.load %arg9[%c0_142, %c0_143] : memref<64x128xf32, #tpu.memory_space<vmem>>, vector<8x128xf32>
    %c0_144 = arith.constant 0 : index
    %c0_145 = arith.constant 0 : index
    %215 = vector.load %arg10[%c0_144, %c0_145] : memref<8x32xf32, #tpu.memory_space<vmem>>, vector<8x32xf32>
    %cst_146 = arith.constant dense<0.000000e+00> : vector<8x128xf32>
    %216 = tpu.matmul %215, %213, %cst_146 {dimension_numbers = #tpu.dot_dimension_numbers<[1], [0], [0], [1], [0, 0, 1, 1], [], []>} : vector<8x32xf32>, vector<32x128xf32>, vector<8x128xf32> -> vector<8x128xf32>
    %217 = arith.addf %214, %216 : vector<8x128xf32>
    %218 = arith.negf %217 : vector<8x128xf32>
    %219 = math.exp %218 : vector<8x128xf32>
    %cst_147 = arith.constant 1.000000e+00 : f32
    %220 = vector.broadcast %cst_147 : f32 to vector<8x128xf32>
    %221 = arith.addf %220, %219 : vector<8x128xf32>
    %222 = arith.divf %220, %221 : vector<8x128xf32>
    %223 = math.tanh %217 : vector<8x128xf32>
    %224 = vector.extract_strided_slice %222 {offsets = [0, 0], sizes = [8, 32], strides = [1, 1]} : vector<8x128xf32> to vector<8x32xf32>
    %225 = vector.extract_strided_slice %222 {offsets = [0, 32], sizes = [8, 32], strides = [1, 1]} : vector<8x128xf32> to vector<8x32xf32>
    %226 = vector.extract_strided_slice %223 {offsets = [0, 64], sizes = [8, 32], strides = [1, 1]} : vector<8x128xf32> to vector<8x32xf32>
    %227 = vector.extract_strided_slice %222 {offsets = [0, 96], sizes = [8, 32], strides = [1, 1]} : vector<8x128xf32> to vector<8x32xf32>
    %c0_148 = arith.constant 0 : index
    %c0_149 = arith.constant 0 : index
    %228 = vector.load %arg11[%c0_148, %c0_149] : memref<8x32xf32, #tpu.memory_space<vmem>>, vector<8x32xf32>
    %229 = arith.mulf %225, %228 : vector<8x32xf32>
    %230 = arith.mulf %224, %226 : vector<8x32xf32>
    %231 = arith.addf %229, %230 : vector<8x32xf32>
    %232 = math.tanh %231 : vector<8x32xf32>
    %233 = arith.mulf %227, %232 : vector<8x32xf32>
    %c0_150 = arith.constant 0 : index
    %c0_151 = arith.constant 0 : index
    %234 = vector.load %arg11[%c0_150, %c0_151] : memref<8x32xf32, #tpu.memory_space<vmem>>, vector<8x32xf32>
    tpu.vector_store %arg11[%c0_150, %c0_151], %231 {strides = array<i32>} : memref<8x32xf32, #tpu.memory_space<vmem>>, vector<8x32xf32>,
    %c0_152 = arith.constant 0 : index
    %c0_153 = arith.constant 0 : index
    %235 = vector.load %arg10[%c0_152, %c0_153] : memref<8x32xf32, #tpu.memory_space<vmem>>, vector<8x32xf32>
    tpu.vector_store %arg10[%c0_152, %c0_153], %233 {strides = array<i32>} : memref<8x32xf32, #tpu.memory_space<vmem>>, vector<8x32xf32>,
    %c8_154 = arith.constant 8 : index
    %c0_155 = arith.constant 0 : index
    %236 = vector.load %arg9[%c8_154, %c0_155] : memref<64x128xf32, #tpu.memory_space<vmem>>, vector<8x128xf32>
    %c0_156 = arith.constant 0 : index
    %c0_157 = arith.constant 0 : index
    %237 = vector.load %arg10[%c0_156, %c0_157] : memref<8x32xf32, #tpu.memory_space<vmem>>, vector<8x32xf32>
    %cst_158 = arith.constant dense<0.000000e+00> : vector<8x128xf32>
    %238 = tpu.matmul %237, %213, %cst_158 {dimension_numbers = #tpu.dot_dimension_numbers<[1], [0], [0], [1], [0, 0, 1, 1], [], []>} : vector<8x32xf32>, vector<32x128xf32>, vector<8x128xf32> -> vector<8x128xf32>
    %239 = arith.addf %236, %238 : vector<8x128xf32>
    %240 = arith.negf %239 : vector<8x128xf32>
    %241 = math.exp %240 : vector<8x128xf32>
    %cst_159 = arith.constant 1.000000e+00 : f32
    %242 = vector.broadcast %cst_159 : f32 to vector<8x128xf32>
    %243 = arith.addf %242, %241 : vector<8x128xf32>
    %244 = arith.divf %242, %243 : vector<8x128xf32>
    %245 = math.tanh %239 : vector<8x128xf32>
    %246 = vector.extract_strided_slice %244 {offsets = [0, 0], sizes = [8, 32], strides = [1, 1]} : vector<8x128xf32> to vector<8x32xf32>
    %247 = vector.extract_strided_slice %244 {offsets = [0, 32], sizes = [8, 32], strides = [1, 1]} : vector<8x128xf32> to vector<8x32xf32>
    %248 = vector.extract_strided_slice %245 {offsets = [0, 64], sizes = [8, 32], strides = [1, 1]} : vector<8x128xf32> to vector<8x32xf32>
    %249 = vector.extract_strided_slice %244 {offsets = [0, 96], sizes = [8, 32], strides = [1, 1]} : vector<8x128xf32> to vector<8x32xf32>
    %c0_160 = arith.constant 0 : index
    %c0_161 = arith.constant 0 : index
    %250 = vector.load %arg11[%c0_160, %c0_161] : memref<8x32xf32, #tpu.memory_space<vmem>>, vector<8x32xf32>
    %251 = arith.mulf %247, %250 : vector<8x32xf32>
    %252 = arith.mulf %246, %248 : vector<8x32xf32>
    %253 = arith.addf %251, %252 : vector<8x32xf32>
    %254 = math.tanh %253 : vector<8x32xf32>
    %255 = arith.mulf %249, %254 : vector<8x32xf32>
    %c0_162 = arith.constant 0 : index
    %c0_163 = arith.constant 0 : index
    %256 = vector.load %arg11[%c0_162, %c0_163] : memref<8x32xf32, #tpu.memory_space<vmem>>, vector<8x32xf32>
    tpu.vector_store %arg11[%c0_162, %c0_163], %253 {strides = array<i32>} : memref<8x32xf32, #tpu.memory_space<vmem>>, vector<8x32xf32>,
    %c0_164 = arith.constant 0 : index
    %c0_165 = arith.constant 0 : index
    %257 = vector.load %arg10[%c0_164, %c0_165] : memref<8x32xf32, #tpu.memory_space<vmem>>, vector<8x32xf32>
    tpu.vector_store %arg10[%c0_164, %c0_165], %255 {strides = array<i32>} : memref<8x32xf32, #tpu.memory_space<vmem>>, vector<8x32xf32>,
    %c16_166 = arith.constant 16 : index
    %c0_167 = arith.constant 0 : index
    %258 = vector.load %arg9[%c16_166, %c0_167] : memref<64x128xf32, #tpu.memory_space<vmem>>, vector<8x128xf32>
    %c0_168 = arith.constant 0 : index
    %c0_169 = arith.constant 0 : index
    %259 = vector.load %arg10[%c0_168, %c0_169] : memref<8x32xf32, #tpu.memory_space<vmem>>, vector<8x32xf32>
    %cst_170 = arith.constant dense<0.000000e+00> : vector<8x128xf32>
    %260 = tpu.matmul %259, %213, %cst_170 {dimension_numbers = #tpu.dot_dimension_numbers<[1], [0], [0], [1], [0, 0, 1, 1], [], []>} : vector<8x32xf32>, vector<32x128xf32>, vector<8x128xf32> -> vector<8x128xf32>
    %261 = arith.addf %258, %260 : vector<8x128xf32>
    %262 = arith.negf %261 : vector<8x128xf32>
    %263 = math.exp %262 : vector<8x128xf32>
    %cst_171 = arith.constant 1.000000e+00 : f32
    %264 = vector.broadcast %cst_171 : f32 to vector<8x128xf32>
    %265 = arith.addf %264, %263 : vector<8x128xf32>
    %266 = arith.divf %264, %265 : vector<8x128xf32>
    %267 = math.tanh %261 : vector<8x128xf32>
    %268 = vector.extract_strided_slice %266 {offsets = [0, 0], sizes = [8, 32], strides = [1, 1]} : vector<8x128xf32> to vector<8x32xf32>
    %269 = vector.extract_strided_slice %266 {offsets = [0, 32], sizes = [8, 32], strides = [1, 1]} : vector<8x128xf32> to vector<8x32xf32>
    %270 = vector.extract_strided_slice %267 {offsets = [0, 64], sizes = [8, 32], strides = [1, 1]} : vector<8x128xf32> to vector<8x32xf32>
    %271 = vector.extract_strided_slice %266 {offsets = [0, 96], sizes = [8, 32], strides = [1, 1]} : vector<8x128xf32> to vector<8x32xf32>
    %c0_172 = arith.constant 0 : index
    %c0_173 = arith.constant 0 : index
    %272 = vector.load %arg11[%c0_172, %c0_173] : memref<8x32xf32, #tpu.memory_space<vmem>>, vector<8x32xf32>
    %273 = arith.mulf %269, %272 : vector<8x32xf32>
    %274 = arith.mulf %268, %270 : vector<8x32xf32>
    %275 = arith.addf %273, %274 : vector<8x32xf32>
    %276 = math.tanh %275 : vector<8x32xf32>
    %277 = arith.mulf %271, %276 : vector<8x32xf32>
    %c0_174 = arith.constant 0 : index
    %c0_175 = arith.constant 0 : index
    %278 = vector.load %arg11[%c0_174, %c0_175] : memref<8x32xf32, #tpu.memory_space<vmem>>, vector<8x32xf32>
    tpu.vector_store %arg11[%c0_174, %c0_175], %275 {strides = array<i32>} : memref<8x32xf32, #tpu.memory_space<vmem>>, vector<8x32xf32>,
    %c0_176 = arith.constant 0 : index
    %c0_177 = arith.constant 0 : index
    %279 = vector.load %arg10[%c0_176, %c0_177] : memref<8x32xf32, #tpu.memory_space<vmem>>, vector<8x32xf32>
    tpu.vector_store %arg10[%c0_176, %c0_177], %277 {strides = array<i32>} : memref<8x32xf32, #tpu.memory_space<vmem>>, vector<8x32xf32>,
    %c24_178 = arith.constant 24 : index
    %c0_179 = arith.constant 0 : index
    %280 = vector.load %arg9[%c24_178, %c0_179] : memref<64x128xf32, #tpu.memory_space<vmem>>, vector<8x128xf32>
    %c0_180 = arith.constant 0 : index
    %c0_181 = arith.constant 0 : index
    %281 = vector.load %arg10[%c0_180, %c0_181] : memref<8x32xf32, #tpu.memory_space<vmem>>, vector<8x32xf32>
    %cst_182 = arith.constant dense<0.000000e+00> : vector<8x128xf32>
    %282 = tpu.matmul %281, %213, %cst_182 {dimension_numbers = #tpu.dot_dimension_numbers<[1], [0], [0], [1], [0, 0, 1, 1], [], []>} : vector<8x32xf32>, vector<32x128xf32>, vector<8x128xf32> -> vector<8x128xf32>
    %283 = arith.addf %280, %282 : vector<8x128xf32>
    %284 = arith.negf %283 : vector<8x128xf32>
    %285 = math.exp %284 : vector<8x128xf32>
    %cst_183 = arith.constant 1.000000e+00 : f32
    %286 = vector.broadcast %cst_183 : f32 to vector<8x128xf32>
    %287 = arith.addf %286, %285 : vector<8x128xf32>
    %288 = arith.divf %286, %287 : vector<8x128xf32>
    %289 = math.tanh %283 : vector<8x128xf32>
    %290 = vector.extract_strided_slice %288 {offsets = [0, 0], sizes = [8, 32], strides = [1, 1]} : vector<8x128xf32> to vector<8x32xf32>
    %291 = vector.extract_strided_slice %288 {offsets = [0, 32], sizes = [8, 32], strides = [1, 1]} : vector<8x128xf32> to vector<8x32xf32>
    %292 = vector.extract_strided_slice %289 {offsets = [0, 64], sizes = [8, 32], strides = [1, 1]} : vector<8x128xf32> to vector<8x32xf32>
    %293 = vector.extract_strided_slice %288 {offsets = [0, 96], sizes = [8, 32], strides = [1, 1]} : vector<8x128xf32> to vector<8x32xf32>
    %c0_184 = arith.constant 0 : index
    %c0_185 = arith.constant 0 : index
    %294 = vector.load %arg11[%c0_184, %c0_185] : memref<8x32xf32, #tpu.memory_space<vmem>>, vector<8x32xf32>
    %295 = arith.mulf %291, %294 : vector<8x32xf32>
    %296 = arith.mulf %290, %292 : vector<8x32xf32>
    %297 = arith.addf %295, %296 : vector<8x32xf32>
    %298 = math.tanh %297 : vector<8x32xf32>
    %299 = arith.mulf %293, %298 : vector<8x32xf32>
    %c0_186 = arith.constant 0 : index
    %c0_187 = arith.constant 0 : index
    %300 = vector.load %arg11[%c0_186, %c0_187] : memref<8x32xf32, #tpu.memory_space<vmem>>, vector<8x32xf32>
    tpu.vector_store %arg11[%c0_186, %c0_187], %297 {strides = array<i32>} : memref<8x32xf32, #tpu.memory_space<vmem>>, vector<8x32xf32>,
    %c0_188 = arith.constant 0 : index
    %c0_189 = arith.constant 0 : index
    %301 = vector.load %arg10[%c0_188, %c0_189] : memref<8x32xf32, #tpu.memory_space<vmem>>, vector<8x32xf32>
    tpu.vector_store %arg10[%c0_188, %c0_189], %299 {strides = array<i32>} : memref<8x32xf32, #tpu.memory_space<vmem>>, vector<8x32xf32>,
    %c32_190 = arith.constant 32 : index
    %c0_191 = arith.constant 0 : index
    %302 = vector.load %arg9[%c32_190, %c0_191] : memref<64x128xf32, #tpu.memory_space<vmem>>, vector<8x128xf32>
    %c0_192 = arith.constant 0 : index
    %c0_193 = arith.constant 0 : index
    %303 = vector.load %arg10[%c0_192, %c0_193] : memref<8x32xf32, #tpu.memory_space<vmem>>, vector<8x32xf32>
    %cst_194 = arith.constant dense<0.000000e+00> : vector<8x128xf32>
    %304 = tpu.matmul %303, %213, %cst_194 {dimension_numbers = #tpu.dot_dimension_numbers<[1], [0], [0], [1], [0, 0, 1, 1], [], []>} : vector<8x32xf32>, vector<32x128xf32>, vector<8x128xf32> -> vector<8x128xf32>
    %305 = arith.addf %302, %304 : vector<8x128xf32>
    %306 = arith.negf %305 : vector<8x128xf32>
    %307 = math.exp %306 : vector<8x128xf32>
    %cst_195 = arith.constant 1.000000e+00 : f32
    %308 = vector.broadcast %cst_195 : f32 to vector<8x128xf32>
    %309 = arith.addf %308, %307 : vector<8x128xf32>
    %310 = arith.divf %308, %309 : vector<8x128xf32>
    %311 = math.tanh %305 : vector<8x128xf32>
    %312 = vector.extract_strided_slice %310 {offsets = [0, 0], sizes = [8, 32], strides = [1, 1]} : vector<8x128xf32> to vector<8x32xf32>
    %313 = vector.extract_strided_slice %310 {offsets = [0, 32], sizes = [8, 32], strides = [1, 1]} : vector<8x128xf32> to vector<8x32xf32>
    %314 = vector.extract_strided_slice %311 {offsets = [0, 64], sizes = [8, 32], strides = [1, 1]} : vector<8x128xf32> to vector<8x32xf32>
    %315 = vector.extract_strided_slice %310 {offsets = [0, 96], sizes = [8, 32], strides = [1, 1]} : vector<8x128xf32> to vector<8x32xf32>
    %c0_196 = arith.constant 0 : index
    %c0_197 = arith.constant 0 : index
    %316 = vector.load %arg11[%c0_196, %c0_197] : memref<8x32xf32, #tpu.memory_space<vmem>>, vector<8x32xf32>
    %317 = arith.mulf %313, %316 : vector<8x32xf32>
    %318 = arith.mulf %312, %314 : vector<8x32xf32>
    %319 = arith.addf %317, %318 : vector<8x32xf32>
    %320 = math.tanh %319 : vector<8x32xf32>
    %321 = arith.mulf %315, %320 : vector<8x32xf32>
    %c0_198 = arith.constant 0 : index
    %c0_199 = arith.constant 0 : index
    %322 = vector.load %arg11[%c0_198, %c0_199] : memref<8x32xf32, #tpu.memory_space<vmem>>, vector<8x32xf32>
    tpu.vector_store %arg11[%c0_198, %c0_199], %319 {strides = array<i32>} : memref<8x32xf32, #tpu.memory_space<vmem>>, vector<8x32xf32>,
    %c0_200 = arith.constant 0 : index
    %c0_201 = arith.constant 0 : index
    %323 = vector.load %arg10[%c0_200, %c0_201] : memref<8x32xf32, #tpu.memory_space<vmem>>, vector<8x32xf32>
    tpu.vector_store %arg10[%c0_200, %c0_201], %321 {strides = array<i32>} : memref<8x32xf32, #tpu.memory_space<vmem>>, vector<8x32xf32>,
    %c40_202 = arith.constant 40 : index
    %c0_203 = arith.constant 0 : index
    %324 = vector.load %arg9[%c40_202, %c0_203] : memref<64x128xf32, #tpu.memory_space<vmem>>, vector<8x128xf32>
    %c0_204 = arith.constant 0 : index
    %c0_205 = arith.constant 0 : index
    %325 = vector.load %arg10[%c0_204, %c0_205] : memref<8x32xf32, #tpu.memory_space<vmem>>, vector<8x32xf32>
    %cst_206 = arith.constant dense<0.000000e+00> : vector<8x128xf32>
    %326 = tpu.matmul %325, %213, %cst_206 {dimension_numbers = #tpu.dot_dimension_numbers<[1], [0], [0], [1], [0, 0, 1, 1], [], []>} : vector<8x32xf32>, vector<32x128xf32>, vector<8x128xf32> -> vector<8x128xf32>
    %327 = arith.addf %324, %326 : vector<8x128xf32>
    %328 = arith.negf %327 : vector<8x128xf32>
    %329 = math.exp %328 : vector<8x128xf32>
    %cst_207 = arith.constant 1.000000e+00 : f32
    %330 = vector.broadcast %cst_207 : f32 to vector<8x128xf32>
    %331 = arith.addf %330, %329 : vector<8x128xf32>
    %332 = arith.divf %330, %331 : vector<8x128xf32>
    %333 = math.tanh %327 : vector<8x128xf32>
    %334 = vector.extract_strided_slice %332 {offsets = [0, 0], sizes = [8, 32], strides = [1, 1]} : vector<8x128xf32> to vector<8x32xf32>
    %335 = vector.extract_strided_slice %332 {offsets = [0, 32], sizes = [8, 32], strides = [1, 1]} : vector<8x128xf32> to vector<8x32xf32>
    %336 = vector.extract_strided_slice %333 {offsets = [0, 64], sizes = [8, 32], strides = [1, 1]} : vector<8x128xf32> to vector<8x32xf32>
    %337 = vector.extract_strided_slice %332 {offsets = [0, 96], sizes = [8, 32], strides = [1, 1]} : vector<8x128xf32> to vector<8x32xf32>
    %c0_208 = arith.constant 0 : index
    %c0_209 = arith.constant 0 : index
    %338 = vector.load %arg11[%c0_208, %c0_209] : memref<8x32xf32, #tpu.memory_space<vmem>>, vector<8x32xf32>
    %339 = arith.mulf %335, %338 : vector<8x32xf32>
    %340 = arith.mulf %334, %336 : vector<8x32xf32>
    %341 = arith.addf %339, %340 : vector<8x32xf32>
    %342 = math.tanh %341 : vector<8x32xf32>
    %343 = arith.mulf %337, %342 : vector<8x32xf32>
    %c0_210 = arith.constant 0 : index
    %c0_211 = arith.constant 0 : index
    %344 = vector.load %arg11[%c0_210, %c0_211] : memref<8x32xf32, #tpu.memory_space<vmem>>, vector<8x32xf32>
    tpu.vector_store %arg11[%c0_210, %c0_211], %341 {strides = array<i32>} : memref<8x32xf32, #tpu.memory_space<vmem>>, vector<8x32xf32>,
    %c0_212 = arith.constant 0 : index
    %c0_213 = arith.constant 0 : index
    %345 = vector.load %arg10[%c0_212, %c0_213] : memref<8x32xf32, #tpu.memory_space<vmem>>, vector<8x32xf32>
    tpu.vector_store %arg10[%c0_212, %c0_213], %343 {strides = array<i32>} : memref<8x32xf32, #tpu.memory_space<vmem>>, vector<8x32xf32>,
    %c48_214 = arith.constant 48 : index
    %c0_215 = arith.constant 0 : index
    %346 = vector.load %arg9[%c48_214, %c0_215] : memref<64x128xf32, #tpu.memory_space<vmem>>, vector<8x128xf32>
    %c0_216 = arith.constant 0 : index
    %c0_217 = arith.constant 0 : index
    %347 = vector.load %arg10[%c0_216, %c0_217] : memref<8x32xf32, #tpu.memory_space<vmem>>, vector<8x32xf32>
    %cst_218 = arith.constant dense<0.000000e+00> : vector<8x128xf32>
    %348 = tpu.matmul %347, %213, %cst_218 {dimension_numbers = #tpu.dot_dimension_numbers<[1], [0], [0], [1], [0, 0, 1, 1], [], []>} : vector<8x32xf32>, vector<32x128xf32>, vector<8x128xf32> -> vector<8x128xf32>
    %349 = arith.addf %346, %348 : vector<8x128xf32>
    %350 = arith.negf %349 : vector<8x128xf32>
    %351 = math.exp %350 : vector<8x128xf32>
    %cst_219 = arith.constant 1.000000e+00 : f32
    %352 = vector.broadcast %cst_219 : f32 to vector<8x128xf32>
    %353 = arith.addf %352, %351 : vector<8x128xf32>
    %354 = arith.divf %352, %353 : vector<8x128xf32>
    %355 = math.tanh %349 : vector<8x128xf32>
    %356 = vector.extract_strided_slice %354 {offsets = [0, 0], sizes = [8, 32], strides = [1, 1]} : vector<8x128xf32> to vector<8x32xf32>
    %357 = vector.extract_strided_slice %354 {offsets = [0, 32], sizes = [8, 32], strides = [1, 1]} : vector<8x128xf32> to vector<8x32xf32>
    %358 = vector.extract_strided_slice %355 {offsets = [0, 64], sizes = [8, 32], strides = [1, 1]} : vector<8x128xf32> to vector<8x32xf32>
    %359 = vector.extract_strided_slice %354 {offsets = [0, 96], sizes = [8, 32], strides = [1, 1]} : vector<8x128xf32> to vector<8x32xf32>
    %c0_220 = arith.constant 0 : index
    %c0_221 = arith.constant 0 : index
    %360 = vector.load %arg11[%c0_220, %c0_221] : memref<8x32xf32, #tpu.memory_space<vmem>>, vector<8x32xf32>
    %361 = arith.mulf %357, %360 : vector<8x32xf32>
    %362 = arith.mulf %356, %358 : vector<8x32xf32>
    %363 = arith.addf %361, %362 : vector<8x32xf32>
    %364 = math.tanh %363 : vector<8x32xf32>
    %365 = arith.mulf %359, %364 : vector<8x32xf32>
    %c0_222 = arith.constant 0 : index
    %c0_223 = arith.constant 0 : index
    %366 = vector.load %arg11[%c0_222, %c0_223] : memref<8x32xf32, #tpu.memory_space<vmem>>, vector<8x32xf32>
    tpu.vector_store %arg11[%c0_222, %c0_223], %363 {strides = array<i32>} : memref<8x32xf32, #tpu.memory_space<vmem>>, vector<8x32xf32>,
    %c0_224 = arith.constant 0 : index
    %c0_225 = arith.constant 0 : index
    %367 = vector.load %arg10[%c0_224, %c0_225] : memref<8x32xf32, #tpu.memory_space<vmem>>, vector<8x32xf32>
    tpu.vector_store %arg10[%c0_224, %c0_225], %365 {strides = array<i32>} : memref<8x32xf32, #tpu.memory_space<vmem>>, vector<8x32xf32>,
    %c56_226 = arith.constant 56 : index
    %c0_227 = arith.constant 0 : index
    %368 = vector.load %arg9[%c56_226, %c0_227] : memref<64x128xf32, #tpu.memory_space<vmem>>, vector<8x128xf32>
    %c0_228 = arith.constant 0 : index
    %c0_229 = arith.constant 0 : index
    %369 = vector.load %arg10[%c0_228, %c0_229] : memref<8x32xf32, #tpu.memory_space<vmem>>, vector<8x32xf32>
    %cst_230 = arith.constant dense<0.000000e+00> : vector<8x128xf32>
    %370 = tpu.matmul %369, %213, %cst_230 {dimension_numbers = #tpu.dot_dimension_numbers<[1], [0], [0], [1], [0, 0, 1, 1], [], []>} : vector<8x32xf32>, vector<32x128xf32>, vector<8x128xf32> -> vector<8x128xf32>
    %371 = arith.addf %368, %370 : vector<8x128xf32>
    %372 = arith.negf %371 : vector<8x128xf32>
    %373 = math.exp %372 : vector<8x128xf32>
    %cst_231 = arith.constant 1.000000e+00 : f32
    %374 = vector.broadcast %cst_231 : f32 to vector<8x128xf32>
    %375 = arith.addf %374, %373 : vector<8x128xf32>
    %376 = arith.divf %374, %375 : vector<8x128xf32>
    %377 = math.tanh %371 : vector<8x128xf32>
    %378 = vector.extract_strided_slice %376 {offsets = [0, 0], sizes = [8, 32], strides = [1, 1]} : vector<8x128xf32> to vector<8x32xf32>
    %379 = vector.extract_strided_slice %376 {offsets = [0, 32], sizes = [8, 32], strides = [1, 1]} : vector<8x128xf32> to vector<8x32xf32>
    %380 = vector.extract_strided_slice %377 {offsets = [0, 64], sizes = [8, 32], strides = [1, 1]} : vector<8x128xf32> to vector<8x32xf32>
    %381 = vector.extract_strided_slice %376 {offsets = [0, 96], sizes = [8, 32], strides = [1, 1]} : vector<8x128xf32> to vector<8x32xf32>
    %c0_232 = arith.constant 0 : index
    %c0_233 = arith.constant 0 : index
    %382 = vector.load %arg11[%c0_232, %c0_233] : memref<8x32xf32, #tpu.memory_space<vmem>>, vector<8x32xf32>
    %383 = arith.mulf %379, %382 : vector<8x32xf32>
    %384 = arith.mulf %378, %380 : vector<8x32xf32>
    %385 = arith.addf %383, %384 : vector<8x32xf32>
    %386 = math.tanh %385 : vector<8x32xf32>
    %387 = arith.mulf %381, %386 : vector<8x32xf32>
    %c0_234 = arith.constant 0 : index
    %c0_235 = arith.constant 0 : index
    %388 = vector.load %arg11[%c0_234, %c0_235] : memref<8x32xf32, #tpu.memory_space<vmem>>, vector<8x32xf32>
    tpu.vector_store %arg11[%c0_234, %c0_235], %385 {strides = array<i32>} : memref<8x32xf32, #tpu.memory_space<vmem>>, vector<8x32xf32>,
    %c0_236 = arith.constant 0 : index
    %c0_237 = arith.constant 0 : index
    %389 = vector.load %arg10[%c0_236, %c0_237] : memref<8x32xf32, #tpu.memory_space<vmem>>, vector<8x32xf32>
    tpu.vector_store %arg10[%c0_236, %c0_237], %387 {strides = array<i32>} : memref<8x32xf32, #tpu.memory_space<vmem>>, vector<8x32xf32>,
    %c0_238 = arith.constant 0 : index
    %c0_239 = arith.constant 0 : index
    %390 = vector.load %arg10[%c0_238, %c0_239] : memref<8x32xf32, #tpu.memory_space<vmem>>, vector<8x32xf32>
    %c0_240 = arith.constant 0 : index
    %c0_241 = arith.constant 0 : index
    %391 = vector.load %arg5[%c0_240, %c0_241] : memref<1x32xf32, #tpu.memory_space<vmem>>, vector<1x32xf32>
    %392 = vector.broadcast %391 : vector<1x32xf32> to vector<8x32xf32>
    %393 = arith.mulf %390, %392 : vector<8x32xf32>
    %cst_242 = arith.constant dense<0.000000e+00> : vector<8xf32>
    %394 = vector.multi_reduction <add>, %393, %cst_242 [1] : vector<8x32xf32> to vector<8xf32>
    %395 = vector.shape_cast %394 : vector<8xf32> to vector<8x1xf32>
    %c0_243 = arith.constant 0 : index
    %c0_244 = arith.constant 0 : index
    %396 = vector.load %arg6[%c0_243, %c0_244] : memref<1x1xf32, #tpu.memory_space<vmem>>, vector<1x1xf32>
    %397 = vector.broadcast %396 : vector<1x1xf32> to vector<8x1xf32>
    %398 = arith.addf %395, %397 : vector<8x1xf32>
    %c0_245 = arith.constant 0 : index
    %c0_246 = arith.constant 0 : index
    %399 = vector.load %arg7[%c0_245, %c0_246] : memref<8x1xf32, #tpu.memory_space<vmem>>, vector<8x1xf32>
    tpu.vector_store %arg7[%c0_245, %c0_246], %398 {strides = array<i32>} : memref<8x1xf32, #tpu.memory_space<vmem>>, vector<8x1xf32>,
    return
  }
  func.func @transform_0(%arg0: i32) -> (i32, i32) {
    %c0_i32 = arith.constant 0 : i32
    %c0_i32_0 = arith.constant 0 : i32
    %c0_i32_1 = arith.constant 0 : i32
    return %c0_i32, %c0_i32_0 : i32, i32
  }
  func.func @transform_1(%arg0: i32) -> (i32, i32, i32) {
    %c0_i32 = arith.constant 0 : i32
    %c0_i32_0 = arith.constant 0 : i32
    %c0_i32_1 = arith.constant 0 : i32
    %c0_i32_2 = arith.constant 0 : i32
    return %c0_i32, %c0_i32_0, %c0_i32_1 : i32, i32, i32
  }
  func.func @transform_2(%arg0: i32) -> (i32, i32, i32) {
    %c0_i32 = arith.constant 0 : i32
    %c0_i32_0 = arith.constant 0 : i32
    %c0_i32_1 = arith.constant 0 : i32
    %c0_i32_2 = arith.constant 0 : i32
    return %c0_i32, %c0_i32_0, %c0_i32_1 : i32, i32, i32
  }
  func.func @transform_3(%arg0: i32) -> (i32, i32, i32) {
    %c0_i32 = arith.constant 0 : i32
    %c0_i32_0 = arith.constant 0 : i32
    %c0_i32_1 = arith.constant 0 : i32
    %c0_i32_2 = arith.constant 0 : i32
    return %c0_i32, %c0_i32_0, %c0_i32_1 : i32, i32, i32
  }
  func.func @transform_4(%arg0: i32) -> (i32, i32) {
    %c0_i32 = arith.constant 0 : i32
    %c0_i32_0 = arith.constant 0 : i32
    %c0_i32_1 = arith.constant 0 : i32
    return %c0_i32, %c0_i32_0 : i32, i32
  }
  func.func @transform_5(%arg0: i32) -> (i32, i32) {
    %c0_i32 = arith.constant 0 : i32
    %c0_i32_0 = arith.constant 0 : i32
    %c0_i32_1 = arith.constant 0 : i32
    return %c0_i32, %c0_i32_0 : i32, i32
  }
  func.func @transform_6(%arg0: i32) -> (i32, i32) {
    %c0_i32 = arith.constant 0 : i32
    %c0_i32_0 = arith.constant 0 : i32
    %c0_i32_1 = arith.constant 0 : i32
    return %c0_i32, %c0_i32_0 : i32, i32
  }
}

</mosaic_0001>

<llo_original>
// kernel: tpu_custom_call.1
$region0: #{tpu_custom_call.1}
  #allocation0 [shape = 'u32[]', space=smem, size = 0x4, offset = 0x4, fixed_abs, tag = 'smem constant byte address 0x4 - core index']
  #allocation1 [shape = 'u32[144,128]{1,0:T(1,128)}', space=vmem, size = 0x12000, scoped, tag = 'internal scratch']
  #allocation2 [shape = 'f32[64,32]{1,0:T(8,128)}', space=vmem, size = 0x8000, scoped, tag = 'scratch operand']
  #allocation3 [shape = 'f32[64,128]{1,0:T(8,128)}', space=vmem, size = 0x8000, scoped, tag = 'scratch operand']
  #allocation4 [shape = 'f32[8,32]{1,0:T(8,128)}', space=vmem, size = 0x1000, scoped, tag = 'scratch operand']
  #allocation5 [shape = 'f32[8,32]{1,0:T(8,128)}', space=vmem, size = 0x1000, scoped, tag = 'scratch operand']
  #allocation6 [shape = 'f32[1,1]{1,0:T(1,128)S(1)}', space=vmem, size = 0x200, scoped, tag = 'scoped memory for tpu_custom_call.1']
  %s0 = inlined_call_operand.vmem [shape: f32[64,32], index: 0, kind: input, shape index: {}]
  %s1 = inlined_call_operand.vmem [shape: f32[2,32,128], index: 1, kind: input, shape index: {}]
  %s2 = inlined_call_operand.hbm [shape: f32[2,32,128], index: 2, kind: input, shape index: {}]
  %s3 = inlined_call_operand.vmem [shape: f32[2,1,128], index: 3, kind: input, shape index: {}]
  %s4 = inlined_call_operand.vmem [shape: f32[1,32], index: 4, kind: input, shape index: {}]
  %s5 = inlined_call_operand.<no memory space> [shape: f32[1,1], index: 5, kind: input, shape index: {}]
  %s6 = inlined_call_operand.vmem [shape: f32[8,1], index: 6, kind: output, shape index: {}]
  %s7 = sld [smem:[#allocation0]]
  $region38: #{tpu_custom_call.1} parent=0
    _
  %s9 = ssub.s32 1, %s7
  %s10 = scalar_select 0, %s9, %s7
  %v11 = vstv %s5
  %12 = vst [vmem:[#allocation6] sm:$0x1] %v11
  $region1: #{tpu_custom_call.1} parent=0
    #allocation7 [shape = 'u8[32768]{0}', space=vmem, size = 0x8000, scoped, tag = 'input window, operand 2, single buffered']
    #allocation8 [shape = 's32[1]{0}', space=sflag, size = 0x4, scoped, tag = 'scoped memory for tpu_custom_call.1']
    %13 = vsyncpa [#allocation8], 0
    // Predicated region
    $region2: #{tpu_custom_call.1} parent=1 // pred_check
      _
    $region3: #{tpu_custom_call.1} parent=1 // pred_check_branch
      %15 = sbr.rel (0) target = $region5
    $region4: #{tpu_custom_call.1} parent=1 // pred_region
      _
    $region5: #{tpu_custom_call.1} parent=1 // pred_fallthru
      _
    // Predicated region
    $region6: #{tpu_custom_call.1} parent=1 // pred_check
      _
    $region7: #{tpu_custom_call.1} parent=1 // pred_check_branch
      %17 = sbr.rel (0) target = $region9
    $region8: #{tpu_custom_call.1} parent=1 // pred_region
      _
    $region9: #{tpu_custom_call.1} parent=1 // pred_fallthru
      _
    // Predicated region
    $region10: #{tpu_custom_call.1} parent=1 // pred_check
      _
    $region11: #{tpu_custom_call.1} parent=1 // pred_check_branch
      %19 = sbr.rel (0) target = $region13
    $region12: #{tpu_custom_call.1} parent=1 // pred_region
      %s21 = ssub.s32 1024, 1024
      %22 = vsyncadd [#allocation8], %s21
      %s23 = sshll.u32 [#allocation7], 4
      %s24 = int_to_ptr.vmem [resolvable:$true] %s23
      %29 = dma.hbm_to_vmem [thread:$0]  %s2, 1024, %s24, [#allocation8], 128, 128, 8
    $region13: #{tpu_custom_call.1} parent=1 // pred_fallthru
      _
    // Predicated region
    $region14: #{tpu_custom_call.1} parent=1 // pred_check
      _
    $region15: #{tpu_custom_call.1} parent=1 // pred_check_branch
      %31 = sbr.rel (0) target = $region17
    $region16: #{tpu_custom_call.1} parent=1 // pred_region
      _
    $region17: #{tpu_custom_call.1} parent=1 // pred_fallthru
      _
    // Predicated region
    $region18: #{tpu_custom_call.1} parent=1 // pred_check
      _
    $region19: #{tpu_custom_call.1} parent=1 // pred_check_branch
      %33 = sbr.rel (0) target = $region21
    $region20: #{tpu_custom_call.1} parent=1 // pred_region
      _
    $region21: #{tpu_custom_call.1} parent=1 // pred_fallthru
      _
    // Predicated region
    $region22: #{tpu_custom_call.1} parent=1 // pred_check
      _
    $region23: #{tpu_custom_call.1} parent=1 // pred_check_branch
      %35 = sbr.rel (0) target = $region25
    $region24: #{tpu_custom_call.1} parent=1 // pred_region
      _
    $region25: #{tpu_custom_call.1} parent=1 // pred_fallthru
      _
    // Predicated region
    $region26: #{tpu_custom_call.1} parent=1 // pred_check
      _
    $region27: #{tpu_custom_call.1} parent=1 // pred_check_branch
      %37 = sbr.rel (0) target = $region29
    $region28: #{tpu_custom_call.1} parent=1 // pred_region
      %38 = dma.done [#allocation8], 1024
    $region29: #{tpu_custom_call.1} parent=1 // pred_fallthru
      _
    %v39 = vld [vmem:[%s0] sm:$0xff]
    %v40 = vld [vmem:[%s0 + $0x8] sm:$0xff]
    %v41 = vld [vmem:[%s0 + $0x10] sm:$0xff]
    %v42 = vld [vmem:[%s0 + $0x18] sm:$0xff]
    %v43 = vld [vmem:[%s0 + $0x20] sm:$0xff]
    %v44 = vld [vmem:[%s0 + $0x28] sm:$0xff]
    %v45 = vld [vmem:[%s0 + $0x30] sm:$0xff]
    %v46 = vld [vmem:[%s0 + $0x38] sm:$0xff]
    %v47 = vld [vmem:[%s1] sm:$0xff]
    %v48 = vld [vmem:[%s1 + $0x8] sm:$0xff]
    %v49 = vld [vmem:[%s1 + $0x10] sm:$0xff]
    %v50 = vld [vmem:[%s1 + $0x18] sm:$0xff]
    %v51 = vld [vmem:[%s3] sm:$0x1]
    %v53 = vlaneseq
    %v54 = vshrl.u32 %v53, 7
    %v55 = vsub.s32 0, %v54
    %v56 = vrot.slane %v51, %v55
    %vm58 = vcmask 261120
    %v60 = vsel %vm58, %v39, 0
    %v63 = vsel %vm58, %v40, 0
    %v66 = vsel %vm58, %v41, 0
    %v69 = vsel %vm58, %v42, 0
    %v72 = vsel %vm58, %v43, 0
    %v75 = vsel %vm58, %v44, 0
    %v78 = vsel %vm58, %v45, 0
    %v81 = vsel %vm58, %v46, 0
    %83 = vmatprep.subr.mxu0 0.0
    %84 = vmatpush1.msra.mxu0 %v47
    %85 = vmatprep.subr.mxu0 0.0
    %86 = vmatpush1.msra.mxu0 %v48
    %87 = vmatprep.subr.mxu0 0.0
    %88 = vmatpush1.msra.mxu0 %v49
    %89 = vmatprep.subr.mxu0 0.0
    %90 = vmatpush1.msra.mxu0 %v50
    %91 = vmatprep.subr.mxu0 0.0
    %92 = vmatpush1.msra.mxu0 0.0
    %93 = vmatprep.subr.mxu0 0.0
    %94 = vmatpush1.msra.mxu0 0.0
    %95 = vmatprep.subr.mxu0 0.0
    %96 = vmatpush1.msra.mxu0 0.0
    %97 = vmatprep.subr.mxu0 0.0
    %98 = vmatpush1.msra.mxu0 0.0
    %99 = vmatprep.subr.mxu0 0.0
    %100 = vmatpush1.msra.mxu0 0.0
    %101 = vmatprep.subr.mxu0 0.0
    %102 = vmatpush1.msra.mxu0 0.0
    %103 = vmatprep.subr.mxu0 0.0
    %104 = vmatpush1.msra.mxu0 0.0
    %105 = vmatprep.subr.mxu0 0.0
    %106 = vmatpush1.msra.mxu0 0.0
    %107 = vmatprep.subr.mxu0 0.0
    %108 = vmatpush1.msra.mxu0 0.0
    %109 = vmatprep.subr.mxu0 0.0
    %110 = vmatpush1.msra.mxu0 0.0
    %111 = vmatprep.subr.mxu0 0.0
    %112 = vmatpush1.msra.mxu0 0.0
    %113 = vmatprep.subr.mxu0 0.0
    %114 = vmatpush1.msra.mxu0 0.0
    %115 = vmatprep.subr.mxu0 0.0
    %116 = vmatpush1.msra.mxu0 0.0
    %117 = vmatprep.subr.mxu0 0.0
    %118 = vmatpush1.msra.mxu0 0.0
    %119 = vmatprep.subr.mxu0 0.0
    %120 = vmatpush1.msra.mxu0 0.0
    %121 = vmatprep.subr.mxu0 0.0
    %122 = vmatpush1.msra.mxu0 0.0
    %123 = vmatprep.subr.mxu0 0.0
    %124 = vmatpush1.msra.mxu0 0.0
    %125 = vmatprep.subr.mxu0 0.0
    %126 = vmatpush1.msra.mxu0 0.0
    %127 = vmatprep.subr.mxu0 0.0
    %128 = vmatpush1.msra.mxu0 0.0
    %129 = vmatprep.subr.mxu0 0.0
    %130 = vmatpush1.msra.mxu0 0.0
    %131 = vmatprep.subr.mxu0 0.0
    %132 = vmatpush1.msra.mxu0 0.0
    %133 = vmatprep.subr.mxu0 0.0
    %134 = vmatpush1.msra.mxu0 0.0
    %135 = vmatprep.subr.mxu0 0.0
    %136 = vmatpush1.msra.mxu0 0.0
    %137 = vmatprep.subr.mxu0 0.0
    %138 = vmatpush1.msra.mxu0 0.0
    %139 = vmatprep.subr.mxu0 0.0
    %140 = vmatpush1.msra.mxu0 0.0
    %141 = vmatprep.subr.mxu0 0.0
    %142 = vmatpush1.msra.mxu0 0.0
    %143 = vmatprep.subr.mxu0 0.0
    %144 = vmatpush1.msra.mxu0 0.0
    %145 = vmatprep.subr.mxu0 0.0
    %146 = vmatpush1.msra.mxu0 0.0
    %147 = vmatprep.mubr.f32.mxu0 0.0
    %148 = vmatmul.mubr.f32.gmra.mrb[0].mxu0 %v60
    %v149 = vpop.f32.mrb[0].mxu0
    %v150 = vadd.f32 %v56, %v149
    %v151 = vpop.f32.mrb[0].mxu0
    %152 = vmatprep.mubr.f32.mxu0 0.0
    %153 = vmatmul.mubr.f32.gmra.mrb[0].mxu0 %v63
    %v154 = vpop.f32.mrb[0].mxu0
    %v155 = vadd.f32 %v56, %v154
    %v156 = vpop.f32.mrb[0].mxu0
    %157 = vmatprep.mubr.f32.mxu0 0.0
    %158 = vmatmul.mubr.f32.gmra.mrb[0].mxu0 %v66
    %v159 = vpop.f32.mrb[0].mxu0
    %v160 = vadd.f32 %v56, %v159
    %v161 = vpop.f32.mrb[0].mxu0
    %162 = vmatprep.mubr.f32.mxu0 0.0
    %163 = vmatmul.mubr.f32.gmra.mrb[0].mxu0 %v69
    %v164 = vpop.f32.mrb[0].mxu0
    %v165 = vadd.f32 %v56, %v164
    %v166 = vpop.f32.mrb[0].mxu0
    %167 = vmatprep.mubr.f32.mxu0 0.0
    %168 = vmatmul.mubr.f32.gmra.mrb[0].mxu0 %v72
    %v169 = vpop.f32.mrb[0].mxu0
    %v170 = vadd.f32 %v56, %v169
    %v171 = vpop.f32.mrb[0].mxu0
    %172 = vmatprep.mubr.f32.mxu0 0.0
    %173 = vmatmul.mubr.f32.gmra.mrb[0].mxu0 %v75
    %v174 = vpop.f32.mrb[0].mxu0
    %v175 = vadd.f32 %v56, %v174
    %v176 = vpop.f32.mrb[0].mxu0
    %177 = vmatprep.mubr.f32.mxu0 0.0
    %178 = vmatmul.mubr.f32.gmra.mrb[0].mxu0 %v78
    %v179 = vpop.f32.mrb[0].mxu0
    %v180 = vadd.f32 %v56, %v179
    %v181 = vpop.f32.mrb[0].mxu0
    %182 = vmatprep.mubr.f32.mxu0 0.0
    %183 = vmatmul.mubr.f32.gmra.mrb[0].mxu0 %v81
    %v184 = vpop.f32.mrb[0].mxu0
    %v185 = vadd.f32 %v56, %v184
    %v186 = vpop.f32.mrb[0].mxu0
    %187 = vdwg.mxu0
    %188 = vst [vmem:[#allocation3] sm:$0xff] %v150
    %189 = vst [vmem:[#allocation3 + $0x8] sm:$0xff] %v155
    %190 = vst [vmem:[#allocation3 + $0x10] sm:$0xff] %v160
    %191 = vst [vmem:[#allocation3 + $0x18] sm:$0xff] %v165
    %192 = vst [vmem:[#allocation3 + $0x20] sm:$0xff] %v170
    %193 = vst [vmem:[#allocation3 + $0x28] sm:$0xff] %v175
    %194 = vst [vmem:[#allocation3 + $0x30] sm:$0xff] %v180
    %195 = vst [vmem:[#allocation3 + $0x38] sm:$0xff] %v185
    %196 = vst.msk [vmem:[#allocation4] sm:$0xff] %vm58, 0.0
    %197 = vst.msk [vmem:[#allocation5] sm:$0xff] %vm58, 0.0
    %v198 = vld [vmem:[#allocation7] sm:$0xff]
    %v199 = vld [vmem:[#allocation7 + $0x8] sm:$0xff]
    %v200 = vld [vmem:[#allocation7 + $0x10] sm:$0xff]
    %v201 = vld [vmem:[#allocation7 + $0x18] sm:$0xff]
    %v202 = vld [vmem:[#allocation3] sm:$0xff]
    %v203 = vld [vmem:[#allocation4] sm:$0xff]
    %v205 = vsel %vm58, %v203, 0
    %207 = vmatprep.subr.mxu0 0.0
    %208 = vmatpush1.msra.mxu0 %v198
    %209 = vmatprep.subr.mxu0 0.0
    %210 = vmatpush1.msra.mxu0 %v199
    %211 = vmatprep.subr.mxu0 0.0
    %212 = vmatpush1.msra.mxu0 %v200
    %213 = vmatprep.subr.mxu0 0.0
    %214 = vmatpush1.msra.mxu0 %v201
    %215 = vmatprep.subr.mxu0 0.0
    %216 = vmatpush1.msra.mxu0 0.0
    %217 = vmatprep.subr.mxu0 0.0
    %218 = vmatpush1.msra.mxu0 0.0
    %219 = vmatprep.subr.mxu0 0.0
    %220 = vmatpush1.msra.mxu0 0.0
    %221 = vmatprep.subr.mxu0 0.0
    %222 = vmatpush1.msra.mxu0 0.0
    %223 = vmatprep.subr.mxu0 0.0
    %224 = vmatpush1.msra.mxu0 0.0
    %225 = vmatprep.subr.mxu0 0.0
    %226 = vmatpush1.msra.mxu0 0.0
    %227 = vmatprep.subr.mxu0 0.0
    %228 = vmatpush1.msra.mxu0 0.0
    %229 = vmatprep.subr.mxu0 0.0
    %230 = vmatpush1.msra.mxu0 0.0
    %231 = vmatprep.subr.mxu0 0.0
    %232 = vmatpush1.msra.mxu0 0.0
    %233 = vmatprep.subr.mxu0 0.0
    %234 = vmatpush1.msra.mxu0 0.0
    %235 = vmatprep.subr.mxu0 0.0
    %236 = vmatpush1.msra.mxu0 0.0
    %237 = vmatprep.subr.mxu0 0.0
    %238 = vmatpush1.msra.mxu0 0.0
    %239 = vmatprep.subr.mxu0 0.0
    %240 = vmatpush1.msra.mxu0 0.0
    %241 = vmatprep.subr.mxu0 0.0
    %242 = vmatpush1.msra.mxu0 0.0
    %243 = vmatprep.subr.mxu0 0.0
    %244 = vmatpush1.msra.mxu0 0.0
    %245 = vmatprep.subr.mxu0 0.0
    %246 = vmatpush1.msra.mxu0 0.0
    %247 = vmatprep.subr.mxu0 0.0
    %248 = vmatpush1.msra.mxu0 0.0
    %249 = vmatprep.subr.mxu0 0.0
    %250 = vmatpush1.msra.mxu0 0.0
    %251 = vmatprep.subr.mxu0 0.0
    %252 = vmatpush1.msra.mxu0 0.0
    %253 = vmatprep.subr.mxu0 0.0
    %254 = vmatpush1.msra.mxu0 0.0
    %255 = vmatprep.subr.mxu0 0.0
    %256 = vmatpush1.msra.mxu0 0.0
    %257 = vmatprep.subr.mxu0 0.0
    %258 = vmatpush1.msra.mxu0 0.0
    %259 = vmatprep.subr.mxu0 0.0
    %260 = vmatpush1.msra.mxu0 0.0
    %261 = vmatprep.subr.mxu0 0.0
    %262 = vmatpush1.msra.mxu0 0.0
    %263 = vmatprep.subr.mxu0 0.0
    %264 = vmatpush1.msra.mxu0 0.0
    %265 = vmatprep.subr.mxu0 0.0
    %266 = vmatpush1.msra.mxu0 0.0
    %267 = vmatprep.subr.mxu0 0.0
    %268 = vmatpush1.msra.mxu0 0.0
    %269 = vmatprep.subr.mxu0 0.0
    %270 = vmatpush1.msra.mxu0 0.0
    %271 = vmatprep.mubr.f32.mxu0 0.0
    %272 = vmatmul.mubr.f32.gmra.mrb[0].mxu0 %v205
    %v273 = vpop.f32.mrb[0].mxu0
    %v274 = vadd.f32 0.0, %v273
    %v275 = vpop.f32.mrb[0].mxu0
    %276 = vdwg.mxu0
    %v277 = vadd.f32 %v202, %v274
    %v278 = vxor.u32 %v277, 2147483648
    %v279 = vmul.f32 %v278, 1.442695
    %v280 = vpow.pop %v279
    %v281 = vadd.f32 %v280, 1.0
    %v282 = vrcp.pop %v281
    %v283 = vmul.f32 1.0, %v282
    %v284 = vtanh.pop %v277
    %v285 = vld [vmem:[#allocation5] sm:$0xff]
    %287 = vrot.lane.b32.xlu0 %v285, 32
    %v288 = vpop.permute.xlu0 %287
    %v290 = vmul.f32 %v283, %v288
    %292 = vrot.lane.b32.xlu0 %v284, 64
    %v293 = vpop.permute.xlu0 %292
    %v295 = vmul.f32 %v283, %v293
    %297 = vrot.lane.b32.xlu0 %v295, 32
    %v298 = vpop.permute.xlu0 %297
    %v300 = vadd.f32 %v290, %v298
    %v301 = vtanh.pop %v300
    %303 = vrot.lane.b32.xlu0 %v301, 64
    %v304 = vpop.permute.xlu0 %303
    %v306 = vmul.f32 %v283, %v304
    %308 = vrot.lane.b32.xlu0 %v300, 96
    %v309 = vpop.permute.xlu0 %308
    %311 = vst.msk [vmem:[#allocation5] sm:$0xff] %vm58, %v309
    %313 = vrot.lane.b32.xlu0 %v306, 32
    %v314 = vpop.permute.xlu0 %313
    %316 = vst.msk [vmem:[#allocation4] sm:$0xff] %vm58, %v314
    %317 = vst.msk [vmem:[#allocation2] sm:$0xff] %vm58, %v314
    %v318 = vld [vmem:[#allocation3 + $0x8] sm:$0xff]
    %v319 = vld [vmem:[#allocation4] sm:$0xff]
    %v321 = vsel %vm58, %v319, 0
    %323 = vmatprep.subr.mxu0 0.0
    %324 = vmatpush1.msra.mxu0 %v198
    %325 = vmatprep.subr.mxu0 0.0
    %326 = vmatpush1.msra.mxu0 %v199
    %327 = vmatprep.subr.mxu0 0.0
    %328 = vmatpush1.msra.mxu0 %v200
    %329 = vmatprep.subr.mxu0 0.0
    %330 = vmatpush1.msra.mxu0 %v201
    %331 = vmatprep.subr.mxu0 0.0
    %332 = vmatpush1.msra.mxu0 0.0
    %333 = vmatprep.subr.mxu0 0.0
    %334 = vmatpush1.msra.mxu0 0.0
    %335 = vmatprep.subr.mxu0 0.0
    %336 = vmatpush1.msra.mxu0 0.0
    %337 = vmatprep.subr.mxu0 0.0
    %338 = vmatpush1.msra.mxu0 0.0
    %339 = vmatprep.subr.mxu0 0.0
    %340 = vmatpush1.msra.mxu0 0.0
    %341 = vmatprep.subr.mxu0 0.0
    %342 = vmatpush1.msra.mxu0 0.0
    %343 = vmatprep.subr.mxu0 0.0
    %344 = vmatpush1.msra.mxu0 0.0
    %345 = vmatprep.subr.mxu0 0.0
    %346 = vmatpush1.msra.mxu0 0.0
    %347 = vmatprep.subr.mxu0 0.0
    %348 = vmatpush1.msra.mxu0 0.0
    %349 = vmatprep.subr.mxu0 0.0
    %350 = vmatpush1.msra.mxu0 0.0
    %351 = vmatprep.subr.mxu0 0.0
    %352 = vmatpush1.msra.mxu0 0.0
    %353 = vmatprep.subr.mxu0 0.0
    %354 = vmatpush1.msra.mxu0 0.0
    %355 = vmatprep.subr.mxu0 0.0
    %356 = vmatpush1.msra.mxu0 0.0
    %357 = vmatprep.subr.mxu0 0.0
    %358 = vmatpush1.msra.mxu0 0.0
    %359 = vmatprep.subr.mxu0 0.0
    %360 = vmatpush1.msra.mxu0 0.0
    %361 = vmatprep.subr.mxu0 0.0
    %362 = vmatpush1.msra.mxu0 0.0
    %363 = vmatprep.subr.mxu0 0.0
    %364 = vmatpush1.msra.mxu0 0.0
    %365 = vmatprep.subr.mxu0 0.0
    %366 = vmatpush1.msra.mxu0 0.0
    %367 = vmatprep.subr.mxu0 0.0
    %368 = vmatpush1.msra.mxu0 0.0
    %369 = vmatprep.subr.mxu0 0.0
    %370 = vmatpush1.msra.mxu0 0.0
    %371 = vmatprep.subr.mxu0 0.0
    %372 = vmatpush1.msra.mxu0 0.0
    %373 = vmatprep.subr.mxu0 0.0
    %374 = vmatpush1.msra.mxu0 0.0
    %375 = vmatprep.subr.mxu0 0.0
    %376 = vmatpush1.msra.mxu0 0.0
    %377 = vmatprep.subr.mxu0 0.0
    %378 = vmatpush1.msra.mxu0 0.0
    %379 = vmatprep.subr.mxu0 0.0
    %380 = vmatpush1.msra.mxu0 0.0
    %381 = vmatprep.subr.mxu0 0.0
    %382 = vmatpush1.msra.mxu0 0.0
    %383 = vmatprep.subr.mxu0 0.0
    %384 = vmatpush1.msra.mxu0 0.0
    %385 = vmatprep.subr.mxu0 0.0
    %386 = vmatpush1.msra.mxu0 0.0
    %387 = vmatprep.mubr.f32.mxu0 0.0
    %388 = vmatmul.mubr.f32.gmra.mrb[0].mxu0 %v321
    %v389 = vpop.f32.mrb[0].mxu0
    %v390 = vadd.f32 0.0, %v389
    %v391 = vpop.f32.mrb[0].mxu0
    %392 = vdwg.mxu0
    %v393 = vadd.f32 %v318, %v390
    %v394 = vxor.u32 %v393, 2147483648
    %v395 = vmul.f32 %v394, 1.442695
    %v396 = vpow.pop %v395
    %v397 = vadd.f32 %v396, 1.0
    %v398 = vrcp.pop %v397
    %v399 = vmul.f32 1.0, %v398
    %v400 = vtanh.pop %v393
    %v401 = vld [vmem:[#allocation5] sm:$0xff]
    %403 = vrot.lane.b32.xlu0 %v401, 32
    %v404 = vpop.permute.xlu0 %403
    %v406 = vmul.f32 %v399, %v404
    %408 = vrot.lane.b32.xlu0 %v400, 64
    %v409 = vpop.permute.xlu0 %408
    %v411 = vmul.f32 %v399, %v409
    %413 = vrot.lane.b32.xlu0 %v411, 32
    %v414 = vpop.permute.xlu0 %413
    %v416 = vadd.f32 %v406, %v414
    %v417 = vtanh.pop %v416
    %419 = vrot.lane.b32.xlu0 %v417, 64
    %v420 = vpop.permute.xlu0 %419
    %v422 = vmul.f32 %v399, %v420
    %424 = vrot.lane.b32.xlu0 %v416, 96
    %v425 = vpop.permute.xlu0 %424
    %427 = vst.msk [vmem:[#allocation5] sm:$0xff] %vm58, %v425
    %429 = vrot.lane.b32.xlu0 %v422, 32
    %v430 = vpop.permute.xlu0 %429
    %432 = vst.msk [vmem:[#allocation4] sm:$0xff] %vm58, %v430
    %433 = vst.msk [vmem:[#allocation2 + $0x8] sm:$0xff] %vm58, %v430
    %v434 = vld [vmem:[#allocation3 + $0x10] sm:$0xff]
    %v435 = vld [vmem:[#allocation4] sm:$0xff]
    %v437 = vsel %vm58, %v435, 0
    %439 = vmatprep.subr.mxu0 0.0
    %440 = vmatpush1.msra.mxu0 %v198
    %441 = vmatprep.subr.mxu0 0.0
    %442 = vmatpush1.msra.mxu0 %v199
    %443 = vmatprep.subr.mxu0 0.0
    %444 = vmatpush1.msra.mxu0 %v200
    %445 = vmatprep.subr.mxu0 0.0
    %446 = vmatpush1.msra.mxu0 %v201
    %447 = vmatprep.subr.mxu0 0.0
    %448 = vmatpush1.msra.mxu0 0.0
    %449 = vmatprep.subr.mxu0 0.0
    %450 = vmatpush1.msra.mxu0 0.0
    %451 = vmatprep.subr.mxu0 0.0
    %452 = vmatpush1.msra.mxu0 0.0
    %453 = vmatprep.subr.mxu0 0.0
    %454 = vmatpush1.msra.mxu0 0.0
    %455 = vmatprep.subr.mxu0 0.0
    %456 = vmatpush1.msra.mxu0 0.0
    %457 = vmatprep.subr.mxu0 0.0
    %458 = vmatpush1.msra.mxu0 0.0
    %459 = vmatprep.subr.mxu0 0.0
    %460 = vmatpush1.msra.mxu0 0.0
    %461 = vmatprep.subr.mxu0 0.0
    %462 = vmatpush1.msra.mxu0 0.0
    %463 = vmatprep.subr.mxu0 0.0
    %464 = vmatpush1.msra.mxu0 0.0
    %465 = vmatprep.subr.mxu0 0.0
    %466 = vmatpush1.msra.mxu0 0.0
    %467 = vmatprep.subr.mxu0 0.0
    %468 = vmatpush1.msra.mxu0 0.0
    %469 = vmatprep.subr.mxu0 0.0
    %470 = vmatpush1.msra.mxu0 0.0
    %471 = vmatprep.subr.mxu0 0.0
    %472 = vmatpush1.msra.mxu0 0.0
    %473 = vmatprep.subr.mxu0 0.0
    %474 = vmatpush1.msra.mxu0 0.0
    %475 = vmatprep.subr.mxu0 0.0
    %476 = vmatpush1.msra.mxu0 0.0
    %477 = vmatprep.subr.mxu0 0.0
    %478 = vmatpush1.msra.mxu0 0.0
    %479 = vmatprep.subr.mxu0 0.0
    %480 = vmatpush1.msra.mxu0 0.0
    %481 = vmatprep.subr.mxu0 0.0
    %482 = vmatpush1.msra.mxu0 0.0
    %483 = vmatprep.subr.mxu0 0.0
    %484 = vmatpush1.msra.mxu0 0.0
    %485 = vmatprep.subr.mxu0 0.0
    %486 = vmatpush1.msra.mxu0 0.0
    %487 = vmatprep.subr.mxu0 0.0
    %488 = vmatpush1.msra.mxu0 0.0
    %489 = vmatprep.subr.mxu0 0.0
    %490 = vmatpush1.msra.mxu0 0.0
    %491 = vmatprep.subr.mxu0 0.0
    %492 = vmatpush1.msra.mxu0 0.0
    %493 = vmatprep.subr.mxu0 0.0
    %494 = vmatpush1.msra.mxu0 0.0
    %495 = vmatprep.subr.mxu0 0.0
    %496 = vmatpush1.msra.mxu0 0.0
    %497 = vmatprep.subr.mxu0 0.0
    %498 = vmatpush1.msra.mxu0 0.0
    %499 = vmatprep.subr.mxu0 0.0
    %500 = vmatpush1.msra.mxu0 0.0
    %501 = vmatprep.subr.mxu0 0.0
    %502 = vmatpush1.msra.mxu0 0.0
    %503 = vmatprep.mubr.f32.mxu0 0.0
    %504 = vmatmul.mubr.f32.gmra.mrb[0].mxu0 %v437
    %v505 = vpop.f32.mrb[0].mxu0
    %v506 = vadd.f32 0.0, %v505
    %v507 = vpop.f32.mrb[0].mxu0
    %508 = vdwg.mxu0
    %v509 = vadd.f32 %v434, %v506
    %v510 = vxor.u32 %v509, 2147483648
    %v511 = vmul.f32 %v510, 1.442695
    %v512 = vpow.pop %v511
    %v513 = vadd.f32 %v512, 1.0
    %v514 = vrcp.pop %v513
    %v515 = vmul.f32 1.0, %v514
    %v516 = vtanh.pop %v509
    %v517 = vld [vmem:[#allocation5] sm:$0xff]
    %519 = vrot.lane.b32.xlu0 %v517, 32
    %v520 = vpop.permute.xlu0 %519
    %v522 = vmul.f32 %v515, %v520
    %524 = vrot.lane.b32.xlu0 %v516, 64
    %v525 = vpop.permute.xlu0 %524
    %v527 = vmul.f32 %v515, %v525
    %529 = vrot.lane.b32.xlu0 %v527, 32
    %v530 = vpop.permute.xlu0 %529
    %v532 = vadd.f32 %v522, %v530
    %v533 = vtanh.pop %v532
    %535 = vrot.lane.b32.xlu0 %v533, 64
    %v536 = vpop.permute.xlu0 %535
    %v538 = vmul.f32 %v515, %v536
    %540 = vrot.lane.b32.xlu0 %v532, 96
    %v541 = vpop.permute.xlu0 %540
    %543 = vst.msk [vmem:[#allocation5] sm:$0xff] %vm58, %v541
    %545 = vrot.lane.b32.xlu0 %v538, 32
    %v546 = vpop.permute.xlu0 %545
    %548 = vst.msk [vmem:[#allocation4] sm:$0xff] %vm58, %v546
    %549 = vst.msk [vmem:[#allocation2 + $0x10] sm:$0xff] %vm58, %v546
    %v550 = vld [vmem:[#allocation3 + $0x18] sm:$0xff]
    %v551 = vld [vmem:[#allocation4] sm:$0xff]
    %v553 = vsel %vm58, %v551, 0
    %555 = vmatprep.subr.mxu0 0.0
    %556 = vmatpush1.msra.mxu0 %v198
    %557 = vmatprep.subr.mxu0 0.0
    %558 = vmatpush1.msra.mxu0 %v199
    %559 = vmatprep.subr.mxu0 0.0
    %560 = vmatpush1.msra.mxu0 %v200
    %561 = vmatprep.subr.mxu0 0.0
    %562 = vmatpush1.msra.mxu0 %v201
    %563 = vmatprep.subr.mxu0 0.0
    %564 = vmatpush1.msra.mxu0 0.0
    %565 = vmatprep.subr.mxu0 0.0
    %566 = vmatpush1.msra.mxu0 0.0
    %567 = vmatprep.subr.mxu0 0.0
    %568 = vmatpush1.msra.mxu0 0.0
    %569 = vmatprep.subr.mxu0 0.0
    %570 = vmatpush1.msra.mxu0 0.0
    %571 = vmatprep.subr.mxu0 0.0
    %572 = vmatpush1.msra.mxu0 0.0
    %573 = vmatprep.subr.mxu0 0.0
    %574 = vmatpush1.msra.mxu0 0.0
    %575 = vmatprep.subr.mxu0 0.0
    %576 = vmatpush1.msra.mxu0 0.0
    %577 = vmatprep.subr.mxu0 0.0
    %578 = vmatpush1.msra.mxu0 0.0
    %579 = vmatprep.subr.mxu0 0.0
    %580 = vmatpush1.msra.mxu0 0.0
    %581 = vmatprep.subr.mxu0 0.0
    %582 = vmatpush1.msra.mxu0 0.0
    %583 = vmatprep.subr.mxu0 0.0
    %584 = vmatpush1.msra.mxu0 0.0
    %585 = vmatprep.subr.mxu0 0.0
    %586 = vmatpush1.msra.mxu0 0.0
    %587 = vmatprep.subr.mxu0 0.0
    %588 = vmatpush1.msra.mxu0 0.0
    %589 = vmatprep.subr.mxu0 0.0
    %590 = vmatpush1.msra.mxu0 0.0
    %591 = vmatprep.subr.mxu0 0.0
    %592 = vmatpush1.msra.mxu0 0.0
    %593 = vmatprep.subr.mxu0 0.0
    %594 = vmatpush1.msra.mxu0 0.0
    %595 = vmatprep.subr.mxu0 0.0
    %596 = vmatpush1.msra.mxu0 0.0
    %597 = vmatprep.subr.mxu0 0.0
    %598 = vmatpush1.msra.mxu0 0.0
    %599 = vmatprep.subr.mxu0 0.0
    %600 = vmatpush1.msra.mxu0 0.0
    %601 = vmatprep.subr.mxu0 0.0
    %602 = vmatpush1.msra.mxu0 0.0
    %603 = vmatprep.subr.mxu0 0.0
    %604 = vmatpush1.msra.mxu0 0.0
    %605 = vmatprep.subr.mxu0 0.0
    %606 = vmatpush1.msra.mxu0 0.0
    %607 = vmatprep.subr.mxu0 0.0
    %608 = vmatpush1.msra.mxu0 0.0
    %609 = vmatprep.subr.mxu0 0.0
    %610 = vmatpush1.msra.mxu0 0.0
    %611 = vmatprep.subr.mxu0 0.0
    %612 = vmatpush1.msra.mxu0 0.0
    %613 = vmatprep.subr.mxu0 0.0
    %614 = vmatpush1.msra.mxu0 0.0
    %615 = vmatprep.subr.mxu0 0.0
    %616 = vmatpush1.msra.mxu0 0.0
    %617 = vmatprep.subr.mxu0 0.0
    %618 = vmatpush1.msra.mxu0 0.0
    %619 = vmatprep.mubr.f32.mxu0 0.0
    %620 = vmatmul.mubr.f32.gmra.mrb[0].mxu0 %v553
    %v621 = vpop.f32.mrb[0].mxu0
    %v622 = vadd.f32 0.0, %v621
    %v623 = vpop.f32.mrb[0].mxu0
    %624 = vdwg.mxu0
    %v625 = vadd.f32 %v550, %v622
    %v626 = vxor.u32 %v625, 2147483648
    %v627 = vmul.f32 %v626, 1.442695
    %v628 = vpow.pop %v627
    %v629 = vadd.f32 %v628, 1.0
    %v630 = vrcp.pop %v629
    %v631 = vmul.f32 1.0, %v630
    %v632 = vtanh.pop %v625
    %v633 = vld [vmem:[#allocation5] sm:$0xff]
    %635 = vrot.lane.b32.xlu0 %v633, 32
    %v636 = vpop.permute.xlu0 %635
    %v638 = vmul.f32 %v631, %v636
    %640 = vrot.lane.b32.xlu0 %v632, 64
    %v641 = vpop.permute.xlu0 %640
    %v643 = vmul.f32 %v631, %v641
    %645 = vrot.lane.b32.xlu0 %v643, 32
    %v646 = vpop.permute.xlu0 %645
    %v648 = vadd.f32 %v638, %v646
    %v649 = vtanh.pop %v648
    %651 = vrot.lane.b32.xlu0 %v649, 64
    %v652 = vpop.permute.xlu0 %651
    %v654 = vmul.f32 %v631, %v652
    %656 = vrot.lane.b32.xlu0 %v648, 96
    %v657 = vpop.permute.xlu0 %656
    %659 = vst.msk [vmem:[#allocation5] sm:$0xff] %vm58, %v657
    %661 = vrot.lane.b32.xlu0 %v654, 32
    %v662 = vpop.permute.xlu0 %661
    %664 = vst.msk [vmem:[#allocation4] sm:$0xff] %vm58, %v662
    %665 = vst.msk [vmem:[#allocation2 + $0x18] sm:$0xff] %vm58, %v662
    %v666 = vld [vmem:[#allocation3 + $0x20] sm:$0xff]
    %v667 = vld [vmem:[#allocation4] sm:$0xff]
    %v669 = vsel %vm58, %v667, 0
    %671 = vmatprep.subr.mxu0 0.0
    %672 = vmatpush1.msra.mxu0 %v198
    %673 = vmatprep.subr.mxu0 0.0
    %674 = vmatpush1.msra.mxu0 %v199
    %675 = vmatprep.subr.mxu0 0.0
    %676 = vmatpush1.msra.mxu0 %v200
    %677 = vmatprep.subr.mxu0 0.0
    %678 = vmatpush1.msra.mxu0 %v201
    %679 = vmatprep.subr.mxu0 0.0
    %680 = vmatpush1.msra.mxu0 0.0
    %681 = vmatprep.subr.mxu0 0.0
    %682 = vmatpush1.msra.mxu0 0.0
    %683 = vmatprep.subr.mxu0 0.0
    %684 = vmatpush1.msra.mxu0 0.0
    %685 = vmatprep.subr.mxu0 0.0
    %686 = vmatpush1.msra.mxu0 0.0
    %687 = vmatprep.subr.mxu0 0.0
    %688 = vmatpush1.msra.mxu0 0.0
    %689 = vmatprep.subr.mxu0 0.0
    %690 = vmatpush1.msra.mxu0 0.0
    %691 = vmatprep.subr.mxu0 0.0
    %692 = vmatpush1.msra.mxu0 0.0
    %693 = vmatprep.subr.mxu0 0.0
    %694 = vmatpush1.msra.mxu0 0.0
    %695 = vmatprep.subr.mxu0 0.0
    %696 = vmatpush1.msra.mxu0 0.0
    %697 = vmatprep.subr.mxu0 0.0
    %698 = vmatpush1.msra.mxu0 0.0
    %699 = vmatprep.subr.mxu0 0.0
    %700 = vmatpush1.msra.mxu0 0.0
    %701 = vmatprep.subr.mxu0 0.0
    %702 = vmatpush1.msra.mxu0 0.0
    %703 = vmatprep.subr.mxu0 0.0
    %704 = vmatpush1.msra.mxu0 0.0
    %705 = vmatprep.subr.mxu0 0.0
    %706 = vmatpush1.msra.mxu0 0.0
    %707 = vmatprep.subr.mxu0 0.0
    %708 = vmatpush1.msra.mxu0 0.0
    %709 = vmatprep.subr.mxu0 0.0
    %710 = vmatpush1.msra.mxu0 0.0
    %711 = vmatprep.subr.mxu0 0.0
    %712 = vmatpush1.msra.mxu0 0.0
    %713 = vmatprep.subr.mxu0 0.0
    %714 = vmatpush1.msra.mxu0 0.0
    %715 = vmatprep.subr.mxu0 0.0
    %716 = vmatpush1.msra.mxu0 0.0
    %717 = vmatprep.subr.mxu0 0.0
    %718 = vmatpush1.msra.mxu0 0.0
    %719 = vmatprep.subr.mxu0 0.0
    %720 = vmatpush1.msra.mxu0 0.0
    %721 = vmatprep.subr.mxu0 0.0
    %722 = vmatpush1.msra.mxu0 0.0
    %723 = vmatprep.subr.mxu0 0.0
    %724 = vmatpush1.msra.mxu0 0.0
    %725 = vmatprep.subr.mxu0 0.0
    %726 = vmatpush1.msra.mxu0 0.0
    %727 = vmatprep.subr.mxu0 0.0
    %728 = vmatpush1.msra.mxu0 0.0
    %729 = vmatprep.subr.mxu0 0.0
    %730 = vmatpush1.msra.mxu0 0.0
    %731 = vmatprep.subr.mxu0 0.0
    %732 = vmatpush1.msra.mxu0 0.0
    %733 = vmatprep.subr.mxu0 0.0
    %734 = vmatpush1.msra.mxu0 0.0
    %735 = vmatprep.mubr.f32.mxu0 0.0
    %736 = vmatmul.mubr.f32.gmra.mrb[0].mxu0 %v669
    %v737 = vpop.f32.mrb[0].mxu0
    %v738 = vadd.f32 0.0, %v737
    %v739 = vpop.f32.mrb[0].mxu0
    %740 = vdwg.mxu0
    %v741 = vadd.f32 %v666, %v738
    %v742 = vxor.u32 %v741, 2147483648
    %v743 = vmul.f32 %v742, 1.442695
    %v744 = vpow.pop %v743
    %v745 = vadd.f32 %v744, 1.0
    %v746 = vrcp.pop %v745
    %v747 = vmul.f32 1.0, %v746
    %v748 = vtanh.pop %v741
    %v749 = vld [vmem:[#allocation5] sm:$0xff]
    %751 = vrot.lane.b32.xlu0 %v749, 32
    %v752 = vpop.permute.xlu0 %751
    %v754 = vmul.f32 %v747, %v752
    %756 = vrot.lane.b32.xlu0 %v748, 64
    %v757 = vpop.permute.xlu0 %756
    %v759 = vmul.f32 %v747, %v757
    %761 = vrot.lane.b32.xlu0 %v759, 32
    %v762 = vpop.permute.xlu0 %761
    %v764 = vadd.f32 %v754, %v762
    %v765 = vtanh.pop %v764
    %767 = vrot.lane.b32.xlu0 %v765, 64
    %v768 = vpop.permute.xlu0 %767
    %v770 = vmul.f32 %v747, %v768
    %772 = vrot.lane.b32.xlu0 %v764, 96
    %v773 = vpop.permute.xlu0 %772
    %775 = vst.msk [vmem:[#allocation5] sm:$0xff] %vm58, %v773
    %777 = vrot.lane.b32.xlu0 %v770, 32
    %v778 = vpop.permute.xlu0 %777
    %780 = vst.msk [vmem:[#allocation4] sm:$0xff] %vm58, %v778
    %781 = vst.msk [vmem:[#allocation2 + $0x20] sm:$0xff] %vm58, %v778
    %v782 = vld [vmem:[#allocation3 + $0x28] sm:$0xff]
    %v783 = vld [vmem:[#allocation4] sm:$0xff]
    %v785 = vsel %vm58, %v783, 0
    %787 = vmatprep.subr.mxu0 0.0
    %788 = vmatpush1.msra.mxu0 %v198
    %789 = vmatprep.subr.mxu0 0.0
    %790 = vmatpush1.msra.mxu0 %v199
    %791 = vmatprep.subr.mxu0 0.0
    %792 = vmatpush1.msra.mxu0 %v200
    %793 = vmatprep.subr.mxu0 0.0
    %794 = vmatpush1.msra.mxu0 %v201
    %795 = vmatprep.subr.mxu0 0.0
    %796 = vmatpush1.msra.mxu0 0.0
    %797 = vmatprep.subr.mxu0 0.0
    %798 = vmatpush1.msra.mxu0 0.0
    %799 = vmatprep.subr.mxu0 0.0
    %800 = vmatpush1.msra.mxu0 0.0
    %801 = vmatprep.subr.mxu0 0.0
    %802 = vmatpush1.msra.mxu0 0.0
    %803 = vmatprep.subr.mxu0 0.0
    %804 = vmatpush1.msra.mxu0 0.0
    %805 = vmatprep.subr.mxu0 0.0
    %806 = vmatpush1.msra.mxu0 0.0
    %807 = vmatprep.subr.mxu0 0.0
    %808 = vmatpush1.msra.mxu0 0.0
    %809 = vmatprep.subr.mxu0 0.0
    %810 = vmatpush1.msra.mxu0 0.0
    %811 = vmatprep.subr.mxu0 0.0
    %812 = vmatpush1.msra.mxu0 0.0
    %813 = vmatprep.subr.mxu0 0.0
    %814 = vmatpush1.msra.mxu0 0.0
    %815 = vmatprep.subr.mxu0 0.0
    %816 = vmatpush1.msra.mxu0 0.0
    %817 = vmatprep.subr.mxu0 0.0
    %818 = vmatpush1.msra.mxu0 0.0
    %819 = vmatprep.subr.mxu0 0.0
    %820 = vmatpush1.msra.mxu0 0.0
    %821 = vmatprep.subr.mxu0 0.0
    %822 = vmatpush1.msra.mxu0 0.0
    %823 = vmatprep.subr.mxu0 0.0
    %824 = vmatpush1.msra.mxu0 0.0
    %825 = vmatprep.subr.mxu0 0.0
    %826 = vmatpush1.msra.mxu0 0.0
    %827 = vmatprep.subr.mxu0 0.0
    %828 = vmatpush1.msra.mxu0 0.0
    %829 = vmatprep.subr.mxu0 0.0
    %830 = vmatpush1.msra.mxu0 0.0
    %831 = vmatprep.subr.mxu0 0.0
    %832 = vmatpush1.msra.mxu0 0.0
    %833 = vmatprep.subr.mxu0 0.0
    %834 = vmatpush1.msra.mxu0 0.0
    %835 = vmatprep.subr.mxu0 0.0
    %836 = vmatpush1.msra.mxu0 0.0
    %837 = vmatprep.subr.mxu0 0.0
    %838 = vmatpush1.msra.mxu0 0.0
    %839 = vmatprep.subr.mxu0 0.0
    %840 = vmatpush1.msra.mxu0 0.0
    %841 = vmatprep.subr.mxu0 0.0
    %842 = vmatpush1.msra.mxu0 0.0
    %843 = vmatprep.subr.mxu0 0.0
    %844 = vmatpush1.msra.mxu0 0.0
    %845 = vmatprep.subr.mxu0 0.0
    %846 = vmatpush1.msra.mxu0 0.0
    %847 = vmatprep.subr.mxu0 0.0
    %848 = vmatpush1.msra.mxu0 0.0
    %849 = vmatprep.subr.mxu0 0.0
    %850 = vmatpush1.msra.mxu0 0.0
    %851 = vmatprep.mubr.f32.mxu0 0.0
    %852 = vmatmul.mubr.f32.gmra.mrb[0].mxu0 %v785
    %v853 = vpop.f32.mrb[0].mxu0
    %v854 = vadd.f32 0.0, %v853
    %v855 = vpop.f32.mrb[0].mxu0
    %856 = vdwg.mxu0
    %v857 = vadd.f32 %v782, %v854
    %v858 = vxor.u32 %v857, 2147483648
    %v859 = vmul.f32 %v858, 1.442695
    %v860 = vpow.pop %v859
    %v861 = vadd.f32 %v860, 1.0
    %v862 = vrcp.pop %v861
    %v863 = vmul.f32 1.0, %v862
    %v864 = vtanh.pop %v857
    %v865 = vld [vmem:[#allocation5] sm:$0xff]
    %867 = vrot.lane.b32.xlu0 %v865, 32
    %v868 = vpop.permute.xlu0 %867
    %v870 = vmul.f32 %v863, %v868
    %872 = vrot.lane.b32.xlu0 %v864, 64
    %v873 = vpop.permute.xlu0 %872
    %v875 = vmul.f32 %v863, %v873
    %877 = vrot.lane.b32.xlu0 %v875, 32
    %v878 = vpop.permute.xlu0 %877
    %v880 = vadd.f32 %v870, %v878
    %v881 = vtanh.pop %v880
    %883 = vrot.lane.b32.xlu0 %v881, 64
    %v884 = vpop.permute.xlu0 %883
    %v886 = vmul.f32 %v863, %v884
    %888 = vrot.lane.b32.xlu0 %v880, 96
    %v889 = vpop.permute.xlu0 %888
    %891 = vst.msk [vmem:[#allocation5] sm:$0xff] %vm58, %v889
    %893 = vrot.lane.b32.xlu0 %v886, 32
    %v894 = vpop.permute.xlu0 %893
    %896 = vst.msk [vmem:[#allocation4] sm:$0xff] %vm58, %v894
    %897 = vst.msk [vmem:[#allocation2 + $0x28] sm:$0xff] %vm58, %v894
    %v898 = vld [vmem:[#allocation3 + $0x30] sm:$0xff]
    %v899 = vld [vmem:[#allocation4] sm:$0xff]
    %v901 = vsel %vm58, %v899, 0
    %903 = vmatprep.subr.mxu0 0.0
    %904 = vmatpush1.msra.mxu0 %v198
    %905 = vmatprep.subr.mxu0 0.0
    %906 = vmatpush1.msra.mxu0 %v199
    %907 = vmatprep.subr.mxu0 0.0
    %908 = vmatpush1.msra.mxu0 %v200
    %909 = vmatprep.subr.mxu0 0.0
    %910 = vmatpush1.msra.mxu0 %v201
    %911 = vmatprep.subr.mxu0 0.0
    %912 = vmatpush1.msra.mxu0 0.0
    %913 = vmatprep.subr.mxu0 0.0
    %914 = vmatpush1.msra.mxu0 0.0
    %915 = vmatprep.subr.mxu0 0.0
    %916 = vmatpush1.msra.mxu0 0.0
    %917 = vmatprep.subr.mxu0 0.0
    %918 = vmatpush1.msra.mxu0 0.0
    %919 = vmatprep.subr.mxu0 0.0
    %920 = vmatpush1.msra.mxu0 0.0
    %921 = vmatprep.subr.mxu0 0.0
    %922 = vmatpush1.msra.mxu0 0.0
    %923 = vmatprep.subr.mxu0 0.0
    %924 = vmatpush1.msra.mxu0 0.0
    %925 = vmatprep.subr.mxu0 0.0
    %926 = vmatpush1.msra.mxu0 0.0
    %927 = vmatprep.subr.mxu0 0.0
    %928 = vmatpush1.msra.mxu0 0.0
    %929 = vmatprep.subr.mxu0 0.0
    %930 = vmatpush1.msra.mxu0 0.0
    %931 = vmatprep.subr.mxu0 0.0
    %932 = vmatpush1.msra.mxu0 0.0
    %933 = vmatprep.subr.mxu0 0.0
    %934 = vmatpush1.msra.mxu0 0.0
    %935 = vmatprep.subr.mxu0 0.0
    %936 = vmatpush1.msra.mxu0 0.0
    %937 = vmatprep.subr.mxu0 0.0
    %938 = vmatpush1.msra.mxu0 0.0
    %939 = vmatprep.subr.mxu0 0.0
    %940 = vmatpush1.msra.mxu0 0.0
    %941 = vmatprep.subr.mxu0 0.0
    %942 = vmatpush1.msra.mxu0 0.0
    %943 = vmatprep.subr.mxu0 0.0
    %944 = vmatpush1.msra.mxu0 0.0
    %945 = vmatprep.subr.mxu0 0.0
    %946 = vmatpush1.msra.mxu0 0.0
    %947 = vmatprep.subr.mxu0 0.0
    %948 = vmatpush1.msra.mxu0 0.0
    %949 = vmatprep.subr.mxu0 0.0
    %950 = vmatpush1.msra.mxu0 0.0
    %951 = vmatprep.subr.mxu0 0.0
    %952 = vmatpush1.msra.mxu0 0.0
    %953 = vmatprep.subr.mxu0 0.0
    %954 = vmatpush1.msra.mxu0 0.0
    %955 = vmatprep.subr.mxu0 0.0
    %956 = vmatpush1.msra.mxu0 0.0
    %957 = vmatprep.subr.mxu0 0.0
    %958 = vmatpush1.msra.mxu0 0.0
    %959 = vmatprep.subr.mxu0 0.0
    %960 = vmatpush1.msra.mxu0 0.0
    %961 = vmatprep.subr.mxu0 0.0
    %962 = vmatpush1.msra.mxu0 0.0
    %963 = vmatprep.subr.mxu0 0.0
    %964 = vmatpush1.msra.mxu0 0.0
    %965 = vmatprep.subr.mxu0 0.0
    %966 = vmatpush1.msra.mxu0 0.0
    %967 = vmatprep.mubr.f32.mxu0 0.0
    %968 = vmatmul.mubr.f32.gmra.mrb[0].mxu0 %v901
    %v969 = vpop.f32.mrb[0].mxu0
    %v970 = vadd.f32 0.0, %v969
    %v971 = vpop.f32.mrb[0].mxu0
    %972 = vdwg.mxu0
    %v973 = vadd.f32 %v898, %v970
    %v974 = vxor.u32 %v973, 2147483648
    %v975 = vmul.f32 %v974, 1.442695
    %v976 = vpow.pop %v975
    %v977 = vadd.f32 %v976, 1.0
    %v978 = vrcp.pop %v977
    %v979 = vmul.f32 1.0, %v978
    %v980 = vtanh.pop %v973
    %v981 = vld [vmem:[#allocation5] sm:$0xff]
    %983 = vrot.lane.b32.xlu0 %v981, 32
    %v984 = vpop.permute.xlu0 %983
    %v986 = vmul.f32 %v979, %v984
    %988 = vrot.lane.b32.xlu0 %v980, 64
    %v989 = vpop.permute.xlu0 %988
    %v991 = vmul.f32 %v979, %v989
    %993 = vrot.lane.b32.xlu0 %v991, 32
    %v994 = vpop.permute.xlu0 %993
    %v996 = vadd.f32 %v986, %v994
    %v997 = vtanh.pop %v996
    %999 = vrot.lane.b32.xlu0 %v997, 64
    %v1000 = vpop.permute.xlu0 %999
    %v1002 = vmul.f32 %v979, %v1000
    %1004 = vrot.lane.b32.xlu0 %v996, 96
    %v1005 = vpop.permute.xlu0 %1004
    %1007 = vst.msk [vmem:[#allocation5] sm:$0xff] %vm58, %v1005
    %1009 = vrot.lane.b32.xlu0 %v1002, 32
    %v1010 = vpop.permute.xlu0 %1009
    %1012 = vst.msk [vmem:[#allocation4] sm:$0xff] %vm58, %v1010
    %1013 = vst.msk [vmem:[#allocation2 + $0x30] sm:$0xff] %vm58, %v1010
    %v1014 = vld [vmem:[#allocation3 + $0x38] sm:$0xff]
    %v1015 = vld [vmem:[#allocation4] sm:$0xff]
    %v1017 = vsel %vm58, %v1015, 0
    %1019 = vmatprep.subr.mxu0 0.0
    %1020 = vmatpush1.msra.mxu0 %v198
    %1021 = vmatprep.subr.mxu0 0.0
    %1022 = vmatpush1.msra.mxu0 %v199
    %1023 = vmatprep.subr.mxu0 0.0
    %1024 = vmatpush1.msra.mxu0 %v200
    %1025 = vmatprep.subr.mxu0 0.0
    %1026 = vmatpush1.msra.mxu0 %v201
    %1027 = vmatprep.subr.mxu0 0.0
    %1028 = vmatpush1.msra.mxu0 0.0
    %1029 = vmatprep.subr.mxu0 0.0
    %1030 = vmatpush1.msra.mxu0 0.0
    %1031 = vmatprep.subr.mxu0 0.0
    %1032 = vmatpush1.msra.mxu0 0.0
    %1033 = vmatprep.subr.mxu0 0.0
    %1034 = vmatpush1.msra.mxu0 0.0
    %1035 = vmatprep.subr.mxu0 0.0
    %1036 = vmatpush1.msra.mxu0 0.0
    %1037 = vmatprep.subr.mxu0 0.0
    %1038 = vmatpush1.msra.mxu0 0.0
    %1039 = vmatprep.subr.mxu0 0.0
    %1040 = vmatpush1.msra.mxu0 0.0
    %1041 = vmatprep.subr.mxu0 0.0
    %1042 = vmatpush1.msra.mxu0 0.0
    %1043 = vmatprep.subr.mxu0 0.0
    %1044 = vmatpush1.msra.mxu0 0.0
    %1045 = vmatprep.subr.mxu0 0.0
    %1046 = vmatpush1.msra.mxu0 0.0
    %1047 = vmatprep.subr.mxu0 0.0
    %1048 = vmatpush1.msra.mxu0 0.0
    %1049 = vmatprep.subr.mxu0 0.0
    %1050 = vmatpush1.msra.mxu0 0.0
    %1051 = vmatprep.subr.mxu0 0.0
    %1052 = vmatpush1.msra.mxu0 0.0
    %1053 = vmatprep.subr.mxu0 0.0
    %1054 = vmatpush1.msra.mxu0 0.0
    %1055 = vmatprep.subr.mxu0 0.0
    %1056 = vmatpush1.msra.mxu0 0.0
    %1057 = vmatprep.subr.mxu0 0.0
    %1058 = vmatpush1.msra.mxu0 0.0
    %1059 = vmatprep.subr.mxu0 0.0
    %1060 = vmatpush1.msra.mxu0 0.0
    %1061 = vmatprep.subr.mxu0 0.0
    %1062 = vmatpush1.msra.mxu0 0.0
    %1063 = vmatprep.subr.mxu0 0.0
    %1064 = vmatpush1.msra.mxu0 0.0
    %1065 = vmatprep.subr.mxu0 0.0
    %1066 = vmatpush1.msra.mxu0 0.0
    %1067 = vmatprep.subr.mxu0 0.0
    %1068 = vmatpush1.msra.mxu0 0.0
    %1069 = vmatprep.subr.mxu0 0.0
    %1070 = vmatpush1.msra.mxu0 0.0
    %1071 = vmatprep.subr.mxu0 0.0
    %1072 = vmatpush1.msra.mxu0 0.0
    %1073 = vmatprep.subr.mxu0 0.0
    %1074 = vmatpush1.msra.mxu0 0.0
    %1075 = vmatprep.subr.mxu0 0.0
    %1076 = vmatpush1.msra.mxu0 0.0
    %1077 = vmatprep.subr.mxu0 0.0
    %1078 = vmatpush1.msra.mxu0 0.0
    %1079 = vmatprep.subr.mxu0 0.0
    %1080 = vmatpush1.msra.mxu0 0.0
    %1081 = vmatprep.subr.mxu0 0.0
    %1082 = vmatpush1.msra.mxu0 0.0
    %1083 = vmatprep.mubr.f32.mxu0 0.0
    %1084 = vmatmul.mubr.f32.gmra.mrb[0].mxu0 %v1017
    %v1085 = vpop.f32.mrb[0].mxu0
    %v1086 = vadd.f32 0.0, %v1085
    %v1087 = vpop.f32.mrb[0].mxu0
    %1088 = vdwg.mxu0
    %v1089 = vadd.f32 %v1014, %v1086
    %v1090 = vxor.u32 %v1089, 2147483648
    %v1091 = vmul.f32 %v1090, 1.442695
    %v1092 = vpow.pop %v1091
    %v1093 = vadd.f32 %v1092, 1.0
    %v1094 = vrcp.pop %v1093
    %v1095 = vmul.f32 1.0, %v1094
    %v1096 = vtanh.pop %v1089
    %v1097 = vld [vmem:[#allocation5] sm:$0xff]
    %1099 = vrot.lane.b32.xlu0 %v1097, 32
    %v1100 = vpop.permute.xlu0 %1099
    %v1102 = vmul.f32 %v1095, %v1100
    %1104 = vrot.lane.b32.xlu0 %v1096, 64
    %v1105 = vpop.permute.xlu0 %1104
    %v1107 = vmul.f32 %v1095, %v1105
    %1109 = vrot.lane.b32.xlu0 %v1107, 32
    %v1110 = vpop.permute.xlu0 %1109
    %v1112 = vadd.f32 %v1102, %v1110
    %v1113 = vtanh.pop %v1112
    %1115 = vrot.lane.b32.xlu0 %v1113, 64
    %v1116 = vpop.permute.xlu0 %1115
    %v1118 = vmul.f32 %v1095, %v1116
    %1120 = vrot.lane.b32.xlu0 %v1112, 96
    %v1121 = vpop.permute.xlu0 %1120
    %1123 = vst.msk [vmem:[#allocation5] sm:$0xff] %vm58, %v1121
    %1125 = vrot.lane.b32.xlu0 %v1118, 32
    %v1126 = vpop.permute.xlu0 %1125
    %1128 = vst.msk [vmem:[#allocation4] sm:$0xff] %vm58, %v1126
    %1129 = vst.msk [vmem:[#allocation2 + $0x38] sm:$0xff] %vm58, %v1126
    %v1130 = vld [vmem:[#allocation2] sm:$0xff]
    %v1131 = vld [vmem:[#allocation2 + $0x8] sm:$0xff]
    %v1132 = vld [vmem:[#allocation2 + $0x10] sm:$0xff]
    %v1133 = vld [vmem:[#allocation2 + $0x18] sm:$0xff]
    %v1134 = vld [vmem:[#allocation2 + $0x20] sm:$0xff]
    %v1135 = vld [vmem:[#allocation2 + $0x28] sm:$0xff]
    %v1136 = vld [vmem:[#allocation2 + $0x30] sm:$0xff]
    %v1137 = vld [vmem:[#allocation2 + $0x38] sm:$0xff]
    %s1138 = scalar_lea.vmem %s1, 32
    %v1139 = vld [vmem:[%s1138] sm:$0xff]
    %v1140 = vld [vmem:[%s1138 + $0x8] sm:$0xff]
    %v1141 = vld [vmem:[%s1138 + $0x10] sm:$0xff]
    %v1142 = vld [vmem:[%s1138 + $0x18] sm:$0xff]
    %s1143 = scalar_lea.vmem %s3, 1
    %v1144 = vld [vmem:[%s1143] sm:$0x1]
    %v1146 = vlaneseq
    %v1147 = vshrl.u32 %v1146, 7
    %v1148 = vsub.s32 0, %v1147
    %v1149 = vrot.slane %v1144, %v1148
    %v1152 = vsel %vm58, %v1130, 0
    %v1155 = vsel %vm58, %v1131, 0
    %v1158 = vsel %vm58, %v1132, 0
    %v1161 = vsel %vm58, %v1133, 0
    %v1164 = vsel %vm58, %v1134, 0
    %v1167 = vsel %vm58, %v1135, 0
    %v1170 = vsel %vm58, %v1136, 0
    %v1173 = vsel %vm58, %v1137, 0
    %1175 = vmatprep.subr.mxu0 0.0
    %1176 = vmatpush1.msra.mxu0 %v1139
    %1177 = vmatprep.subr.mxu0 0.0
    %1178 = vmatpush1.msra.mxu0 %v1140
    %1179 = vmatprep.subr.mxu0 0.0
    %1180 = vmatpush1.msra.mxu0 %v1141
    %1181 = vmatprep.subr.mxu0 0.0
    %1182 = vmatpush1.msra.mxu0 %v1142
    %1183 = vmatprep.subr.mxu0 0.0
    %1184 = vmatpush1.msra.mxu0 0.0
    %1185 = vmatprep.subr.mxu0 0.0
    %1186 = vmatpush1.msra.mxu0 0.0
    %1187 = vmatprep.subr.mxu0 0.0
    %1188 = vmatpush1.msra.mxu0 0.0
    %1189 = vmatprep.subr.mxu0 0.0
    %1190 = vmatpush1.msra.mxu0 0.0
    %1191 = vmatprep.subr.mxu0 0.0
    %1192 = vmatpush1.msra.mxu0 0.0
    %1193 = vmatprep.subr.mxu0 0.0
    %1194 = vmatpush1.msra.mxu0 0.0
    %1195 = vmatprep.subr.mxu0 0.0
    %1196 = vmatpush1.msra.mxu0 0.0
    %1197 = vmatprep.subr.mxu0 0.0
    %1198 = vmatpush1.msra.mxu0 0.0
    %1199 = vmatprep.subr.mxu0 0.0
    %1200 = vmatpush1.msra.mxu0 0.0
    %1201 = vmatprep.subr.mxu0 0.0
    %1202 = vmatpush1.msra.mxu0 0.0
    %1203 = vmatprep.subr.mxu0 0.0
    %1204 = vmatpush1.msra.mxu0 0.0
    %1205 = vmatprep.subr.mxu0 0.0
    %1206 = vmatpush1.msra.mxu0 0.0
    %1207 = vmatprep.subr.mxu0 0.0
    %1208 = vmatpush1.msra.mxu0 0.0
    %1209 = vmatprep.subr.mxu0 0.0
    %1210 = vmatpush1.msra.mxu0 0.0
    %1211 = vmatprep.subr.mxu0 0.0
    %1212 = vmatpush1.msra.mxu0 0.0
    %1213 = vmatprep.subr.mxu0 0.0
    %1214 = vmatpush1.msra.mxu0 0.0
    %1215 = vmatprep.subr.mxu0 0.0
    %1216 = vmatpush1.msra.mxu0 0.0
    %1217 = vmatprep.subr.mxu0 0.0
    %1218 = vmatpush1.msra.mxu0 0.0
    %1219 = vmatprep.subr.mxu0 0.0
    %1220 = vmatpush1.msra.mxu0 0.0
    %1221 = vmatprep.subr.mxu0 0.0
    %1222 = vmatpush1.msra.mxu0 0.0
    %1223 = vmatprep.subr.mxu0 0.0
    %1224 = vmatpush1.msra.mxu0 0.0
    %1225 = vmatprep.subr.mxu0 0.0
    %1226 = vmatpush1.msra.mxu0 0.0
    %1227 = vmatprep.subr.mxu0 0.0
    %1228 = vmatpush1.msra.mxu0 0.0
    %1229 = vmatprep.subr.mxu0 0.0
    %1230 = vmatpush1.msra.mxu0 0.0
    %1231 = vmatprep.subr.mxu0 0.0
    %1232 = vmatpush1.msra.mxu0 0.0
    %1233 = vmatprep.subr.mxu0 0.0
    %1234 = vmatpush1.msra.mxu0 0.0
    %1235 = vmatprep.subr.mxu0 0.0
    %1236 = vmatpush1.msra.mxu0 0.0
    %1237 = vmatprep.subr.mxu0 0.0
    %1238 = vmatpush1.msra.mxu0 0.0
    %1239 = vmatprep.mubr.f32.mxu0 0.0
    %1240 = vmatmul.mubr.f32.gmra.mrb[0].mxu0 %v1152
    %v1241 = vpop.f32.mrb[0].mxu0
    %v1242 = vadd.f32 %v1149, %v1241
    %v1243 = vpop.f32.mrb[0].mxu0
    %1244 = vmatprep.mubr.f32.mxu0 0.0
    %1245 = vmatmul.mubr.f32.gmra.mrb[0].mxu0 %v1155
    %v1246 = vpop.f32.mrb[0].mxu0
    %v1247 = vadd.f32 %v1149, %v1246
    %v1248 = vpop.f32.mrb[0].mxu0
    %1249 = vmatprep.mubr.f32.mxu0 0.0
    %1250 = vmatmul.mubr.f32.gmra.mrb[0].mxu0 %v1158
    %v1251 = vpop.f32.mrb[0].mxu0
    %v1252 = vadd.f32 %v1149, %v1251
    %v1253 = vpop.f32.mrb[0].mxu0
    %1254 = vmatprep.mubr.f32.mxu0 0.0
    %1255 = vmatmul.mubr.f32.gmra.mrb[0].mxu0 %v1161
    %v1256 = vpop.f32.mrb[0].mxu0
    %v1257 = vadd.f32 %v1149, %v1256
    %v1258 = vpop.f32.mrb[0].mxu0
    %1259 = vmatprep.mubr.f32.mxu0 0.0
    %1260 = vmatmul.mubr.f32.gmra.mrb[0].mxu0 %v1164
    %v1261 = vpop.f32.mrb[0].mxu0
    %v1262 = vadd.f32 %v1149, %v1261
    %v1263 = vpop.f32.mrb[0].mxu0
    %1264 = vmatprep.mubr.f32.mxu0 0.0
    %1265 = vmatmul.mubr.f32.gmra.mrb[0].mxu0 %v1167
    %v1266 = vpop.f32.mrb[0].mxu0
    %v1267 = vadd.f32 %v1149, %v1266
    %v1268 = vpop.f32.mrb[0].mxu0
    %1269 = vmatprep.mubr.f32.mxu0 0.0
    %1270 = vmatmul.mubr.f32.gmra.mrb[0].mxu0 %v1170
    %v1271 = vpop.f32.mrb[0].mxu0
    %v1272 = vadd.f32 %v1149, %v1271
    %v1273 = vpop.f32.mrb[0].mxu0
    %1274 = vmatprep.mubr.f32.mxu0 0.0
    %1275 = vmatmul.mubr.f32.gmra.mrb[0].mxu0 %v1173
    %v1276 = vpop.f32.mrb[0].mxu0
    %v1277 = vadd.f32 %v1149, %v1276
    %v1278 = vpop.f32.mrb[0].mxu0
    %1279 = vdwg.mxu0
    %1280 = vst [vmem:[#allocation3] sm:$0xff] %v1242
    %1281 = vst [vmem:[#allocation3 + $0x8] sm:$0xff] %v1247
    %1282 = vst [vmem:[#allocation3 + $0x10] sm:$0xff] %v1252
    %1283 = vst [vmem:[#allocation3 + $0x18] sm:$0xff] %v1257
    %1284 = vst [vmem:[#allocation3 + $0x20] sm:$0xff] %v1262
    %1285 = vst [vmem:[#allocation3 + $0x28] sm:$0xff] %v1267
    %1286 = vst [vmem:[#allocation3 + $0x30] sm:$0xff] %v1272
    %1287 = vst [vmem:[#allocation3 + $0x38] sm:$0xff] %v1277
    %1288 = vst.msk [vmem:[#allocation4] sm:$0xff] %vm58, 0.0
    %1289 = vst.msk [vmem:[#allocation5] sm:$0xff] %vm58, 0.0
    %s1290 = scalar_lea.vmem [#allocation7], 32
    %v1291 = vld [vmem:[%s1290] sm:$0xff]
    %v1292 = vld [vmem:[%s1290 + $0x8] sm:$0xff]
    %v1293 = vld [vmem:[%s1290 + $0x10] sm:$0xff]
    %v1294 = vld [vmem:[%s1290 + $0x18] sm:$0xff]
    %v1295 = vld [vmem:[#allocation3] sm:$0xff]
    %v1296 = vld [vmem:[#allocation4] sm:$0xff]
    %v1298 = vsel %vm58, %v1296, 0
    %1300 = vmatprep.subr.mxu0 0.0
    %1301 = vmatpush1.msra.mxu0 %v1291
    %1302 = vmatprep.subr.mxu0 0.0
    %1303 = vmatpush1.msra.mxu0 %v1292
    %1304 = vmatprep.subr.mxu0 0.0
    %1305 = vmatpush1.msra.mxu0 %v1293
    %1306 = vmatprep.subr.mxu0 0.0
    %1307 = vmatpush1.msra.mxu0 %v1294
    %1308 = vmatprep.subr.mxu0 0.0
    %1309 = vmatpush1.msra.mxu0 0.0
    %1310 = vmatprep.subr.mxu0 0.0
    %1311 = vmatpush1.msra.mxu0 0.0
    %1312 = vmatprep.subr.mxu0 0.0
    %1313 = vmatpush1.msra.mxu0 0.0
    %1314 = vmatprep.subr.mxu0 0.0
    %1315 = vmatpush1.msra.mxu0 0.0
    %1316 = vmatprep.subr.mxu0 0.0
    %1317 = vmatpush1.msra.mxu0 0.0
    %1318 = vmatprep.subr.mxu0 0.0
    %1319 = vmatpush1.msra.mxu0 0.0
    %1320 = vmatprep.subr.mxu0 0.0
    %1321 = vmatpush1.msra.mxu0 0.0
    %1322 = vmatprep.subr.mxu0 0.0
    %1323 = vmatpush1.msra.mxu0 0.0
    %1324 = vmatprep.subr.mxu0 0.0
    %1325 = vmatpush1.msra.mxu0 0.0
    %1326 = vmatprep.subr.mxu0 0.0
    %1327 = vmatpush1.msra.mxu0 0.0
    %1328 = vmatprep.subr.mxu0 0.0
    %1329 = vmatpush1.msra.mxu0 0.0
    %1330 = vmatprep.subr.mxu0 0.0
    %1331 = vmatpush1.msra.mxu0 0.0
    %1332 = vmatprep.subr.mxu0 0.0
    %1333 = vmatpush1.msra.mxu0 0.0
    %1334 = vmatprep.subr.mxu0 0.0
    %1335 = vmatpush1.msra.mxu0 0.0
    %1336 = vmatprep.subr.mxu0 0.0
    %1337 = vmatpush1.msra.mxu0 0.0
    %1338 = vmatprep.subr.mxu0 0.0
    %1339 = vmatpush1.msra.mxu0 0.0
    %1340 = vmatprep.subr.mxu0 0.0
    %1341 = vmatpush1.msra.mxu0 0.0
    %1342 = vmatprep.subr.mxu0 0.0
    %1343 = vmatpush1.msra.mxu0 0.0
    %1344 = vmatprep.subr.mxu0 0.0
    %1345 = vmatpush1.msra.mxu0 0.0
    %1346 = vmatprep.subr.mxu0 0.0
    %1347 = vmatpush1.msra.mxu0 0.0
    %1348 = vmatprep.subr.mxu0 0.0
    %1349 = vmatpush1.msra.mxu0 0.0
    %1350 = vmatprep.subr.mxu0 0.0
    %1351 = vmatpush1.msra.mxu0 0.0
    %1352 = vmatprep.subr.mxu0 0.0
    %1353 = vmatpush1.msra.mxu0 0.0
    %1354 = vmatprep.subr.mxu0 0.0
    %1355 = vmatpush1.msra.mxu0 0.0
    %1356 = vmatprep.subr.mxu0 0.0
    %1357 = vmatpush1.msra.mxu0 0.0
    %1358 = vmatprep.subr.mxu0 0.0
    %1359 = vmatpush1.msra.mxu0 0.0
    %1360 = vmatprep.subr.mxu0 0.0
    %1361 = vmatpush1.msra.mxu0 0.0
    %1362 = vmatprep.subr.mxu0 0.0
    %1363 = vmatpush1.msra.mxu0 0.0
    %1364 = vmatprep.mubr.f32.mxu0 0.0
    %1365 = vmatmul.mubr.f32.gmra.mrb[0].mxu0 %v1298
    %v1366 = vpop.f32.mrb[0].mxu0
    %v1367 = vadd.f32 0.0, %v1366
    %v1368 = vpop.f32.mrb[0].mxu0
    %1369 = vdwg.mxu0
    %v1370 = vadd.f32 %v1295, %v1367
    %v1371 = vxor.u32 %v1370, 2147483648
    %v1372 = vmul.f32 %v1371, 1.442695
    %v1373 = vpow.pop %v1372
    %v1374 = vadd.f32 %v1373, 1.0
    %v1375 = vrcp.pop %v1374
    %v1376 = vmul.f32 1.0, %v1375
    %v1377 = vtanh.pop %v1370
    %v1378 = vld [vmem:[#allocation5] sm:$0xff]
    %1380 = vrot.lane.b32.xlu0 %v1378, 32
    %v1381 = vpop.permute.xlu0 %1380
    %v1383 = vmul.f32 %v1376, %v1381
    %1385 = vrot.lane.b32.xlu0 %v1377, 64
    %v1386 = vpop.permute.xlu0 %1385
    %v1388 = vmul.f32 %v1376, %v1386
    %1390 = vrot.lane.b32.xlu0 %v1388, 32
    %v1391 = vpop.permute.xlu0 %1390
    %v1393 = vadd.f32 %v1383, %v1391
    %v1394 = vtanh.pop %v1393
    %1396 = vrot.lane.b32.xlu0 %v1394, 64
    %v1397 = vpop.permute.xlu0 %1396
    %v1399 = vmul.f32 %v1376, %v1397
    %1401 = vrot.lane.b32.xlu0 %v1393, 96
    %v1402 = vpop.permute.xlu0 %1401
    %1404 = vst.msk [vmem:[#allocation5] sm:$0xff] %vm58, %v1402
    %1406 = vrot.lane.b32.xlu0 %v1399, 32
    %v1407 = vpop.permute.xlu0 %1406
    %1409 = vst.msk [vmem:[#allocation4] sm:$0xff] %vm58, %v1407
    %v1410 = vld [vmem:[#allocation3 + $0x8] sm:$0xff]
    %v1411 = vld [vmem:[#allocation4] sm:$0xff]
    %v1413 = vsel %vm58, %v1411, 0
    %1415 = vmatprep.subr.mxu0 0.0
    %1416 = vmatpush1.msra.mxu0 %v1291
    %1417 = vmatprep.subr.mxu0 0.0
    %1418 = vmatpush1.msra.mxu0 %v1292
    %1419 = vmatprep.subr.mxu0 0.0
    %1420 = vmatpush1.msra.mxu0 %v1293
    %1421 = vmatprep.subr.mxu0 0.0
    %1422 = vmatpush1.msra.mxu0 %v1294
    %1423 = vmatprep.subr.mxu0 0.0
    %1424 = vmatpush1.msra.mxu0 0.0
    %1425 = vmatprep.subr.mxu0 0.0
    %1426 = vmatpush1.msra.mxu0 0.0
    %1427 = vmatprep.subr.mxu0 0.0
    %1428 = vmatpush1.msra.mxu0 0.0
    %1429 = vmatprep.subr.mxu0 0.0
    %1430 = vmatpush1.msra.mxu0 0.0
    %1431 = vmatprep.subr.mxu0 0.0
    %1432 = vmatpush1.msra.mxu0 0.0
    %1433 = vmatprep.subr.mxu0 0.0
    %1434 = vmatpush1.msra.mxu0 0.0
    %1435 = vmatprep.subr.mxu0 0.0
    %1436 = vmatpush1.msra.mxu0 0.0
    %1437 = vmatprep.subr.mxu0 0.0
    %1438 = vmatpush1.msra.mxu0 0.0
    %1439 = vmatprep.subr.mxu0 0.0
    %1440 = vmatpush1.msra.mxu0 0.0
    %1441 = vmatprep.subr.mxu0 0.0
    %1442 = vmatpush1.msra.mxu0 0.0
    %1443 = vmatprep.subr.mxu0 0.0
    %1444 = vmatpush1.msra.mxu0 0.0
    %1445 = vmatprep.subr.mxu0 0.0
    %1446 = vmatpush1.msra.mxu0 0.0
    %1447 = vmatprep.subr.mxu0 0.0
    %1448 = vmatpush1.msra.mxu0 0.0
    %1449 = vmatprep.subr.mxu0 0.0
    %1450 = vmatpush1.msra.mxu0 0.0
    %1451 = vmatprep.subr.mxu0 0.0
    %1452 = vmatpush1.msra.mxu0 0.0
    %1453 = vmatprep.subr.mxu0 0.0
    %1454 = vmatpush1.msra.mxu0 0.0
    %1455 = vmatprep.subr.mxu0 0.0
    %1456 = vmatpush1.msra.mxu0 0.0
    %1457 = vmatprep.subr.mxu0 0.0
    %1458 = vmatpush1.msra.mxu0 0.0
    %1459 = vmatprep.subr.mxu0 0.0
    %1460 = vmatpush1.msra.mxu0 0.0
    %1461 = vmatprep.subr.mxu0 0.0
    %1462 = vmatpush1.msra.mxu0 0.0
    %1463 = vmatprep.subr.mxu0 0.0
    %1464 = vmatpush1.msra.mxu0 0.0
    %1465 = vmatprep.subr.mxu0 0.0
    %1466 = vmatpush1.msra.mxu0 0.0
    %1467 = vmatprep.subr.mxu0 0.0
    %1468 = vmatpush1.msra.mxu0 0.0
    %1469 = vmatprep.subr.mxu0 0.0
    %1470 = vmatpush1.msra.mxu0 0.0
    %1471 = vmatprep.subr.mxu0 0.0
    %1472 = vmatpush1.msra.mxu0 0.0
    %1473 = vmatprep.subr.mxu0 0.0
    %1474 = vmatpush1.msra.mxu0 0.0
    %1475 = vmatprep.subr.mxu0 0.0
    %1476 = vmatpush1.msra.mxu0 0.0
    %1477 = vmatprep.subr.mxu0 0.0
    %1478 = vmatpush1.msra.mxu0 0.0
    %1479 = vmatprep.mubr.f32.mxu0 0.0
    %1480 = vmatmul.mubr.f32.gmra.mrb[0].mxu0 %v1413
    %v1481 = vpop.f32.mrb[0].mxu0
    %v1482 = vadd.f32 0.0, %v1481
    %v1483 = vpop.f32.mrb[0].mxu0
    %1484 = vdwg.mxu0
    %v1485 = vadd.f32 %v1410, %v1482
    %v1486 = vxor.u32 %v1485, 2147483648
    %v1487 = vmul.f32 %v1486, 1.442695
    %v1488 = vpow.pop %v1487
    %v1489 = vadd.f32 %v1488, 1.0
    %v1490 = vrcp.pop %v1489
    %v1491 = vmul.f32 1.0, %v1490
    %v1492 = vtanh.pop %v1485
    %v1493 = vld [vmem:[#allocation5] sm:$0xff]
    %1495 = vrot.lane.b32.xlu0 %v1493, 32
    %v1496 = vpop.permute.xlu0 %1495
    %v1498 = vmul.f32 %v1491, %v1496
    %1500 = vrot.lane.b32.xlu0 %v1492, 64
    %v1501 = vpop.permute.xlu0 %1500
    %v1503 = vmul.f32 %v1491, %v1501
    %1505 = vrot.lane.b32.xlu0 %v1503, 32
    %v1506 = vpop.permute.xlu0 %1505
    %v1508 = vadd.f32 %v1498, %v1506
    %v1509 = vtanh.pop %v1508
    %1511 = vrot.lane.b32.xlu0 %v1509, 64
    %v1512 = vpop.permute.xlu0 %1511
    %v1514 = vmul.f32 %v1491, %v1512
    %1516 = vrot.lane.b32.xlu0 %v1508, 96
    %v1517 = vpop.permute.xlu0 %1516
    %1519 = vst.msk [vmem:[#allocation5] sm:$0xff] %vm58, %v1517
    %1521 = vrot.lane.b32.xlu0 %v1514, 32
    %v1522 = vpop.permute.xlu0 %1521
    %1524 = vst.msk [vmem:[#allocation4] sm:$0xff] %vm58, %v1522
    %v1525 = vld [vmem:[#allocation3 + $0x10] sm:$0xff]
    %v1526 = vld [vmem:[#allocation4] sm:$0xff]
    %v1528 = vsel %vm58, %v1526, 0
    %1530 = vmatprep.subr.mxu0 0.0
    %1531 = vmatpush1.msra.mxu0 %v1291
    %1532 = vmatprep.subr.mxu0 0.0
    %1533 = vmatpush1.msra.mxu0 %v1292
    %1534 = vmatprep.subr.mxu0 0.0
    %1535 = vmatpush1.msra.mxu0 %v1293
    %1536 = vmatprep.subr.mxu0 0.0
    %1537 = vmatpush1.msra.mxu0 %v1294
    %1538 = vmatprep.subr.mxu0 0.0
    %1539 = vmatpush1.msra.mxu0 0.0
    %1540 = vmatprep.subr.mxu0 0.0
    %1541 = vmatpush1.msra.mxu0 0.0
    %1542 = vmatprep.subr.mxu0 0.0
    %1543 = vmatpush1.msra.mxu0 0.0
    %1544 = vmatprep.subr.mxu0 0.0
    %1545 = vmatpush1.msra.mxu0 0.0
    %1546 = vmatprep.subr.mxu0 0.0
    %1547 = vmatpush1.msra.mxu0 0.0
    %1548 = vmatprep.subr.mxu0 0.0
    %1549 = vmatpush1.msra.mxu0 0.0
    %1550 = vmatprep.subr.mxu0 0.0
    %1551 = vmatpush1.msra.mxu0 0.0
    %1552 = vmatprep.subr.mxu0 0.0
    %1553 = vmatpush1.msra.mxu0 0.0
    %1554 = vmatprep.subr.mxu0 0.0
    %1555 = vmatpush1.msra.mxu0 0.0
    %1556 = vmatprep.subr.mxu0 0.0
    %1557 = vmatpush1.msra.mxu0 0.0
    %1558 = vmatprep.subr.mxu0 0.0
    %1559 = vmatpush1.msra.mxu0 0.0
    %1560 = vmatprep.subr.mxu0 0.0
    %1561 = vmatpush1.msra.mxu0 0.0
    %1562 = vmatprep.subr.mxu0 0.0
    %1563 = vmatpush1.msra.mxu0 0.0
    %1564 = vmatprep.subr.mxu0 0.0
    %1565 = vmatpush1.msra.mxu0 0.0
    %1566 = vmatprep.subr.mxu0 0.0
    %1567 = vmatpush1.msra.mxu0 0.0
    %1568 = vmatprep.subr.mxu0 0.0
    %1569 = vmatpush1.msra.mxu0 0.0
    %1570 = vmatprep.subr.mxu0 0.0
    %1571 = vmatpush1.msra.mxu0 0.0
    %1572 = vmatprep.subr.mxu0 0.0
    %1573 = vmatpush1.msra.mxu0 0.0
    %1574 = vmatprep.subr.mxu0 0.0
    %1575 = vmatpush1.msra.mxu0 0.0
    %1576 = vmatprep.subr.mxu0 0.0
    %1577 = vmatpush1.msra.mxu0 0.0
    %1578 = vmatprep.subr.mxu0 0.0
    %1579 = vmatpush1.msra.mxu0 0.0
    %1580 = vmatprep.subr.mxu0 0.0
    %1581 = vmatpush1.msra.mxu0 0.0
    %1582 = vmatprep.subr.mxu0 0.0
    %1583 = vmatpush1.msra.mxu0 0.0
    %1584 = vmatprep.subr.mxu0 0.0
    %1585 = vmatpush1.msra.mxu0 0.0
    %1586 = vmatprep.subr.mxu0 0.0
    %1587 = vmatpush1.msra.mxu0 0.0
    %1588 = vmatprep.subr.mxu0 0.0
    %1589 = vmatpush1.msra.mxu0 0.0
    %1590 = vmatprep.subr.mxu0 0.0
    %1591 = vmatpush1.msra.mxu0 0.0
    %1592 = vmatprep.subr.mxu0 0.0
    %1593 = vmatpush1.msra.mxu0 0.0
    %1594 = vmatprep.mubr.f32.mxu0 0.0
    %1595 = vmatmul.mubr.f32.gmra.mrb[0].mxu0 %v1528
    %v1596 = vpop.f32.mrb[0].mxu0
    %v1597 = vadd.f32 0.0, %v1596
    %v1598 = vpop.f32.mrb[0].mxu0
    %1599 = vdwg.mxu0
    %v1600 = vadd.f32 %v1525, %v1597
    %v1601 = vxor.u32 %v1600, 2147483648
    %v1602 = vmul.f32 %v1601, 1.442695
    %v1603 = vpow.pop %v1602
    %v1604 = vadd.f32 %v1603, 1.0
    %v1605 = vrcp.pop %v1604
    %v1606 = vmul.f32 1.0, %v1605
    %v1607 = vtanh.pop %v1600
    %v1608 = vld [vmem:[#allocation5] sm:$0xff]
    %1610 = vrot.lane.b32.xlu0 %v1608, 32
    %v1611 = vpop.permute.xlu0 %1610
    %v1613 = vmul.f32 %v1606, %v1611
    %1615 = vrot.lane.b32.xlu0 %v1607, 64
    %v1616 = vpop.permute.xlu0 %1615
    %v1618 = vmul.f32 %v1606, %v1616
    %1620 = vrot.lane.b32.xlu0 %v1618, 32
    %v1621 = vpop.permute.xlu0 %1620
    %v1623 = vadd.f32 %v1613, %v1621
    %v1624 = vtanh.pop %v1623
    %1626 = vrot.lane.b32.xlu0 %v1624, 64
    %v1627 = vpop.permute.xlu0 %1626
    %v1629 = vmul.f32 %v1606, %v1627
    %1631 = vrot.lane.b32.xlu0 %v1623, 96
    %v1632 = vpop.permute.xlu0 %1631
    %1634 = vst.msk [vmem:[#allocation5] sm:$0xff] %vm58, %v1632
    %1636 = vrot.lane.b32.xlu0 %v1629, 32
    %v1637 = vpop.permute.xlu0 %1636
    %1639 = vst.msk [vmem:[#allocation4] sm:$0xff] %vm58, %v1637
    %v1640 = vld [vmem:[#allocation3 + $0x18] sm:$0xff]
    %v1641 = vld [vmem:[#allocation4] sm:$0xff]
    %v1643 = vsel %vm58, %v1641, 0
    %1645 = vmatprep.subr.mxu0 0.0
    %1646 = vmatpush1.msra.mxu0 %v1291
    %1647 = vmatprep.subr.mxu0 0.0
    %1648 = vmatpush1.msra.mxu0 %v1292
    %1649 = vmatprep.subr.mxu0 0.0
    %1650 = vmatpush1.msra.mxu0 %v1293
    %1651 = vmatprep.subr.mxu0 0.0
    %1652 = vmatpush1.msra.mxu0 %v1294
    %1653 = vmatprep.subr.mxu0 0.0
    %1654 = vmatpush1.msra.mxu0 0.0
    %1655 = vmatprep.subr.mxu0 0.0
    %1656 = vmatpush1.msra.mxu0 0.0
    %1657 = vmatprep.subr.mxu0 0.0
    %1658 = vmatpush1.msra.mxu0 0.0
    %1659 = vmatprep.subr.mxu0 0.0
    %1660 = vmatpush1.msra.mxu0 0.0
    %1661 = vmatprep.subr.mxu0 0.0
    %1662 = vmatpush1.msra.mxu0 0.0
    %1663 = vmatprep.subr.mxu0 0.0
    %1664 = vmatpush1.msra.mxu0 0.0
    %1665 = vmatprep.subr.mxu0 0.0
    %1666 = vmatpush1.msra.mxu0 0.0
    %1667 = vmatprep.subr.mxu0 0.0
    %1668 = vmatpush1.msra.mxu0 0.0
    %1669 = vmatprep.subr.mxu0 0.0
    %1670 = vmatpush1.msra.mxu0 0.0
    %1671 = vmatprep.subr.mxu0 0.0
    %1672 = vmatpush1.msra.mxu0 0.0
    %1673 = vmatprep.subr.mxu0 0.0
    %1674 = vmatpush1.msra.mxu0 0.0
    %1675 = vmatprep.subr.mxu0 0.0
    %1676 = vmatpush1.msra.mxu0 0.0
    %1677 = vmatprep.subr.mxu0 0.0
    %1678 = vmatpush1.msra.mxu0 0.0
    %1679 = vmatprep.subr.mxu0 0.0
    %1680 = vmatpush1.msra.mxu0 0.0
    %1681 = vmatprep.subr.mxu0 0.0
    %1682 = vmatpush1.msra.mxu0 0.0
    %1683 = vmatprep.subr.mxu0 0.0
    %1684 = vmatpush1.msra.mxu0 0.0
    %1685 = vmatprep.subr.mxu0 0.0
    %1686 = vmatpush1.msra.mxu0 0.0
    %1687 = vmatprep.subr.mxu0 0.0
    %1688 = vmatpush1.msra.mxu0 0.0
    %1689 = vmatprep.subr.mxu0 0.0
    %1690 = vmatpush1.msra.mxu0 0.0
    %1691 = vmatprep.subr.mxu0 0.0
    %1692 = vmatpush1.msra.mxu0 0.0
    %1693 = vmatprep.subr.mxu0 0.0
    %1694 = vmatpush1.msra.mxu0 0.0
    %1695 = vmatprep.subr.mxu0 0.0
    %1696 = vmatpush1.msra.mxu0 0.0
    %1697 = vmatprep.subr.mxu0 0.0
    %1698 = vmatpush1.msra.mxu0 0.0
    %1699 = vmatprep.subr.mxu0 0.0
    %1700 = vmatpush1.msra.mxu0 0.0
    %1701 = vmatprep.subr.mxu0 0.0
    %1702 = vmatpush1.msra.mxu0 0.0
    %1703 = vmatprep.subr.mxu0 0.0
    %1704 = vmatpush1.msra.mxu0 0.0
    %1705 = vmatprep.subr.mxu0 0.0
    %1706 = vmatpush1.msra.mxu0 0.0
    %1707 = vmatprep.subr.mxu0 0.0
    %1708 = vmatpush1.msra.mxu0 0.0
    %1709 = vmatprep.mubr.f32.mxu0 0.0
    %1710 = vmatmul.mubr.f32.gmra.mrb[0].mxu0 %v1643
    %v1711 = vpop.f32.mrb[0].mxu0
    %v1712 = vadd.f32 0.0, %v1711
    %v1713 = vpop.f32.mrb[0].mxu0
    %1714 = vdwg.mxu0
    %v1715 = vadd.f32 %v1640, %v1712
    %v1716 = vxor.u32 %v1715, 2147483648
    %v1717 = vmul.f32 %v1716, 1.442695
    %v1718 = vpow.pop %v1717
    %v1719 = vadd.f32 %v1718, 1.0
    %v1720 = vrcp.pop %v1719
    %v1721 = vmul.f32 1.0, %v1720
    %v1722 = vtanh.pop %v1715
    %v1723 = vld [vmem:[#allocation5] sm:$0xff]
    %1725 = vrot.lane.b32.xlu0 %v1723, 32
    %v1726 = vpop.permute.xlu0 %1725
    %v1728 = vmul.f32 %v1721, %v1726
    %1730 = vrot.lane.b32.xlu0 %v1722, 64
    %v1731 = vpop.permute.xlu0 %1730
    %v1733 = vmul.f32 %v1721, %v1731
    %1735 = vrot.lane.b32.xlu0 %v1733, 32
    %v1736 = vpop.permute.xlu0 %1735
    %v1738 = vadd.f32 %v1728, %v1736
    %v1739 = vtanh.pop %v1738
    %1741 = vrot.lane.b32.xlu0 %v1739, 64
    %v1742 = vpop.permute.xlu0 %1741
    %v1744 = vmul.f32 %v1721, %v1742
    %1746 = vrot.lane.b32.xlu0 %v1738, 96
    %v1747 = vpop.permute.xlu0 %1746
    %1749 = vst.msk [vmem:[#allocation5] sm:$0xff] %vm58, %v1747
    %1751 = vrot.lane.b32.xlu0 %v1744, 32
    %v1752 = vpop.permute.xlu0 %1751
    %1754 = vst.msk [vmem:[#allocation4] sm:$0xff] %vm58, %v1752
    %v1755 = vld [vmem:[#allocation3 + $0x20] sm:$0xff]
    %v1756 = vld [vmem:[#allocation4] sm:$0xff]
    %v1758 = vsel %vm58, %v1756, 0
    %1760 = vmatprep.subr.mxu0 0.0
    %1761 = vmatpush1.msra.mxu0 %v1291
    %1762 = vmatprep.subr.mxu0 0.0
    %1763 = vmatpush1.msra.mxu0 %v1292
    %1764 = vmatprep.subr.mxu0 0.0
    %1765 = vmatpush1.msra.mxu0 %v1293
    %1766 = vmatprep.subr.mxu0 0.0
    %1767 = vmatpush1.msra.mxu0 %v1294
    %1768 = vmatprep.subr.mxu0 0.0
    %1769 = vmatpush1.msra.mxu0 0.0
    %1770 = vmatprep.subr.mxu0 0.0
    %1771 = vmatpush1.msra.mxu0 0.0
    %1772 = vmatprep.subr.mxu0 0.0
    %1773 = vmatpush1.msra.mxu0 0.0
    %1774 = vmatprep.subr.mxu0 0.0
    %1775 = vmatpush1.msra.mxu0 0.0
    %1776 = vmatprep.subr.mxu0 0.0
    %1777 = vmatpush1.msra.mxu0 0.0
    %1778 = vmatprep.subr.mxu0 0.0
    %1779 = vmatpush1.msra.mxu0 0.0
    %1780 = vmatprep.subr.mxu0 0.0
    %1781 = vmatpush1.msra.mxu0 0.0
    %1782 = vmatprep.subr.mxu0 0.0
    %1783 = vmatpush1.msra.mxu0 0.0
    %1784 = vmatprep.subr.mxu0 0.0
    %1785 = vmatpush1.msra.mxu0 0.0
    %1786 = vmatprep.subr.mxu0 0.0
    %1787 = vmatpush1.msra.mxu0 0.0
    %1788 = vmatprep.subr.mxu0 0.0
    %1789 = vmatpush1.msra.mxu0 0.0
    %1790 = vmatprep.subr.mxu0 0.0
    %1791 = vmatpush1.msra.mxu0 0.0
    %1792 = vmatprep.subr.mxu0 0.0
    %1793 = vmatpush1.msra.mxu0 0.0
    %1794 = vmatprep.subr.mxu0 0.0
    %1795 = vmatpush1.msra.mxu0 0.0
    %1796 = vmatprep.subr.mxu0 0.0
    %1797 = vmatpush1.msra.mxu0 0.0
    %1798 = vmatprep.subr.mxu0 0.0
    %1799 = vmatpush1.msra.mxu0 0.0
    %1800 = vmatprep.subr.mxu0 0.0
    %1801 = vmatpush1.msra.mxu0 0.0
    %1802 = vmatprep.subr.mxu0 0.0
    %1803 = vmatpush1.msra.mxu0 0.0
    %1804 = vmatprep.subr.mxu0 0.0
    %1805 = vmatpush1.msra.mxu0 0.0
    %1806 = vmatprep.subr.mxu0 0.0
    %1807 = vmatpush1.msra.mxu0 0.0
    %1808 = vmatprep.subr.mxu0 0.0
    %1809 = vmatpush1.msra.mxu0 0.0
    %1810 = vmatprep.subr.mxu0 0.0
    %1811 = vmatpush1.msra.mxu0 0.0
    %1812 = vmatprep.subr.mxu0 0.0
    %1813 = vmatpush1.msra.mxu0 0.0
    %1814 = vmatprep.subr.mxu0 0.0
    %1815 = vmatpush1.msra.mxu0 0.0
    %1816 = vmatprep.subr.mxu0 0.0
    %1817 = vmatpush1.msra.mxu0 0.0
    %1818 = vmatprep.subr.mxu0 0.0
    %1819 = vmatpush1.msra.mxu0 0.0
    %1820 = vmatprep.subr.mxu0 0.0
    %1821 = vmatpush1.msra.mxu0 0.0
    %1822 = vmatprep.subr.mxu0 0.0
    %1823 = vmatpush1.msra.mxu0 0.0
    %1824 = vmatprep.mubr.f32.mxu0 0.0
    %1825 = vmatmul.mubr.f32.gmra.mrb[0].mxu0 %v1758
    %v1826 = vpop.f32.mrb[0].mxu0
    %v1827 = vadd.f32 0.0, %v1826
    %v1828 = vpop.f32.mrb[0].mxu0
    %1829 = vdwg.mxu0
    %v1830 = vadd.f32 %v1755, %v1827
    %v1831 = vxor.u32 %v1830, 2147483648
    %v1832 = vmul.f32 %v1831, 1.442695
    %v1833 = vpow.pop %v1832
    %v1834 = vadd.f32 %v1833, 1.0
    %v1835 = vrcp.pop %v1834
    %v1836 = vmul.f32 1.0, %v1835
    %v1837 = vtanh.pop %v1830
    %v1838 = vld [vmem:[#allocation5] sm:$0xff]
    %1840 = vrot.lane.b32.xlu0 %v1838, 32
    %v1841 = vpop.permute.xlu0 %1840
    %v1843 = vmul.f32 %v1836, %v1841
    %1845 = vrot.lane.b32.xlu0 %v1837, 64
    %v1846 = vpop.permute.xlu0 %1845
    %v1848 = vmul.f32 %v1836, %v1846
    %1850 = vrot.lane.b32.xlu0 %v1848, 32
    %v1851 = vpop.permute.xlu0 %1850
    %v1853 = vadd.f32 %v1843, %v1851
    %v1854 = vtanh.pop %v1853
    %1856 = vrot.lane.b32.xlu0 %v1854, 64
    %v1857 = vpop.permute.xlu0 %1856
    %v1859 = vmul.f32 %v1836, %v1857
    %1861 = vrot.lane.b32.xlu0 %v1853, 96
    %v1862 = vpop.permute.xlu0 %1861
    %1864 = vst.msk [vmem:[#allocation5] sm:$0xff] %vm58, %v1862
    %1866 = vrot.lane.b32.xlu0 %v1859, 32
    %v1867 = vpop.permute.xlu0 %1866
    %1869 = vst.msk [vmem:[#allocation4] sm:$0xff] %vm58, %v1867
    %v1870 = vld [vmem:[#allocation3 + $0x28] sm:$0xff]
    %v1871 = vld [vmem:[#allocation4] sm:$0xff]
    %v1873 = vsel %vm58, %v1871, 0
    %1875 = vmatprep.subr.mxu0 0.0
    %1876 = vmatpush1.msra.mxu0 %v1291
    %1877 = vmatprep.subr.mxu0 0.0
    %1878 = vmatpush1.msra.mxu0 %v1292
    %1879 = vmatprep.subr.mxu0 0.0
    %1880 = vmatpush1.msra.mxu0 %v1293
    %1881 = vmatprep.subr.mxu0 0.0
    %1882 = vmatpush1.msra.mxu0 %v1294
    %1883 = vmatprep.subr.mxu0 0.0
    %1884 = vmatpush1.msra.mxu0 0.0
    %1885 = vmatprep.subr.mxu0 0.0
    %1886 = vmatpush1.msra.mxu0 0.0
    %1887 = vmatprep.subr.mxu0 0.0
    %1888 = vmatpush1.msra.mxu0 0.0
    %1889 = vmatprep.subr.mxu0 0.0
    %1890 = vmatpush1.msra.mxu0 0.0
    %1891 = vmatprep.subr.mxu0 0.0
    %1892 = vmatpush1.msra.mxu0 0.0
    %1893 = vmatprep.subr.mxu0 0.0
    %1894 = vmatpush1.msra.mxu0 0.0
    %1895 = vmatprep.subr.mxu0 0.0
    %1896 = vmatpush1.msra.mxu0 0.0
    %1897 = vmatprep.subr.mxu0 0.0
    %1898 = vmatpush1.msra.mxu0 0.0
    %1899 = vmatprep.subr.mxu0 0.0
    %1900 = vmatpush1.msra.mxu0 0.0
    %1901 = vmatprep.subr.mxu0 0.0
    %1902 = vmatpush1.msra.mxu0 0.0
    %1903 = vmatprep.subr.mxu0 0.0
    %1904 = vmatpush1.msra.mxu0 0.0
    %1905 = vmatprep.subr.mxu0 0.0
    %1906 = vmatpush1.msra.mxu0 0.0
    %1907 = vmatprep.subr.mxu0 0.0
    %1908 = vmatpush1.msra.mxu0 0.0
    %1909 = vmatprep.subr.mxu0 0.0
    %1910 = vmatpush1.msra.mxu0 0.0
    %1911 = vmatprep.subr.mxu0 0.0
    %1912 = vmatpush1.msra.mxu0 0.0
    %1913 = vmatprep.subr.mxu0 0.0
    %1914 = vmatpush1.msra.mxu0 0.0
    %1915 = vmatprep.subr.mxu0 0.0
    %1916 = vmatpush1.msra.mxu0 0.0
    %1917 = vmatprep.subr.mxu0 0.0
    %1918 = vmatpush1.msra.mxu0 0.0
    %1919 = vmatprep.subr.mxu0 0.0
    %1920 = vmatpush1.msra.mxu0 0.0
    %1921 = vmatprep.subr.mxu0 0.0
    %1922 = vmatpush1.msra.mxu0 0.0
    %1923 = vmatprep.subr.mxu0 0.0
    %1924 = vmatpush1.msra.mxu0 0.0
    %1925 = vmatprep.subr.mxu0 0.0
    %1926 = vmatpush1.msra.mxu0 0.0
    %1927 = vmatprep.subr.mxu0 0.0
    %1928 = vmatpush1.msra.mxu0 0.0
    %1929 = vmatprep.subr.mxu0 0.0
    %1930 = vmatpush1.msra.mxu0 0.0
    %1931 = vmatprep.subr.mxu0 0.0
    %1932 = vmatpush1.msra.mxu0 0.0
    %1933 = vmatprep.subr.mxu0 0.0
    %1934 = vmatpush1.msra.mxu0 0.0
    %1935 = vmatprep.subr.mxu0 0.0
    %1936 = vmatpush1.msra.mxu0 0.0
    %1937 = vmatprep.subr.mxu0 0.0
    %1938 = vmatpush1.msra.mxu0 0.0
    %1939 = vmatprep.mubr.f32.mxu0 0.0
    %1940 = vmatmul.mubr.f32.gmra.mrb[0].mxu0 %v1873
    %v1941 = vpop.f32.mrb[0].mxu0
    %v1942 = vadd.f32 0.0, %v1941
    %v1943 = vpop.f32.mrb[0].mxu0
    %1944 = vdwg.mxu0
    %v1945 = vadd.f32 %v1870, %v1942
    %v1946 = vxor.u32 %v1945, 2147483648
    %v1947 = vmul.f32 %v1946, 1.442695
    %v1948 = vpow.pop %v1947
    %v1949 = vadd.f32 %v1948, 1.0
    %v1950 = vrcp.pop %v1949
    %v1951 = vmul.f32 1.0, %v1950
    %v1952 = vtanh.pop %v1945
    %v1953 = vld [vmem:[#allocation5] sm:$0xff]
    %1955 = vrot.lane.b32.xlu0 %v1953, 32
    %v1956 = vpop.permute.xlu0 %1955
    %v1958 = vmul.f32 %v1951, %v1956
    %1960 = vrot.lane.b32.xlu0 %v1952, 64
    %v1961 = vpop.permute.xlu0 %1960
    %v1963 = vmul.f32 %v1951, %v1961
    %1965 = vrot.lane.b32.xlu0 %v1963, 32
    %v1966 = vpop.permute.xlu0 %1965
    %v1968 = vadd.f32 %v1958, %v1966
    %v1969 = vtanh.pop %v1968
    %1971 = vrot.lane.b32.xlu0 %v1969, 64
    %v1972 = vpop.permute.xlu0 %1971
    %v1974 = vmul.f32 %v1951, %v1972
    %1976 = vrot.lane.b32.xlu0 %v1968, 96
    %v1977 = vpop.permute.xlu0 %1976
    %1979 = vst.msk [vmem:[#allocation5] sm:$0xff] %vm58, %v1977
    %1981 = vrot.lane.b32.xlu0 %v1974, 32
    %v1982 = vpop.permute.xlu0 %1981
    %1984 = vst.msk [vmem:[#allocation4] sm:$0xff] %vm58, %v1982
    %v1985 = vld [vmem:[#allocation3 + $0x30] sm:$0xff]
    %v1986 = vld [vmem:[#allocation4] sm:$0xff]
    %v1988 = vsel %vm58, %v1986, 0
    %1990 = vmatprep.subr.mxu0 0.0
    %1991 = vmatpush1.msra.mxu0 %v1291
    %1992 = vmatprep.subr.mxu0 0.0
    %1993 = vmatpush1.msra.mxu0 %v1292
    %1994 = vmatprep.subr.mxu0 0.0
    %1995 = vmatpush1.msra.mxu0 %v1293
    %1996 = vmatprep.subr.mxu0 0.0
    %1997 = vmatpush1.msra.mxu0 %v1294
    %1998 = vmatprep.subr.mxu0 0.0
    %1999 = vmatpush1.msra.mxu0 0.0
    %2000 = vmatprep.subr.mxu0 0.0
    %2001 = vmatpush1.msra.mxu0 0.0
    %2002 = vmatprep.subr.mxu0 0.0
    %2003 = vmatpush1.msra.mxu0 0.0
    %2004 = vmatprep.subr.mxu0 0.0
    %2005 = vmatpush1.msra.mxu0 0.0
    %2006 = vmatprep.subr.mxu0 0.0
    %2007 = vmatpush1.msra.mxu0 0.0
    %2008 = vmatprep.subr.mxu0 0.0
    %2009 = vmatpush1.msra.mxu0 0.0
    %2010 = vmatprep.subr.mxu0 0.0
    %2011 = vmatpush1.msra.mxu0 0.0
    %2012 = vmatprep.subr.mxu0 0.0
    %2013 = vmatpush1.msra.mxu0 0.0
    %2014 = vmatprep.subr.mxu0 0.0
    %2015 = vmatpush1.msra.mxu0 0.0
    %2016 = vmatprep.subr.mxu0 0.0
    %2017 = vmatpush1.msra.mxu0 0.0
    %2018 = vmatprep.subr.mxu0 0.0
    %2019 = vmatpush1.msra.mxu0 0.0
    %2020 = vmatprep.subr.mxu0 0.0
    %2021 = vmatpush1.msra.mxu0 0.0
    %2022 = vmatprep.subr.mxu0 0.0
    %2023 = vmatpush1.msra.mxu0 0.0
    %2024 = vmatprep.subr.mxu0 0.0
    %2025 = vmatpush1.msra.mxu0 0.0
    %2026 = vmatprep.subr.mxu0 0.0
    %2027 = vmatpush1.msra.mxu0 0.0
    %2028 = vmatprep.subr.mxu0 0.0
    %2029 = vmatpush1.msra.mxu0 0.0
    %2030 = vmatprep.subr.mxu0 0.0
    %2031 = vmatpush1.msra.mxu0 0.0
    %2032 = vmatprep.subr.mxu0 0.0
    %2033 = vmatpush1.msra.mxu0 0.0
    %2034 = vmatprep.subr.mxu0 0.0
    %2035 = vmatpush1.msra.mxu0 0.0
    %2036 = vmatprep.subr.mxu0 0.0
    %2037 = vmatpush1.msra.mxu0 0.0
    %2038 = vmatprep.subr.mxu0 0.0
    %2039 = vmatpush1.msra.mxu0 0.0
    %2040 = vmatprep.subr.mxu0 0.0
    %2041 = vmatpush1.msra.mxu0 0.0
    %2042 = vmatprep.subr.mxu0 0.0
    %2043 = vmatpush1.msra.mxu0 0.0
    %2044 = vmatprep.subr.mxu0 0.0
    %2045 = vmatpush1.msra.mxu0 0.0
    %2046 = vmatprep.subr.mxu0 0.0
    %2047 = vmatpush1.msra.mxu0 0.0
    %2048 = vmatprep.subr.mxu0 0.0
    %2049 = vmatpush1.msra.mxu0 0.0
    %2050 = vmatprep.subr.mxu0 0.0
    %2051 = vmatpush1.msra.mxu0 0.0
    %2052 = vmatprep.subr.mxu0 0.0
    %2053 = vmatpush1.msra.mxu0 0.0
    %2054 = vmatprep.mubr.f32.mxu0 0.0
    %2055 = vmatmul.mubr.f32.gmra.mrb[0].mxu0 %v1988
    %v2056 = vpop.f32.mrb[0].mxu0
    %v2057 = vadd.f32 0.0, %v2056
    %v2058 = vpop.f32.mrb[0].mxu0
    %2059 = vdwg.mxu0
    %v2060 = vadd.f32 %v1985, %v2057
    %v2061 = vxor.u32 %v2060, 2147483648
    %v2062 = vmul.f32 %v2061, 1.442695
    %v2063 = vpow.pop %v2062
    %v2064 = vadd.f32 %v2063, 1.0
    %v2065 = vrcp.pop %v2064
    %v2066 = vmul.f32 1.0, %v2065
    %v2067 = vtanh.pop %v2060
    %v2068 = vld [vmem:[#allocation5] sm:$0xff]
    %2070 = vrot.lane.b32.xlu0 %v2068, 32
    %v2071 = vpop.permute.xlu0 %2070
    %v2073 = vmul.f32 %v2066, %v2071
    %2075 = vrot.lane.b32.xlu0 %v2067, 64
    %v2076 = vpop.permute.xlu0 %2075
    %v2078 = vmul.f32 %v2066, %v2076
    %2080 = vrot.lane.b32.xlu0 %v2078, 32
    %v2081 = vpop.permute.xlu0 %2080
    %v2083 = vadd.f32 %v2073, %v2081
    %v2084 = vtanh.pop %v2083
    %2086 = vrot.lane.b32.xlu0 %v2084, 64
    %v2087 = vpop.permute.xlu0 %2086
    %v2089 = vmul.f32 %v2066, %v2087
    %2091 = vrot.lane.b32.xlu0 %v2083, 96
    %v2092 = vpop.permute.xlu0 %2091
    %2094 = vst.msk [vmem:[#allocation5] sm:$0xff] %vm58, %v2092
    %2096 = vrot.lane.b32.xlu0 %v2089, 32
    %v2097 = vpop.permute.xlu0 %2096
    %2099 = vst.msk [vmem:[#allocation4] sm:$0xff] %vm58, %v2097
    %v2100 = vld [vmem:[#allocation3 + $0x38] sm:$0xff]
    %v2101 = vld [vmem:[#allocation4] sm:$0xff]
    %v2103 = vsel %vm58, %v2101, 0
    %2105 = vmatprep.subr.mxu0 0.0
    %2106 = vmatpush1.msra.mxu0 %v1291
    %2107 = vmatprep.subr.mxu0 0.0
    %2108 = vmatpush1.msra.mxu0 %v1292
    %2109 = vmatprep.subr.mxu0 0.0
    %2110 = vmatpush1.msra.mxu0 %v1293
    %2111 = vmatprep.subr.mxu0 0.0
    %2112 = vmatpush1.msra.mxu0 %v1294
    %2113 = vmatprep.subr.mxu0 0.0
    %2114 = vmatpush1.msra.mxu0 0.0
    %2115 = vmatprep.subr.mxu0 0.0
    %2116 = vmatpush1.msra.mxu0 0.0
    %2117 = vmatprep.subr.mxu0 0.0
    %2118 = vmatpush1.msra.mxu0 0.0
    %2119 = vmatprep.subr.mxu0 0.0
    %2120 = vmatpush1.msra.mxu0 0.0
    %2121 = vmatprep.subr.mxu0 0.0
    %2122 = vmatpush1.msra.mxu0 0.0
    %2123 = vmatprep.subr.mxu0 0.0
    %2124 = vmatpush1.msra.mxu0 0.0
    %2125 = vmatprep.subr.mxu0 0.0
    %2126 = vmatpush1.msra.mxu0 0.0
    %2127 = vmatprep.subr.mxu0 0.0
    %2128 = vmatpush1.msra.mxu0 0.0
    %2129 = vmatprep.subr.mxu0 0.0
    %2130 = vmatpush1.msra.mxu0 0.0
    %2131 = vmatprep.subr.mxu0 0.0
    %2132 = vmatpush1.msra.mxu0 0.0
    %2133 = vmatprep.subr.mxu0 0.0
    %2134 = vmatpush1.msra.mxu0 0.0
    %2135 = vmatprep.subr.mxu0 0.0
    %2136 = vmatpush1.msra.mxu0 0.0
    %2137 = vmatprep.subr.mxu0 0.0
    %2138 = vmatpush1.msra.mxu0 0.0
    %2139 = vmatprep.subr.mxu0 0.0
    %2140 = vmatpush1.msra.mxu0 0.0
    %2141 = vmatprep.subr.mxu0 0.0
    %2142 = vmatpush1.msra.mxu0 0.0
    %2143 = vmatprep.subr.mxu0 0.0
    %2144 = vmatpush1.msra.mxu0 0.0
    %2145 = vmatprep.subr.mxu0 0.0
    %2146 = vmatpush1.msra.mxu0 0.0
    %2147 = vmatprep.subr.mxu0 0.0
    %2148 = vmatpush1.msra.mxu0 0.0
    %2149 = vmatprep.subr.mxu0 0.0
    %2150 = vmatpush1.msra.mxu0 0.0
    %2151 = vmatprep.subr.mxu0 0.0
    %2152 = vmatpush1.msra.mxu0 0.0
    %2153 = vmatprep.subr.mxu0 0.0
    %2154 = vmatpush1.msra.mxu0 0.0
    %2155 = vmatprep.subr.mxu0 0.0
    %2156 = vmatpush1.msra.mxu0 0.0
    %2157 = vmatprep.subr.mxu0 0.0
    %2158 = vmatpush1.msra.mxu0 0.0
    %2159 = vmatprep.subr.mxu0 0.0
    %2160 = vmatpush1.msra.mxu0 0.0
    %2161 = vmatprep.subr.mxu0 0.0
    %2162 = vmatpush1.msra.mxu0 0.0
    %2163 = vmatprep.subr.mxu0 0.0
    %2164 = vmatpush1.msra.mxu0 0.0
    %2165 = vmatprep.subr.mxu0 0.0
    %2166 = vmatpush1.msra.mxu0 0.0
    %2167 = vmatprep.subr.mxu0 0.0
    %2168 = vmatpush1.msra.mxu0 0.0
    %2169 = vmatprep.mubr.f32.mxu0 0.0
    %2170 = vmatmul.mubr.f32.gmra.mrb[0].mxu0 %v2103
    %v2171 = vpop.f32.mrb[0].mxu0
    %v2172 = vadd.f32 0.0, %v2171
    %v2173 = vpop.f32.mrb[0].mxu0
    %2174 = vdwg.mxu0
    %v2175 = vadd.f32 %v2100, %v2172
    %v2176 = vxor.u32 %v2175, 2147483648
    %v2177 = vmul.f32 %v2176, 1.442695
    %v2178 = vpow.pop %v2177
    %v2179 = vadd.f32 %v2178, 1.0
    %v2180 = vrcp.pop %v2179
    %v2181 = vmul.f32 1.0, %v2180
    %v2182 = vtanh.pop %v2175
    %v2183 = vld [vmem:[#allocation5] sm:$0xff]
    %2185 = vrot.lane.b32.xlu0 %v2183, 32
    %v2186 = vpop.permute.xlu0 %2185
    %v2188 = vmul.f32 %v2181, %v2186
    %2190 = vrot.lane.b32.xlu0 %v2182, 64
    %v2191 = vpop.permute.xlu0 %2190
    %v2193 = vmul.f32 %v2181, %v2191
    %2195 = vrot.lane.b32.xlu0 %v2193, 32
    %v2196 = vpop.permute.xlu0 %2195
    %v2198 = vadd.f32 %v2188, %v2196
    %v2199 = vtanh.pop %v2198
    %2201 = vrot.lane.b32.xlu0 %v2199, 64
    %v2202 = vpop.permute.xlu0 %2201
    %v2204 = vmul.f32 %v2181, %v2202
    %2206 = vrot.lane.b32.xlu0 %v2198, 96
    %v2207 = vpop.permute.xlu0 %2206
    %2209 = vst.msk [vmem:[#allocation5] sm:$0xff] %vm58, %v2207
    %2211 = vrot.lane.b32.xlu0 %v2204, 32
    %v2212 = vpop.permute.xlu0 %2211
    %2214 = vst.msk [vmem:[#allocation4] sm:$0xff] %vm58, %v2212
    %v2215 = vld [vmem:[#allocation4] sm:$0xff]
    %v2216 = vld [vmem:[%s4] sm:$0x1]
    %v2218 = vlaneseq
    %v2219 = vshrl.u32 %v2218, 7
    %v2220 = vsub.s32 0, %v2219
    %v2221 = vrot.slane %v2216, %v2220
    %v2223 = vmul.f32 %v2215, %v2221
    %v2224 = vsel %vm58, %v2223, 0.0
    %2225 = vadd.xlane.f32.xlu0 %v2224
    %v2226 = vpop.xlane.xlu0 %2225
    %v2227 = vld [vmem:[#allocation6] sm:$0x1]
    %v2229 = vlaneseq
    %v2230 = vshrl.u32 %v2229, 7
    %v2231 = vsub.s32 0, %v2230
    %v2232 = vrot.slane %v2227, %v2231
    %v2234 = vadd.f32 %v2226, %v2232
    %vm2235 = vcmask 7168
    %2236 = vst.msk [vmem:[%s6] sm:$0xff] %vm2235, %v2234
    // Predicated region
    $region30: #{tpu_custom_call.1} parent=1 // pred_check
      _
    $region31: #{tpu_custom_call.1} parent=1 // pred_check_branch
      %2238 = sbr.rel (0) target = $region33
    $region32: #{tpu_custom_call.1} parent=1 // pred_region
      _
    $region33: #{tpu_custom_call.1} parent=1 // pred_fallthru
      _
    // Predicated region
    $region34: #{tpu_custom_call.1} parent=1 // pred_check
      _
    $region35: #{tpu_custom_call.1} parent=1 // pred_check_branch
      %2240 = sbr.rel (0) target = $region37
    $region36: #{tpu_custom_call.1} parent=1 // pred_region
      _
    $region37: #{tpu_custom_call.1} parent=1 // pred_fallthru
      _
    %2241 = vsyncpa [#allocation8], 1

</llo_original>
